<compile_context>
chip_gen: v7x
topology: tpu7x:2x2x1
jax: 0.10.0
libtpu: 0.0.40
codegen_flags: <defaults>
</compile_context>

<pallas_src>
import jax
import jax.numpy as jnp
from jax import lax
from jax.experimental import pallas as pl
from jax.experimental.pallas import tpu as pltpu


# ----------------------------------------------------------------------------
# Fused Pallas kernel (all LSTM layers + BN + FC)
# ----------------------------------------------------------------------------
def make_fused_kernel(num_layers, B, T, H):
    def kernel(*refs):
        len_ref = refs[0]                       # (B, 1) int32 sequence lengths
        x_ref = refs[1]                         # (T*B, Din) time-major flat input
        w_refs = refs[2:2 + 3 * num_layers]     # per layer: w_ih_t, w_hh_t, bias
        (gamma_ref, beta_ref, mean_ref, var_ref,
         wfc_ref, bfc_ref, out_ref, y_sc) = refs[2 + 3 * num_layers:]

        lengths = len_ref[...]                  # (B, 1) int32
        layer_in = x_ref[...]                   # (T*B, Din) value for layer 0
        h = None

        for l in range(num_layers):
            w_ih = w_refs[3 * l][...]           # (Din_l, 4H)
            w_hh = w_refs[3 * l + 1][...]       # (H,     4H)
            bias = w_refs[3 * l + 2][...]       # (1,     4H)
            last = (l == num_layers - 1)

            # Hoisted input projection: one lane-dense matmul for all timesteps.
            xp = jnp.dot(layer_in, w_ih,
                         preferred_element_type=jnp.float32) + bias   # (T*B, 4H)

            h = jnp.zeros((B, H), jnp.float32)
            c = jnp.zeros((B, H), jnp.float32)

            # Fully unrolled recurrence (T is small & static).
            for t in range(T):
                gates = xp[t * B:(t + 1) * B, :] + jnp.dot(
                    h, w_hh, preferred_element_type=jnp.float32)      # (B, 4H)
                # PyTorch gate order: input, forget, cell(g), output
                i_g = jax.nn.sigmoid(gates[:, 0:H])
                f_g = jax.nn.sigmoid(gates[:, H:2 * H])
                g_g = jnp.tanh(gates[:, 2 * H:3 * H])
                o_g = jax.nn.sigmoid(gates[:, 3 * H:4 * H])
                c_new = f_g * c + i_g * g_g
                h_new = o_g * jnp.tanh(c_new)
                # Freeze state for finished sequences (packed-sequence semantics).
                keep = t < lengths                                     # (B, 1) bool
                h = jnp.where(keep, h_new, h)
                c = jnp.where(keep, c_new, c)
                if not last:
                    # Stash hidden sequence (time-major) in VMEM for the next layer.
                    y_sc[t * B:(t + 1) * B, :] = h

            if not last:
                layer_in = y_sc[...]            # (T*B, H) input to next layer

        # Fused epilogue: BatchNorm1d (eval mode, running stats) + Linear.
        eps = 1e-5
        xn = (h - mean_ref[...]) * lax.rsqrt(var_ref[...] + eps)
        xn = xn * gamma_ref[...] + beta_ref[...]
        out_ref[...] = (jnp.dot(xn, wfc_ref[...],
                                preferred_element_type=jnp.float32)
                        + bfc_ref[...]).astype(out_ref.dtype)

    return kernel


_VMEM = pl.BlockSpec(memory_space=pltpu.MemorySpace.VMEM)


def lstm_model_forward(x, lengths, params):
    """Full LSTMModel forward: stacked LSTM -> hidden[-1] -> BatchNorm1d -> Linear."""
    B, T, Din = x.shape
    H = params["hidden_dim"]
    O = params["fc_w_t"].shape[1]
    num_layers = len(params["lstm"])

    # Time-major flat layout so the per-step gate block is a lane-dense row slice.
    x_tm = jnp.transpose(x, (1, 0, 2)).reshape(T * B, Din)
    len2d = lengths.reshape(B, 1).astype(jnp.int32)

    weight_args = []
    for (w_ih_t, w_hh_t, b) in params["lstm"]:
        weight_args += [w_ih_t, w_hh_t, b]

    # Advisory cost estimate for the XLA scheduler.
    flops = 0
    d_in = Din
    for _ in range(num_layers):
        flops += 2 * B * T * (d_in + H) * (4 * H)
        d_in = H
    flops += 2 * B * H * O
    transcendentals = 5 * B * H * T * num_layers
    bytes_accessed = 4 * (x_tm.size
                          + sum(int(w.size) for w in weight_args)
                          + B + 6 * H + H * O + O + B * O)

    kernel = make_fused_kernel(num_layers, B, T, H)
    n_in = 2 + len(weight_args) + 6

    return pl.pallas_call(
        kernel,
        out_shape=jax.ShapeDtypeStruct((B, O), jnp.float32),
        in_specs=[_VMEM] * n_in,
        out_specs=_VMEM,
        scratch_shapes=[pltpu.VMEM((T * B, H), jnp.float32)],
        cost_estimate=pl.CostEstimate(flops=int(flops),
                                      transcendentals=int(transcendentals),
                                      bytes_accessed=int(bytes_accessed)),
    )(len2d, x_tm, *weight_args,
      params["bn_gamma"], params["bn_beta"], params["bn_mean"], params["bn_var"],
      params["fc_w_t"], params["fc_b"])


# ----------------------------------------------------------------------------
# Pure-JAX reference (for correctness check)
# ----------------------------------------------------------------------------
def reference_forward(x, lengths, params):
    B, T, _ = x.shape
    H = params["hidden_dim"]
    inp = x
    h = None
    for (w_ih_t, w_hh_t, b) in params["lstm"]:
        h = jnp.zeros((B, H), jnp.float32)
        c = jnp.zeros((B, H), jnp.float32)
        ys = []
        for t in range(T):
            gates = inp[:, t, :] @ w_ih_t + h @ w_hh_t + b
            i = jax.nn.sigmoid(gates[:, :H])
            f = jax.nn.sigmoid(gates[:, H:2 * H])
            g = jnp.tanh(gates[:, 2 * H:3 * H])
            o = jax.nn.sigmoid(gates[:, 3 * H:])
            c_new = f * c + i * g
            h_new = o * jnp.tanh(c_new)
            m = (t < lengths).astype(jnp.float32)[:, None]
            h = m * h_new + (1.0 - m) * h
            c = m * c_new + (1.0 - m) * c
            ys.append(h)
        inp = jnp.stack(ys, axis=1)
    eps = 1e-5
    xn = (h - params["bn_mean"]) * lax.rsqrt(params["bn_var"] + eps)
    xn = xn * params["bn_gamma"] + params["bn_beta"]
    return xn @ params["fc_w_t"] + params["fc_b"]


# ----------------------------------------------------------------------------
# Deterministic parameter construction (shapes mirror nn.LSTM / BatchNorm1d / Linear)
# ----------------------------------------------------------------------------
def init_params(key, input_dim, hidden_dim, output_dim, num_layers):
    params = {"hidden_dim": hidden_dim, "lstm": []}
    scale = 1.0 / jnp.sqrt(hidden_dim)
    for layer in range(num_layers):
        d_in = input_dim if layer == 0 else hidden_dim
        key, k1, k2, k3, k4 = jax.random.split(key, 5)
        w_ih = jax.random.uniform(k1, (4 * hidden_dim, d_in), jnp.float32, -scale, scale)
        w_hh = jax.random.uniform(k2, (4 * hidden_dim, hidden_dim), jnp.float32, -scale, scale)
        b_ih = jax.random.uniform(k3, (4 * hidden_dim,), jnp.float32, -scale, scale)
        b_hh = jax.random.uniform(k4, (4 * hidden_dim,), jnp.float32, -scale, scale)
        params["lstm"].append((w_ih.T, w_hh.T, (b_ih + b_hh)[None, :]))
    # BatchNorm1d(hidden_dim): freshly initialized running stats (eval mode).
    params["bn_gamma"] = jnp.ones((1, hidden_dim), jnp.float32)
    params["bn_beta"] = jnp.zeros((1, hidden_dim), jnp.float32)
    params["bn_mean"] = jnp.zeros((1, hidden_dim), jnp.float32)
    params["bn_var"] = jnp.ones((1, hidden_dim), jnp.float32)
    # Linear(hidden_dim, output_dim)
    key, k5, k6 = jax.random.split(key, 3)
    fc_scale = 1.0 / jnp.sqrt(hidden_dim)
    w_fc = jax.random.uniform(k5, (output_dim, hidden_dim), jnp.float32, -fc_scale, fc_scale)
    b_fc = jax.random.uniform(k6, (output_dim,), jnp.float32, -fc_scale, fc_scale)
    params["fc_w_t"] = w_fc.T
    params["fc_b"] = b_fc[None, :]
    return params


# ----------------------------------------------------------------------------
# Main
# ----------------------------------------------------------------------------
if __name__ == "__main__":
    INPUT_DIM, HIDDEN_DIM, OUTPUT_DIM, NUM_LAYERS = 16, 32, 8, 2
    B, T = 4, 8

    key = jax.random.PRNGKey(0)
    key, kx = jax.random.split(key)
    x = jax.random.normal(kx, (B, T, INPUT_DIM), jnp.float32)
    lengths = jnp.array([8, 5, 8, 3], dtype=jnp.int32)

    params = init_params(key, INPUT_DIM, HIDDEN_DIM, OUTPUT_DIM, NUM_LAYERS)

    out = lstm_model_forward(x, lengths, params)
    out = jax.block_until_ready(out)

    ref = reference_forward(x, lengths, params)
    assert out.shape == (B, OUTPUT_DIM)
    assert jnp.allclose(out, ref, atol=1e-4, rtol=1e-4), "mismatch vs JAX reference"

    print("KERNEL_OK")
</pallas_src>

<mosaic_0001>
module attributes {stable_mosaic.version = 11 : i64} {
  func.func @kernel(%arg0: memref<4x1xi32, #tpu.memory_space<vmem>>, %arg1: memref<32x16xf32, #tpu.memory_space<vmem>>, %arg2: memref<16x128xf32, #tpu.memory_space<vmem>>, %arg3: memref<32x128xf32, #tpu.memory_space<vmem>>, %arg4: memref<1x128xf32, #tpu.memory_space<vmem>>, %arg5: memref<32x128xf32, #tpu.memory_space<vmem>>, %arg6: memref<32x128xf32, #tpu.memory_space<vmem>>, %arg7: memref<1x128xf32, #tpu.memory_space<vmem>>, %arg8: memref<1x32xf32, #tpu.memory_space<vmem>>, %arg9: memref<1x32xf32, #tpu.memory_space<vmem>>, %arg10: memref<1x32xf32, #tpu.memory_space<vmem>>, %arg11: memref<1x32xf32, #tpu.memory_space<vmem>>, %arg12: memref<32x8xf32, #tpu.memory_space<vmem>>, %arg13: memref<1x8xf32, #tpu.memory_space<vmem>>, %arg14: memref<4x8xf32, #tpu.memory_space<vmem>>, %arg15: memref<32x32xf32, #tpu.memory_space<vmem>>) attributes {dimension_semantics = [], scalar_prefetch = 0 : i64, scratch_operands = 1 : i64, tpu.core_type = #tpu.core_type<tc>} {
    %c0 = arith.constant 0 : index
    %c0_0 = arith.constant 0 : index
    %0 = vector.load %arg0[%c0, %c0_0] : memref<4x1xi32, #tpu.memory_space<vmem>>, vector<4x1xi32>
    %c0_1 = arith.constant 0 : index
    %c0_2 = arith.constant 0 : index
    %1 = vector.load %arg1[%c0_1, %c0_2] : memref<32x16xf32, #tpu.memory_space<vmem>>, vector<32x16xf32>
    %c0_3 = arith.constant 0 : index
    %c0_4 = arith.constant 0 : index
    %2 = vector.load %arg2[%c0_3, %c0_4] : memref<16x128xf32, #tpu.memory_space<vmem>>, vector<16x128xf32>
    %c0_5 = arith.constant 0 : index
    %c0_6 = arith.constant 0 : index
    %3 = vector.load %arg3[%c0_5, %c0_6] : memref<32x128xf32, #tpu.memory_space<vmem>>, vector<32x128xf32>
    %c0_7 = arith.constant 0 : index
    %c0_8 = arith.constant 0 : index
    %4 = vector.load %arg4[%c0_7, %c0_8] : memref<1x128xf32, #tpu.memory_space<vmem>>, vector<1x128xf32>
    %cst = arith.constant dense<0.000000e+00> : vector<32x128xf32>
    %5 = tpu.matmul %1, %2, %cst {dimension_numbers = #tpu.dot_dimension_numbers<[1], [0], [0], [1], [0, 0, 1, 1], [], []>} : vector<32x16xf32>, vector<16x128xf32>, vector<32x128xf32> -> vector<32x128xf32>
    %6 = vector.broadcast %4 : vector<1x128xf32> to vector<32x128xf32>
    %7 = arith.addf %5, %6 : vector<32x128xf32>
    %cst_9 = arith.constant 0.000000e+00 : f32
    %8 = vector.broadcast %cst_9 : f32 to vector<4x32xf32>
    %cst_10 = arith.constant 0.000000e+00 : f32
    %9 = vector.broadcast %cst_10 : f32 to vector<4x32xf32>
    %10 = vector.extract_strided_slice %7 {offsets = [0, 0], sizes = [4, 128], strides = [1, 1]} : vector<32x128xf32> to vector<4x128xf32>
    %cst_11 = arith.constant dense<0.000000e+00> : vector<4x128xf32>
    %11 = tpu.matmul %8, %3, %cst_11 {dimension_numbers = #tpu.dot_dimension_numbers<[1], [0], [0], [1], [0, 0, 1, 1], [], []>} : vector<4x32xf32>, vector<32x128xf32>, vector<4x128xf32> -> vector<4x128xf32>
    %12 = arith.addf %10, %11 : vector<4x128xf32>
    %13 = vector.extract_strided_slice %12 {offsets = [0, 0], sizes = [4, 32], strides = [1, 1]} : vector<4x128xf32> to vector<4x32xf32>
    %14 = arith.negf %13 : vector<4x32xf32>
    %15 = math.exp %14 : vector<4x32xf32>
    %cst_12 = arith.constant 1.000000e+00 : f32
    %16 = vector.broadcast %cst_12 : f32 to vector<4x32xf32>
    %17 = arith.addf %16, %15 : vector<4x32xf32>
    %18 = arith.divf %16, %17 : vector<4x32xf32>
    %19 = vector.extract_strided_slice %12 {offsets = [0, 32], sizes = [4, 32], strides = [1, 1]} : vector<4x128xf32> to vector<4x32xf32>
    %20 = arith.negf %19 : vector<4x32xf32>
    %21 = math.exp %20 : vector<4x32xf32>
    %cst_13 = arith.constant 1.000000e+00 : f32
    %22 = vector.broadcast %cst_13 : f32 to vector<4x32xf32>
    %23 = arith.addf %22, %21 : vector<4x32xf32>
    %24 = arith.divf %22, %23 : vector<4x32xf32>
    %25 = vector.extract_strided_slice %12 {offsets = [0, 64], sizes = [4, 32], strides = [1, 1]} : vector<4x128xf32> to vector<4x32xf32>
    %26 = math.tanh %25 : vector<4x32xf32>
    %27 = vector.extract_strided_slice %12 {offsets = [0, 96], sizes = [4, 32], strides = [1, 1]} : vector<4x128xf32> to vector<4x32xf32>
    %28 = arith.negf %27 : vector<4x32xf32>
    %29 = math.exp %28 : vector<4x32xf32>
    %cst_14 = arith.constant 1.000000e+00 : f32
    %30 = vector.broadcast %cst_14 : f32 to vector<4x32xf32>
    %31 = arith.addf %30, %29 : vector<4x32xf32>
    %32 = arith.divf %30, %31 : vector<4x32xf32>
    %33 = arith.mulf %24, %9 : vector<4x32xf32>
    %34 = arith.mulf %18, %26 : vector<4x32xf32>
    %35 = arith.addf %33, %34 : vector<4x32xf32>
    %36 = math.tanh %35 : vector<4x32xf32>
    %37 = arith.mulf %32, %36 : vector<4x32xf32>
    %c0_i32 = arith.constant 0 : i32
    %38 = vector.broadcast %c0_i32 : i32 to vector<4x1xi32>
    %39 = arith.cmpi sgt, %0, %38 : vector<4x1xi32>
    %40 = vector.shape_cast %39 : vector<4x1xi1> to vector<4x1xi1>
    %41 = vector.broadcast %40 : vector<4x1xi1> to vector<4x32xi1>
    %42 = arith.select %41, %37, %8 : vector<4x32xi1>, vector<4x32xf32>
    %43 = vector.shape_cast %39 : vector<4x1xi1> to vector<4x1xi1>
    %44 = vector.broadcast %43 : vector<4x1xi1> to vector<4x32xi1>
    %45 = arith.select %44, %35, %9 : vector<4x32xi1>, vector<4x32xf32>
    %c0_15 = arith.constant 0 : index
    %c0_16 = arith.constant 0 : index
    %46 = vector.load %arg15[%c0_15, %c0_16] : memref<32x32xf32, #tpu.memory_space<vmem>>, vector<4x32xf32>
    tpu.vector_store %arg15[%c0_15, %c0_16], %42 {strides = array<i32>} : memref<32x32xf32, #tpu.memory_space<vmem>>, vector<4x32xf32>,
    %47 = vector.extract_strided_slice %7 {offsets = [4, 0], sizes = [4, 128], strides = [1, 1]} : vector<32x128xf32> to vector<4x128xf32>
    %cst_17 = arith.constant dense<0.000000e+00> : vector<4x128xf32>
    %48 = tpu.matmul %42, %3, %cst_17 {dimension_numbers = #tpu.dot_dimension_numbers<[1], [0], [0], [1], [0, 0, 1, 1], [], []>} : vector<4x32xf32>, vector<32x128xf32>, vector<4x128xf32> -> vector<4x128xf32>
    %49 = arith.addf %47, %48 : vector<4x128xf32>
    %50 = vector.extract_strided_slice %49 {offsets = [0, 0], sizes = [4, 32], strides = [1, 1]} : vector<4x128xf32> to vector<4x32xf32>
    %51 = arith.negf %50 : vector<4x32xf32>
    %52 = math.exp %51 : vector<4x32xf32>
    %cst_18 = arith.constant 1.000000e+00 : f32
    %53 = vector.broadcast %cst_18 : f32 to vector<4x32xf32>
    %54 = arith.addf %53, %52 : vector<4x32xf32>
    %55 = arith.divf %53, %54 : vector<4x32xf32>
    %56 = vector.extract_strided_slice %49 {offsets = [0, 32], sizes = [4, 32], strides = [1, 1]} : vector<4x128xf32> to vector<4x32xf32>
    %57 = arith.negf %56 : vector<4x32xf32>
    %58 = math.exp %57 : vector<4x32xf32>
    %cst_19 = arith.constant 1.000000e+00 : f32
    %59 = vector.broadcast %cst_19 : f32 to vector<4x32xf32>
    %60 = arith.addf %59, %58 : vector<4x32xf32>
    %61 = arith.divf %59, %60 : vector<4x32xf32>
    %62 = vector.extract_strided_slice %49 {offsets = [0, 64], sizes = [4, 32], strides = [1, 1]} : vector<4x128xf32> to vector<4x32xf32>
    %63 = math.tanh %62 : vector<4x32xf32>
    %64 = vector.extract_strided_slice %49 {offsets = [0, 96], sizes = [4, 32], strides = [1, 1]} : vector<4x128xf32> to vector<4x32xf32>
    %65 = arith.negf %64 : vector<4x32xf32>
    %66 = math.exp %65 : vector<4x32xf32>
    %cst_20 = arith.constant 1.000000e+00 : f32
    %67 = vector.broadcast %cst_20 : f32 to vector<4x32xf32>
    %68 = arith.addf %67, %66 : vector<4x32xf32>
    %69 = arith.divf %67, %68 : vector<4x32xf32>
    %70 = arith.mulf %61, %45 : vector<4x32xf32>
    %71 = arith.mulf %55, %63 : vector<4x32xf32>
    %72 = arith.addf %70, %71 : vector<4x32xf32>
    %73 = math.tanh %72 : vector<4x32xf32>
    %74 = arith.mulf %69, %73 : vector<4x32xf32>
    %c1_i32 = arith.constant 1 : i32
    %75 = vector.broadcast %c1_i32 : i32 to vector<4x1xi32>
    %76 = arith.cmpi sgt, %0, %75 : vector<4x1xi32>
    %77 = vector.shape_cast %76 : vector<4x1xi1> to vector<4x1xi1>
    %78 = vector.broadcast %77 : vector<4x1xi1> to vector<4x32xi1>
    %79 = arith.select %78, %74, %42 : vector<4x32xi1>, vector<4x32xf32>
    %80 = vector.shape_cast %76 : vector<4x1xi1> to vector<4x1xi1>
    %81 = vector.broadcast %80 : vector<4x1xi1> to vector<4x32xi1>
    %82 = arith.select %81, %72, %45 : vector<4x32xi1>, vector<4x32xf32>
    %c4 = arith.constant 4 : index
    %c0_21 = arith.constant 0 : index
    %83 = vector.load %arg15[%c4, %c0_21] : memref<32x32xf32, #tpu.memory_space<vmem>>, vector<4x32xf32>
    tpu.vector_store %arg15[%c4, %c0_21], %79 {strides = array<i32>} : memref<32x32xf32, #tpu.memory_space<vmem>>, vector<4x32xf32>,
    %84 = vector.extract_strided_slice %7 {offsets = [8, 0], sizes = [4, 128], strides = [1, 1]} : vector<32x128xf32> to vector<4x128xf32>
    %cst_22 = arith.constant dense<0.000000e+00> : vector<4x128xf32>
    %85 = tpu.matmul %79, %3, %cst_22 {dimension_numbers = #tpu.dot_dimension_numbers<[1], [0], [0], [1], [0, 0, 1, 1], [], []>} : vector<4x32xf32>, vector<32x128xf32>, vector<4x128xf32> -> vector<4x128xf32>
    %86 = arith.addf %84, %85 : vector<4x128xf32>
    %87 = vector.extract_strided_slice %86 {offsets = [0, 0], sizes = [4, 32], strides = [1, 1]} : vector<4x128xf32> to vector<4x32xf32>
    %88 = arith.negf %87 : vector<4x32xf32>
    %89 = math.exp %88 : vector<4x32xf32>
    %cst_23 = arith.constant 1.000000e+00 : f32
    %90 = vector.broadcast %cst_23 : f32 to vector<4x32xf32>
    %91 = arith.addf %90, %89 : vector<4x32xf32>
    %92 = arith.divf %90, %91 : vector<4x32xf32>
    %93 = vector.extract_strided_slice %86 {offsets = [0, 32], sizes = [4, 32], strides = [1, 1]} : vector<4x128xf32> to vector<4x32xf32>
    %94 = arith.negf %93 : vector<4x32xf32>
    %95 = math.exp %94 : vector<4x32xf32>
    %cst_24 = arith.constant 1.000000e+00 : f32
    %96 = vector.broadcast %cst_24 : f32 to vector<4x32xf32>
    %97 = arith.addf %96, %95 : vector<4x32xf32>
    %98 = arith.divf %96, %97 : vector<4x32xf32>
    %99 = vector.extract_strided_slice %86 {offsets = [0, 64], sizes = [4, 32], strides = [1, 1]} : vector<4x128xf32> to vector<4x32xf32>
    %100 = math.tanh %99 : vector<4x32xf32>
    %101 = vector.extract_strided_slice %86 {offsets = [0, 96], sizes = [4, 32], strides = [1, 1]} : vector<4x128xf32> to vector<4x32xf32>
    %102 = arith.negf %101 : vector<4x32xf32>
    %103 = math.exp %102 : vector<4x32xf32>
    %cst_25 = arith.constant 1.000000e+00 : f32
    %104 = vector.broadcast %cst_25 : f32 to vector<4x32xf32>
    %105 = arith.addf %104, %103 : vector<4x32xf32>
    %106 = arith.divf %104, %105 : vector<4x32xf32>
    %107 = arith.mulf %98, %82 : vector<4x32xf32>
    %108 = arith.mulf %92, %100 : vector<4x32xf32>
    %109 = arith.addf %107, %108 : vector<4x32xf32>
    %110 = math.tanh %109 : vector<4x32xf32>
    %111 = arith.mulf %106, %110 : vector<4x32xf32>
    %c2_i32 = arith.constant 2 : i32
    %112 = vector.broadcast %c2_i32 : i32 to vector<4x1xi32>
    %113 = arith.cmpi sgt, %0, %112 : vector<4x1xi32>
    %114 = vector.shape_cast %113 : vector<4x1xi1> to vector<4x1xi1>
    %115 = vector.broadcast %114 : vector<4x1xi1> to vector<4x32xi1>
    %116 = arith.select %115, %111, %79 : vector<4x32xi1>, vector<4x32xf32>
    %117 = vector.shape_cast %113 : vector<4x1xi1> to vector<4x1xi1>
    %118 = vector.broadcast %117 : vector<4x1xi1> to vector<4x32xi1>
    %119 = arith.select %118, %109, %82 : vector<4x32xi1>, vector<4x32xf32>
    %c8 = arith.constant 8 : index
    %c0_26 = arith.constant 0 : index
    %120 = vector.load %arg15[%c8, %c0_26] : memref<32x32xf32, #tpu.memory_space<vmem>>, vector<4x32xf32>
    tpu.vector_store %arg15[%c8, %c0_26], %116 {strides = array<i32>} : memref<32x32xf32, #tpu.memory_space<vmem>>, vector<4x32xf32>,
    %121 = vector.extract_strided_slice %7 {offsets = [12, 0], sizes = [4, 128], strides = [1, 1]} : vector<32x128xf32> to vector<4x128xf32>
    %cst_27 = arith.constant dense<0.000000e+00> : vector<4x128xf32>
    %122 = tpu.matmul %116, %3, %cst_27 {dimension_numbers = #tpu.dot_dimension_numbers<[1], [0], [0], [1], [0, 0, 1, 1], [], []>} : vector<4x32xf32>, vector<32x128xf32>, vector<4x128xf32> -> vector<4x128xf32>
    %123 = arith.addf %121, %122 : vector<4x128xf32>
    %124 = vector.extract_strided_slice %123 {offsets = [0, 0], sizes = [4, 32], strides = [1, 1]} : vector<4x128xf32> to vector<4x32xf32>
    %125 = arith.negf %124 : vector<4x32xf32>
    %126 = math.exp %125 : vector<4x32xf32>
    %cst_28 = arith.constant 1.000000e+00 : f32
    %127 = vector.broadcast %cst_28 : f32 to vector<4x32xf32>
    %128 = arith.addf %127, %126 : vector<4x32xf32>
    %129 = arith.divf %127, %128 : vector<4x32xf32>
    %130 = vector.extract_strided_slice %123 {offsets = [0, 32], sizes = [4, 32], strides = [1, 1]} : vector<4x128xf32> to vector<4x32xf32>
    %131 = arith.negf %130 : vector<4x32xf32>
    %132 = math.exp %131 : vector<4x32xf32>
    %cst_29 = arith.constant 1.000000e+00 : f32
    %133 = vector.broadcast %cst_29 : f32 to vector<4x32xf32>
    %134 = arith.addf %133, %132 : vector<4x32xf32>
    %135 = arith.divf %133, %134 : vector<4x32xf32>
    %136 = vector.extract_strided_slice %123 {offsets = [0, 64], sizes = [4, 32], strides = [1, 1]} : vector<4x128xf32> to vector<4x32xf32>
    %137 = math.tanh %136 : vector<4x32xf32>
    %138 = vector.extract_strided_slice %123 {offsets = [0, 96], sizes = [4, 32], strides = [1, 1]} : vector<4x128xf32> to vector<4x32xf32>
    %139 = arith.negf %138 : vector<4x32xf32>
    %140 = math.exp %139 : vector<4x32xf32>
    %cst_30 = arith.constant 1.000000e+00 : f32
    %141 = vector.broadcast %cst_30 : f32 to vector<4x32xf32>
    %142 = arith.addf %141, %140 : vector<4x32xf32>
    %143 = arith.divf %141, %142 : vector<4x32xf32>
    %144 = arith.mulf %135, %119 : vector<4x32xf32>
    %145 = arith.mulf %129, %137 : vector<4x32xf32>
    %146 = arith.addf %144, %145 : vector<4x32xf32>
    %147 = math.tanh %146 : vector<4x32xf32>
    %148 = arith.mulf %143, %147 : vector<4x32xf32>
    %c3_i32 = arith.constant 3 : i32
    %149 = vector.broadcast %c3_i32 : i32 to vector<4x1xi32>
    %150 = arith.cmpi sgt, %0, %149 : vector<4x1xi32>
    %151 = vector.shape_cast %150 : vector<4x1xi1> to vector<4x1xi1>
    %152 = vector.broadcast %151 : vector<4x1xi1> to vector<4x32xi1>
    %153 = arith.select %152, %148, %116 : vector<4x32xi1>, vector<4x32xf32>
    %154 = vector.shape_cast %150 : vector<4x1xi1> to vector<4x1xi1>
    %155 = vector.broadcast %154 : vector<4x1xi1> to vector<4x32xi1>
    %156 = arith.select %155, %146, %119 : vector<4x32xi1>, vector<4x32xf32>
    %c12 = arith.constant 12 : index
    %c0_31 = arith.constant 0 : index
    %157 = vector.load %arg15[%c12, %c0_31] : memref<32x32xf32, #tpu.memory_space<vmem>>, vector<4x32xf32>
    tpu.vector_store %arg15[%c12, %c0_31], %153 {strides = array<i32>} : memref<32x32xf32, #tpu.memory_space<vmem>>, vector<4x32xf32>,
    %158 = vector.extract_strided_slice %7 {offsets = [16, 0], sizes = [4, 128], strides = [1, 1]} : vector<32x128xf32> to vector<4x128xf32>
    %cst_32 = arith.constant dense<0.000000e+00> : vector<4x128xf32>
    %159 = tpu.matmul %153, %3, %cst_32 {dimension_numbers = #tpu.dot_dimension_numbers<[1], [0], [0], [1], [0, 0, 1, 1], [], []>} : vector<4x32xf32>, vector<32x128xf32>, vector<4x128xf32> -> vector<4x128xf32>
    %160 = arith.addf %158, %159 : vector<4x128xf32>
    %161 = vector.extract_strided_slice %160 {offsets = [0, 0], sizes = [4, 32], strides = [1, 1]} : vector<4x128xf32> to vector<4x32xf32>
    %162 = arith.negf %161 : vector<4x32xf32>
    %163 = math.exp %162 : vector<4x32xf32>
    %cst_33 = arith.constant 1.000000e+00 : f32
    %164 = vector.broadcast %cst_33 : f32 to vector<4x32xf32>
    %165 = arith.addf %164, %163 : vector<4x32xf32>
    %166 = arith.divf %164, %165 : vector<4x32xf32>
    %167 = vector.extract_strided_slice %160 {offsets = [0, 32], sizes = [4, 32], strides = [1, 1]} : vector<4x128xf32> to vector<4x32xf32>
    %168 = arith.negf %167 : vector<4x32xf32>
    %169 = math.exp %168 : vector<4x32xf32>
    %cst_34 = arith.constant 1.000000e+00 : f32
    %170 = vector.broadcast %cst_34 : f32 to vector<4x32xf32>
    %171 = arith.addf %170, %169 : vector<4x32xf32>
    %172 = arith.divf %170, %171 : vector<4x32xf32>
    %173 = vector.extract_strided_slice %160 {offsets = [0, 64], sizes = [4, 32], strides = [1, 1]} : vector<4x128xf32> to vector<4x32xf32>
    %174 = math.tanh %173 : vector<4x32xf32>
    %175 = vector.extract_strided_slice %160 {offsets = [0, 96], sizes = [4, 32], strides = [1, 1]} : vector<4x128xf32> to vector<4x32xf32>
    %176 = arith.negf %175 : vector<4x32xf32>
    %177 = math.exp %176 : vector<4x32xf32>
    %cst_35 = arith.constant 1.000000e+00 : f32
    %178 = vector.broadcast %cst_35 : f32 to vector<4x32xf32>
    %179 = arith.addf %178, %177 : vector<4x32xf32>
    %180 = arith.divf %178, %179 : vector<4x32xf32>
    %181 = arith.mulf %172, %156 : vector<4x32xf32>
    %182 = arith.mulf %166, %174 : vector<4x32xf32>
    %183 = arith.addf %181, %182 : vector<4x32xf32>
    %184 = math.tanh %183 : vector<4x32xf32>
    %185 = arith.mulf %180, %184 : vector<4x32xf32>
    %c4_i32 = arith.constant 4 : i32
    %186 = vector.broadcast %c4_i32 : i32 to vector<4x1xi32>
    %187 = arith.cmpi sgt, %0, %186 : vector<4x1xi32>
    %188 = vector.shape_cast %187 : vector<4x1xi1> to vector<4x1xi1>
    %189 = vector.broadcast %188 : vector<4x1xi1> to vector<4x32xi1>
    %190 = arith.select %189, %185, %153 : vector<4x32xi1>, vector<4x32xf32>
    %191 = vector.shape_cast %187 : vector<4x1xi1> to vector<4x1xi1>
    %192 = vector.broadcast %191 : vector<4x1xi1> to vector<4x32xi1>
    %193 = arith.select %192, %183, %156 : vector<4x32xi1>, vector<4x32xf32>
    %c16 = arith.constant 16 : index
    %c0_36 = arith.constant 0 : index
    %194 = vector.load %arg15[%c16, %c0_36] : memref<32x32xf32, #tpu.memory_space<vmem>>, vector<4x32xf32>
    tpu.vector_store %arg15[%c16, %c0_36], %190 {strides = array<i32>} : memref<32x32xf32, #tpu.memory_space<vmem>>, vector<4x32xf32>,
    %195 = vector.extract_strided_slice %7 {offsets = [20, 0], sizes = [4, 128], strides = [1, 1]} : vector<32x128xf32> to vector<4x128xf32>
    %cst_37 = arith.constant dense<0.000000e+00> : vector<4x128xf32>
    %196 = tpu.matmul %190, %3, %cst_37 {dimension_numbers = #tpu.dot_dimension_numbers<[1], [0], [0], [1], [0, 0, 1, 1], [], []>} : vector<4x32xf32>, vector<32x128xf32>, vector<4x128xf32> -> vector<4x128xf32>
    %197 = arith.addf %195, %196 : vector<4x128xf32>
    %198 = vector.extract_strided_slice %197 {offsets = [0, 0], sizes = [4, 32], strides = [1, 1]} : vector<4x128xf32> to vector<4x32xf32>
    %199 = arith.negf %198 : vector<4x32xf32>
    %200 = math.exp %199 : vector<4x32xf32>
    %cst_38 = arith.constant 1.000000e+00 : f32
    %201 = vector.broadcast %cst_38 : f32 to vector<4x32xf32>
    %202 = arith.addf %201, %200 : vector<4x32xf32>
    %203 = arith.divf %201, %202 : vector<4x32xf32>
    %204 = vector.extract_strided_slice %197 {offsets = [0, 32], sizes = [4, 32], strides = [1, 1]} : vector<4x128xf32> to vector<4x32xf32>
    %205 = arith.negf %204 : vector<4x32xf32>
    %206 = math.exp %205 : vector<4x32xf32>
    %cst_39 = arith.constant 1.000000e+00 : f32
    %207 = vector.broadcast %cst_39 : f32 to vector<4x32xf32>
    %208 = arith.addf %207, %206 : vector<4x32xf32>
    %209 = arith.divf %207, %208 : vector<4x32xf32>
    %210 = vector.extract_strided_slice %197 {offsets = [0, 64], sizes = [4, 32], strides = [1, 1]} : vector<4x128xf32> to vector<4x32xf32>
    %211 = math.tanh %210 : vector<4x32xf32>
    %212 = vector.extract_strided_slice %197 {offsets = [0, 96], sizes = [4, 32], strides = [1, 1]} : vector<4x128xf32> to vector<4x32xf32>
    %213 = arith.negf %212 : vector<4x32xf32>
    %214 = math.exp %213 : vector<4x32xf32>
    %cst_40 = arith.constant 1.000000e+00 : f32
    %215 = vector.broadcast %cst_40 : f32 to vector<4x32xf32>
    %216 = arith.addf %215, %214 : vector<4x32xf32>
    %217 = arith.divf %215, %216 : vector<4x32xf32>
    %218 = arith.mulf %209, %193 : vector<4x32xf32>
    %219 = arith.mulf %203, %211 : vector<4x32xf32>
    %220 = arith.addf %218, %219 : vector<4x32xf32>
    %221 = math.tanh %220 : vector<4x32xf32>
    %222 = arith.mulf %217, %221 : vector<4x32xf32>
    %c5_i32 = arith.constant 5 : i32
    %223 = vector.broadcast %c5_i32 : i32 to vector<4x1xi32>
    %224 = arith.cmpi sgt, %0, %223 : vector<4x1xi32>
    %225 = vector.shape_cast %224 : vector<4x1xi1> to vector<4x1xi1>
    %226 = vector.broadcast %225 : vector<4x1xi1> to vector<4x32xi1>
    %227 = arith.select %226, %222, %190 : vector<4x32xi1>, vector<4x32xf32>
    %228 = vector.shape_cast %224 : vector<4x1xi1> to vector<4x1xi1>
    %229 = vector.broadcast %228 : vector<4x1xi1> to vector<4x32xi1>
    %230 = arith.select %229, %220, %193 : vector<4x32xi1>, vector<4x32xf32>
    %c20 = arith.constant 20 : index
    %c0_41 = arith.constant 0 : index
    %231 = vector.load %arg15[%c20, %c0_41] : memref<32x32xf32, #tpu.memory_space<vmem>>, vector<4x32xf32>
    tpu.vector_store %arg15[%c20, %c0_41], %227 {strides = array<i32>} : memref<32x32xf32, #tpu.memory_space<vmem>>, vector<4x32xf32>,
    %232 = vector.extract_strided_slice %7 {offsets = [24, 0], sizes = [4, 128], strides = [1, 1]} : vector<32x128xf32> to vector<4x128xf32>
    %cst_42 = arith.constant dense<0.000000e+00> : vector<4x128xf32>
    %233 = tpu.matmul %227, %3, %cst_42 {dimension_numbers = #tpu.dot_dimension_numbers<[1], [0], [0], [1], [0, 0, 1, 1], [], []>} : vector<4x32xf32>, vector<32x128xf32>, vector<4x128xf32> -> vector<4x128xf32>
    %234 = arith.addf %232, %233 : vector<4x128xf32>
    %235 = vector.extract_strided_slice %234 {offsets = [0, 0], sizes = [4, 32], strides = [1, 1]} : vector<4x128xf32> to vector<4x32xf32>
    %236 = arith.negf %235 : vector<4x32xf32>
    %237 = math.exp %236 : vector<4x32xf32>
    %cst_43 = arith.constant 1.000000e+00 : f32
    %238 = vector.broadcast %cst_43 : f32 to vector<4x32xf32>
    %239 = arith.addf %238, %237 : vector<4x32xf32>
    %240 = arith.divf %238, %239 : vector<4x32xf32>
    %241 = vector.extract_strided_slice %234 {offsets = [0, 32], sizes = [4, 32], strides = [1, 1]} : vector<4x128xf32> to vector<4x32xf32>
    %242 = arith.negf %241 : vector<4x32xf32>
    %243 = math.exp %242 : vector<4x32xf32>
    %cst_44 = arith.constant 1.000000e+00 : f32
    %244 = vector.broadcast %cst_44 : f32 to vector<4x32xf32>
    %245 = arith.addf %244, %243 : vector<4x32xf32>
    %246 = arith.divf %244, %245 : vector<4x32xf32>
    %247 = vector.extract_strided_slice %234 {offsets = [0, 64], sizes = [4, 32], strides = [1, 1]} : vector<4x128xf32> to vector<4x32xf32>
    %248 = math.tanh %247 : vector<4x32xf32>
    %249 = vector.extract_strided_slice %234 {offsets = [0, 96], sizes = [4, 32], strides = [1, 1]} : vector<4x128xf32> to vector<4x32xf32>
    %250 = arith.negf %249 : vector<4x32xf32>
    %251 = math.exp %250 : vector<4x32xf32>
    %cst_45 = arith.constant 1.000000e+00 : f32
    %252 = vector.broadcast %cst_45 : f32 to vector<4x32xf32>
    %253 = arith.addf %252, %251 : vector<4x32xf32>
    %254 = arith.divf %252, %253 : vector<4x32xf32>
    %255 = arith.mulf %246, %230 : vector<4x32xf32>
    %256 = arith.mulf %240, %248 : vector<4x32xf32>
    %257 = arith.addf %255, %256 : vector<4x32xf32>
    %258 = math.tanh %257 : vector<4x32xf32>
    %259 = arith.mulf %254, %258 : vector<4x32xf32>
    %c6_i32 = arith.constant 6 : i32
    %260 = vector.broadcast %c6_i32 : i32 to vector<4x1xi32>
    %261 = arith.cmpi sgt, %0, %260 : vector<4x1xi32>
    %262 = vector.shape_cast %261 : vector<4x1xi1> to vector<4x1xi1>
    %263 = vector.broadcast %262 : vector<4x1xi1> to vector<4x32xi1>
    %264 = arith.select %263, %259, %227 : vector<4x32xi1>, vector<4x32xf32>
    %265 = vector.shape_cast %261 : vector<4x1xi1> to vector<4x1xi1>
    %266 = vector.broadcast %265 : vector<4x1xi1> to vector<4x32xi1>
    %267 = arith.select %266, %257, %230 : vector<4x32xi1>, vector<4x32xf32>
    %c24 = arith.constant 24 : index
    %c0_46 = arith.constant 0 : index
    %268 = vector.load %arg15[%c24, %c0_46] : memref<32x32xf32, #tpu.memory_space<vmem>>, vector<4x32xf32>
    tpu.vector_store %arg15[%c24, %c0_46], %264 {strides = array<i32>} : memref<32x32xf32, #tpu.memory_space<vmem>>, vector<4x32xf32>,
    %269 = vector.extract_strided_slice %7 {offsets = [28, 0], sizes = [4, 128], strides = [1, 1]} : vector<32x128xf32> to vector<4x128xf32>
    %cst_47 = arith.constant dense<0.000000e+00> : vector<4x128xf32>
    %270 = tpu.matmul %264, %3, %cst_47 {dimension_numbers = #tpu.dot_dimension_numbers<[1], [0], [0], [1], [0, 0, 1, 1], [], []>} : vector<4x32xf32>, vector<32x128xf32>, vector<4x128xf32> -> vector<4x128xf32>
    %271 = arith.addf %269, %270 : vector<4x128xf32>
    %272 = vector.extract_strided_slice %271 {offsets = [0, 0], sizes = [4, 32], strides = [1, 1]} : vector<4x128xf32> to vector<4x32xf32>
    %273 = arith.negf %272 : vector<4x32xf32>
    %274 = math.exp %273 : vector<4x32xf32>
    %cst_48 = arith.constant 1.000000e+00 : f32
    %275 = vector.broadcast %cst_48 : f32 to vector<4x32xf32>
    %276 = arith.addf %275, %274 : vector<4x32xf32>
    %277 = arith.divf %275, %276 : vector<4x32xf32>
    %278 = vector.extract_strided_slice %271 {offsets = [0, 32], sizes = [4, 32], strides = [1, 1]} : vector<4x128xf32> to vector<4x32xf32>
    %279 = arith.negf %278 : vector<4x32xf32>
    %280 = math.exp %279 : vector<4x32xf32>
    %cst_49 = arith.constant 1.000000e+00 : f32
    %281 = vector.broadcast %cst_49 : f32 to vector<4x32xf32>
    %282 = arith.addf %281, %280 : vector<4x32xf32>
    %283 = arith.divf %281, %282 : vector<4x32xf32>
    %284 = vector.extract_strided_slice %271 {offsets = [0, 64], sizes = [4, 32], strides = [1, 1]} : vector<4x128xf32> to vector<4x32xf32>
    %285 = math.tanh %284 : vector<4x32xf32>
    %286 = vector.extract_strided_slice %271 {offsets = [0, 96], sizes = [4, 32], strides = [1, 1]} : vector<4x128xf32> to vector<4x32xf32>
    %287 = arith.negf %286 : vector<4x32xf32>
    %288 = math.exp %287 : vector<4x32xf32>
    %cst_50 = arith.constant 1.000000e+00 : f32
    %289 = vector.broadcast %cst_50 : f32 to vector<4x32xf32>
    %290 = arith.addf %289, %288 : vector<4x32xf32>
    %291 = arith.divf %289, %290 : vector<4x32xf32>
    %292 = arith.mulf %283, %267 : vector<4x32xf32>
    %293 = arith.mulf %277, %285 : vector<4x32xf32>
    %294 = arith.addf %292, %293 : vector<4x32xf32>
    %295 = math.tanh %294 : vector<4x32xf32>
    %296 = arith.mulf %291, %295 : vector<4x32xf32>
    %c7_i32 = arith.constant 7 : i32
    %297 = vector.broadcast %c7_i32 : i32 to vector<4x1xi32>
    %298 = arith.cmpi sgt, %0, %297 : vector<4x1xi32>
    %299 = vector.shape_cast %298 : vector<4x1xi1> to vector<4x1xi1>
    %300 = vector.broadcast %299 : vector<4x1xi1> to vector<4x32xi1>
    %301 = arith.select %300, %296, %264 : vector<4x32xi1>, vector<4x32xf32>
    %c28 = arith.constant 28 : index
    %c0_51 = arith.constant 0 : index
    %302 = vector.load %arg15[%c28, %c0_51] : memref<32x32xf32, #tpu.memory_space<vmem>>, vector<4x32xf32>
    tpu.vector_store %arg15[%c28, %c0_51], %301 {strides = array<i32>} : memref<32x32xf32, #tpu.memory_space<vmem>>, vector<4x32xf32>,
    %c0_52 = arith.constant 0 : index
    %c0_53 = arith.constant 0 : index
    %303 = vector.load %arg15[%c0_52, %c0_53] : memref<32x32xf32, #tpu.memory_space<vmem>>, vector<32x32xf32>
    %c0_54 = arith.constant 0 : index
    %c0_55 = arith.constant 0 : index
    %304 = vector.load %arg5[%c0_54, %c0_55] : memref<32x128xf32, #tpu.memory_space<vmem>>, vector<32x128xf32>
    %c0_56 = arith.constant 0 : index
    %c0_57 = arith.constant 0 : index
    %305 = vector.load %arg6[%c0_56, %c0_57] : memref<32x128xf32, #tpu.memory_space<vmem>>, vector<32x128xf32>
    %c0_58 = arith.constant 0 : index
    %c0_59 = arith.constant 0 : index
    %306 = vector.load %arg7[%c0_58, %c0_59] : memref<1x128xf32, #tpu.memory_space<vmem>>, vector<1x128xf32>
    %cst_60 = arith.constant dense<0.000000e+00> : vector<32x128xf32>
    %307 = tpu.matmul %303, %304, %cst_60 {dimension_numbers = #tpu.dot_dimension_numbers<[1], [0], [0], [1], [0, 0, 1, 1], [], []>} : vector<32x32xf32>, vector<32x128xf32>, vector<32x128xf32> -> vector<32x128xf32>
    %308 = vector.broadcast %306 : vector<1x128xf32> to vector<32x128xf32>
    %309 = arith.addf %307, %308 : vector<32x128xf32>
    %cst_61 = arith.constant 0.000000e+00 : f32
    %310 = vector.broadcast %cst_61 : f32 to vector<4x32xf32>
    %cst_62 = arith.constant 0.000000e+00 : f32
    %311 = vector.broadcast %cst_62 : f32 to vector<4x32xf32>
    %312 = vector.extract_strided_slice %309 {offsets = [0, 0], sizes = [4, 128], strides = [1, 1]} : vector<32x128xf32> to vector<4x128xf32>
    %cst_63 = arith.constant dense<0.000000e+00> : vector<4x128xf32>
    %313 = tpu.matmul %310, %305, %cst_63 {dimension_numbers = #tpu.dot_dimension_numbers<[1], [0], [0], [1], [0, 0, 1, 1], [], []>} : vector<4x32xf32>, vector<32x128xf32>, vector<4x128xf32> -> vector<4x128xf32>
    %314 = arith.addf %312, %313 : vector<4x128xf32>
    %315 = vector.extract_strided_slice %314 {offsets = [0, 0], sizes = [4, 32], strides = [1, 1]} : vector<4x128xf32> to vector<4x32xf32>
    %316 = arith.negf %315 : vector<4x32xf32>
    %317 = math.exp %316 : vector<4x32xf32>
    %cst_64 = arith.constant 1.000000e+00 : f32
    %318 = vector.broadcast %cst_64 : f32 to vector<4x32xf32>
    %319 = arith.addf %318, %317 : vector<4x32xf32>
    %320 = arith.divf %318, %319 : vector<4x32xf32>
    %321 = vector.extract_strided_slice %314 {offsets = [0, 32], sizes = [4, 32], strides = [1, 1]} : vector<4x128xf32> to vector<4x32xf32>
    %322 = arith.negf %321 : vector<4x32xf32>
    %323 = math.exp %322 : vector<4x32xf32>
    %cst_65 = arith.constant 1.000000e+00 : f32
    %324 = vector.broadcast %cst_65 : f32 to vector<4x32xf32>
    %325 = arith.addf %324, %323 : vector<4x32xf32>
    %326 = arith.divf %324, %325 : vector<4x32xf32>
    %327 = vector.extract_strided_slice %314 {offsets = [0, 64], sizes = [4, 32], strides = [1, 1]} : vector<4x128xf32> to vector<4x32xf32>
    %328 = math.tanh %327 : vector<4x32xf32>
    %329 = vector.extract_strided_slice %314 {offsets = [0, 96], sizes = [4, 32], strides = [1, 1]} : vector<4x128xf32> to vector<4x32xf32>
    %330 = arith.negf %329 : vector<4x32xf32>
    %331 = math.exp %330 : vector<4x32xf32>
    %cst_66 = arith.constant 1.000000e+00 : f32
    %332 = vector.broadcast %cst_66 : f32 to vector<4x32xf32>
    %333 = arith.addf %332, %331 : vector<4x32xf32>
    %334 = arith.divf %332, %333 : vector<4x32xf32>
    %335 = arith.mulf %326, %311 : vector<4x32xf32>
    %336 = arith.mulf %320, %328 : vector<4x32xf32>
    %337 = arith.addf %335, %336 : vector<4x32xf32>
    %338 = math.tanh %337 : vector<4x32xf32>
    %339 = arith.mulf %334, %338 : vector<4x32xf32>
    %c0_i32_67 = arith.constant 0 : i32
    %340 = vector.broadcast %c0_i32_67 : i32 to vector<4x1xi32>
    %341 = arith.cmpi sgt, %0, %340 : vector<4x1xi32>
    %342 = vector.shape_cast %341 : vector<4x1xi1> to vector<4x1xi1>
    %343 = vector.broadcast %342 : vector<4x1xi1> to vector<4x32xi1>
    %344 = arith.select %343, %339, %310 : vector<4x32xi1>, vector<4x32xf32>
    %345 = vector.shape_cast %341 : vector<4x1xi1> to vector<4x1xi1>
    %346 = vector.broadcast %345 : vector<4x1xi1> to vector<4x32xi1>
    %347 = arith.select %346, %337, %311 : vector<4x32xi1>, vector<4x32xf32>
    %348 = vector.extract_strided_slice %309 {offsets = [4, 0], sizes = [4, 128], strides = [1, 1]} : vector<32x128xf32> to vector<4x128xf32>
    %cst_68 = arith.constant dense<0.000000e+00> : vector<4x128xf32>
    %349 = tpu.matmul %344, %305, %cst_68 {dimension_numbers = #tpu.dot_dimension_numbers<[1], [0], [0], [1], [0, 0, 1, 1], [], []>} : vector<4x32xf32>, vector<32x128xf32>, vector<4x128xf32> -> vector<4x128xf32>
    %350 = arith.addf %348, %349 : vector<4x128xf32>
    %351 = vector.extract_strided_slice %350 {offsets = [0, 0], sizes = [4, 32], strides = [1, 1]} : vector<4x128xf32> to vector<4x32xf32>
    %352 = arith.negf %351 : vector<4x32xf32>
    %353 = math.exp %352 : vector<4x32xf32>
    %cst_69 = arith.constant 1.000000e+00 : f32
    %354 = vector.broadcast %cst_69 : f32 to vector<4x32xf32>
    %355 = arith.addf %354, %353 : vector<4x32xf32>
    %356 = arith.divf %354, %355 : vector<4x32xf32>
    %357 = vector.extract_strided_slice %350 {offsets = [0, 32], sizes = [4, 32], strides = [1, 1]} : vector<4x128xf32> to vector<4x32xf32>
    %358 = arith.negf %357 : vector<4x32xf32>
    %359 = math.exp %358 : vector<4x32xf32>
    %cst_70 = arith.constant 1.000000e+00 : f32
    %360 = vector.broadcast %cst_70 : f32 to vector<4x32xf32>
    %361 = arith.addf %360, %359 : vector<4x32xf32>
    %362 = arith.divf %360, %361 : vector<4x32xf32>
    %363 = vector.extract_strided_slice %350 {offsets = [0, 64], sizes = [4, 32], strides = [1, 1]} : vector<4x128xf32> to vector<4x32xf32>
    %364 = math.tanh %363 : vector<4x32xf32>
    %365 = vector.extract_strided_slice %350 {offsets = [0, 96], sizes = [4, 32], strides = [1, 1]} : vector<4x128xf32> to vector<4x32xf32>
    %366 = arith.negf %365 : vector<4x32xf32>
    %367 = math.exp %366 : vector<4x32xf32>
    %cst_71 = arith.constant 1.000000e+00 : f32
    %368 = vector.broadcast %cst_71 : f32 to vector<4x32xf32>
    %369 = arith.addf %368, %367 : vector<4x32xf32>
    %370 = arith.divf %368, %369 : vector<4x32xf32>
    %371 = arith.mulf %362, %347 : vector<4x32xf32>
    %372 = arith.mulf %356, %364 : vector<4x32xf32>
    %373 = arith.addf %371, %372 : vector<4x32xf32>
    %374 = math.tanh %373 : vector<4x32xf32>
    %375 = arith.mulf %370, %374 : vector<4x32xf32>
    %c1_i32_72 = arith.constant 1 : i32
    %376 = vector.broadcast %c1_i32_72 : i32 to vector<4x1xi32>
    %377 = arith.cmpi sgt, %0, %376 : vector<4x1xi32>
    %378 = vector.shape_cast %377 : vector<4x1xi1> to vector<4x1xi1>
    %379 = vector.broadcast %378 : vector<4x1xi1> to vector<4x32xi1>
    %380 = arith.select %379, %375, %344 : vector<4x32xi1>, vector<4x32xf32>
    %381 = vector.shape_cast %377 : vector<4x1xi1> to vector<4x1xi1>
    %382 = vector.broadcast %381 : vector<4x1xi1> to vector<4x32xi1>
    %383 = arith.select %382, %373, %347 : vector<4x32xi1>, vector<4x32xf32>
    %384 = vector.extract_strided_slice %309 {offsets = [8, 0], sizes = [4, 128], strides = [1, 1]} : vector<32x128xf32> to vector<4x128xf32>
    %cst_73 = arith.constant dense<0.000000e+00> : vector<4x128xf32>
    %385 = tpu.matmul %380, %305, %cst_73 {dimension_numbers = #tpu.dot_dimension_numbers<[1], [0], [0], [1], [0, 0, 1, 1], [], []>} : vector<4x32xf32>, vector<32x128xf32>, vector<4x128xf32> -> vector<4x128xf32>
    %386 = arith.addf %384, %385 : vector<4x128xf32>
    %387 = vector.extract_strided_slice %386 {offsets = [0, 0], sizes = [4, 32], strides = [1, 1]} : vector<4x128xf32> to vector<4x32xf32>
    %388 = arith.negf %387 : vector<4x32xf32>
    %389 = math.exp %388 : vector<4x32xf32>
    %cst_74 = arith.constant 1.000000e+00 : f32
    %390 = vector.broadcast %cst_74 : f32 to vector<4x32xf32>
    %391 = arith.addf %390, %389 : vector<4x32xf32>
    %392 = arith.divf %390, %391 : vector<4x32xf32>
    %393 = vector.extract_strided_slice %386 {offsets = [0, 32], sizes = [4, 32], strides = [1, 1]} : vector<4x128xf32> to vector<4x32xf32>
    %394 = arith.negf %393 : vector<4x32xf32>
    %395 = math.exp %394 : vector<4x32xf32>
    %cst_75 = arith.constant 1.000000e+00 : f32
    %396 = vector.broadcast %cst_75 : f32 to vector<4x32xf32>
    %397 = arith.addf %396, %395 : vector<4x32xf32>
    %398 = arith.divf %396, %397 : vector<4x32xf32>
    %399 = vector.extract_strided_slice %386 {offsets = [0, 64], sizes = [4, 32], strides = [1, 1]} : vector<4x128xf32> to vector<4x32xf32>
    %400 = math.tanh %399 : vector<4x32xf32>
    %401 = vector.extract_strided_slice %386 {offsets = [0, 96], sizes = [4, 32], strides = [1, 1]} : vector<4x128xf32> to vector<4x32xf32>
    %402 = arith.negf %401 : vector<4x32xf32>
    %403 = math.exp %402 : vector<4x32xf32>
    %cst_76 = arith.constant 1.000000e+00 : f32
    %404 = vector.broadcast %cst_76 : f32 to vector<4x32xf32>
    %405 = arith.addf %404, %403 : vector<4x32xf32>
    %406 = arith.divf %404, %405 : vector<4x32xf32>
    %407 = arith.mulf %398, %383 : vector<4x32xf32>
    %408 = arith.mulf %392, %400 : vector<4x32xf32>
    %409 = arith.addf %407, %408 : vector<4x32xf32>
    %410 = math.tanh %409 : vector<4x32xf32>
    %411 = arith.mulf %406, %410 : vector<4x32xf32>
    %c2_i32_77 = arith.constant 2 : i32
    %412 = vector.broadcast %c2_i32_77 : i32 to vector<4x1xi32>
    %413 = arith.cmpi sgt, %0, %412 : vector<4x1xi32>
    %414 = vector.shape_cast %413 : vector<4x1xi1> to vector<4x1xi1>
    %415 = vector.broadcast %414 : vector<4x1xi1> to vector<4x32xi1>
    %416 = arith.select %415, %411, %380 : vector<4x32xi1>, vector<4x32xf32>
    %417 = vector.shape_cast %413 : vector<4x1xi1> to vector<4x1xi1>
    %418 = vector.broadcast %417 : vector<4x1xi1> to vector<4x32xi1>
    %419 = arith.select %418, %409, %383 : vector<4x32xi1>, vector<4x32xf32>
    %420 = vector.extract_strided_slice %309 {offsets = [12, 0], sizes = [4, 128], strides = [1, 1]} : vector<32x128xf32> to vector<4x128xf32>
    %cst_78 = arith.constant dense<0.000000e+00> : vector<4x128xf32>
    %421 = tpu.matmul %416, %305, %cst_78 {dimension_numbers = #tpu.dot_dimension_numbers<[1], [0], [0], [1], [0, 0, 1, 1], [], []>} : vector<4x32xf32>, vector<32x128xf32>, vector<4x128xf32> -> vector<4x128xf32>
    %422 = arith.addf %420, %421 : vector<4x128xf32>
    %423 = vector.extract_strided_slice %422 {offsets = [0, 0], sizes = [4, 32], strides = [1, 1]} : vector<4x128xf32> to vector<4x32xf32>
    %424 = arith.negf %423 : vector<4x32xf32>
    %425 = math.exp %424 : vector<4x32xf32>
    %cst_79 = arith.constant 1.000000e+00 : f32
    %426 = vector.broadcast %cst_79 : f32 to vector<4x32xf32>
    %427 = arith.addf %426, %425 : vector<4x32xf32>
    %428 = arith.divf %426, %427 : vector<4x32xf32>
    %429 = vector.extract_strided_slice %422 {offsets = [0, 32], sizes = [4, 32], strides = [1, 1]} : vector<4x128xf32> to vector<4x32xf32>
    %430 = arith.negf %429 : vector<4x32xf32>
    %431 = math.exp %430 : vector<4x32xf32>
    %cst_80 = arith.constant 1.000000e+00 : f32
    %432 = vector.broadcast %cst_80 : f32 to vector<4x32xf32>
    %433 = arith.addf %432, %431 : vector<4x32xf32>
    %434 = arith.divf %432, %433 : vector<4x32xf32>
    %435 = vector.extract_strided_slice %422 {offsets = [0, 64], sizes = [4, 32], strides = [1, 1]} : vector<4x128xf32> to vector<4x32xf32>
    %436 = math.tanh %435 : vector<4x32xf32>
    %437 = vector.extract_strided_slice %422 {offsets = [0, 96], sizes = [4, 32], strides = [1, 1]} : vector<4x128xf32> to vector<4x32xf32>
    %438 = arith.negf %437 : vector<4x32xf32>
    %439 = math.exp %438 : vector<4x32xf32>
    %cst_81 = arith.constant 1.000000e+00 : f32
    %440 = vector.broadcast %cst_81 : f32 to vector<4x32xf32>
    %441 = arith.addf %440, %439 : vector<4x32xf32>
    %442 = arith.divf %440, %441 : vector<4x32xf32>
    %443 = arith.mulf %434, %419 : vector<4x32xf32>
    %444 = arith.mulf %428, %436 : vector<4x32xf32>
    %445 = arith.addf %443, %444 : vector<4x32xf32>
    %446 = math.tanh %445 : vector<4x32xf32>
    %447 = arith.mulf %442, %446 : vector<4x32xf32>
    %c3_i32_82 = arith.constant 3 : i32
    %448 = vector.broadcast %c3_i32_82 : i32 to vector<4x1xi32>
    %449 = arith.cmpi sgt, %0, %448 : vector<4x1xi32>
    %450 = vector.shape_cast %449 : vector<4x1xi1> to vector<4x1xi1>
    %451 = vector.broadcast %450 : vector<4x1xi1> to vector<4x32xi1>
    %452 = arith.select %451, %447, %416 : vector<4x32xi1>, vector<4x32xf32>
    %453 = vector.shape_cast %449 : vector<4x1xi1> to vector<4x1xi1>
    %454 = vector.broadcast %453 : vector<4x1xi1> to vector<4x32xi1>
    %455 = arith.select %454, %445, %419 : vector<4x32xi1>, vector<4x32xf32>
    %456 = vector.extract_strided_slice %309 {offsets = [16, 0], sizes = [4, 128], strides = [1, 1]} : vector<32x128xf32> to vector<4x128xf32>
    %cst_83 = arith.constant dense<0.000000e+00> : vector<4x128xf32>
    %457 = tpu.matmul %452, %305, %cst_83 {dimension_numbers = #tpu.dot_dimension_numbers<[1], [0], [0], [1], [0, 0, 1, 1], [], []>} : vector<4x32xf32>, vector<32x128xf32>, vector<4x128xf32> -> vector<4x128xf32>
    %458 = arith.addf %456, %457 : vector<4x128xf32>
    %459 = vector.extract_strided_slice %458 {offsets = [0, 0], sizes = [4, 32], strides = [1, 1]} : vector<4x128xf32> to vector<4x32xf32>
    %460 = arith.negf %459 : vector<4x32xf32>
    %461 = math.exp %460 : vector<4x32xf32>
    %cst_84 = arith.constant 1.000000e+00 : f32
    %462 = vector.broadcast %cst_84 : f32 to vector<4x32xf32>
    %463 = arith.addf %462, %461 : vector<4x32xf32>
    %464 = arith.divf %462, %463 : vector<4x32xf32>
    %465 = vector.extract_strided_slice %458 {offsets = [0, 32], sizes = [4, 32], strides = [1, 1]} : vector<4x128xf32> to vector<4x32xf32>
    %466 = arith.negf %465 : vector<4x32xf32>
    %467 = math.exp %466 : vector<4x32xf32>
    %cst_85 = arith.constant 1.000000e+00 : f32
    %468 = vector.broadcast %cst_85 : f32 to vector<4x32xf32>
    %469 = arith.addf %468, %467 : vector<4x32xf32>
    %470 = arith.divf %468, %469 : vector<4x32xf32>
    %471 = vector.extract_strided_slice %458 {offsets = [0, 64], sizes = [4, 32], strides = [1, 1]} : vector<4x128xf32> to vector<4x32xf32>
    %472 = math.tanh %471 : vector<4x32xf32>
    %473 = vector.extract_strided_slice %458 {offsets = [0, 96], sizes = [4, 32], strides = [1, 1]} : vector<4x128xf32> to vector<4x32xf32>
    %474 = arith.negf %473 : vector<4x32xf32>
    %475 = math.exp %474 : vector<4x32xf32>
    %cst_86 = arith.constant 1.000000e+00 : f32
    %476 = vector.broadcast %cst_86 : f32 to vector<4x32xf32>
    %477 = arith.addf %476, %475 : vector<4x32xf32>
    %478 = arith.divf %476, %477 : vector<4x32xf32>
    %479 = arith.mulf %470, %455 : vector<4x32xf32>
    %480 = arith.mulf %464, %472 : vector<4x32xf32>
    %481 = arith.addf %479, %480 : vector<4x32xf32>
    %482 = math.tanh %481 : vector<4x32xf32>
    %483 = arith.mulf %478, %482 : vector<4x32xf32>
    %c4_i32_87 = arith.constant 4 : i32
    %484 = vector.broadcast %c4_i32_87 : i32 to vector<4x1xi32>
    %485 = arith.cmpi sgt, %0, %484 : vector<4x1xi32>
    %486 = vector.shape_cast %485 : vector<4x1xi1> to vector<4x1xi1>
    %487 = vector.broadcast %486 : vector<4x1xi1> to vector<4x32xi1>
    %488 = arith.select %487, %483, %452 : vector<4x32xi1>, vector<4x32xf32>
    %489 = vector.shape_cast %485 : vector<4x1xi1> to vector<4x1xi1>
    %490 = vector.broadcast %489 : vector<4x1xi1> to vector<4x32xi1>
    %491 = arith.select %490, %481, %455 : vector<4x32xi1>, vector<4x32xf32>
    %492 = vector.extract_strided_slice %309 {offsets = [20, 0], sizes = [4, 128], strides = [1, 1]} : vector<32x128xf32> to vector<4x128xf32>
    %cst_88 = arith.constant dense<0.000000e+00> : vector<4x128xf32>
    %493 = tpu.matmul %488, %305, %cst_88 {dimension_numbers = #tpu.dot_dimension_numbers<[1], [0], [0], [1], [0, 0, 1, 1], [], []>} : vector<4x32xf32>, vector<32x128xf32>, vector<4x128xf32> -> vector<4x128xf32>
    %494 = arith.addf %492, %493 : vector<4x128xf32>
    %495 = vector.extract_strided_slice %494 {offsets = [0, 0], sizes = [4, 32], strides = [1, 1]} : vector<4x128xf32> to vector<4x32xf32>
    %496 = arith.negf %495 : vector<4x32xf32>
    %497 = math.exp %496 : vector<4x32xf32>
    %cst_89 = arith.constant 1.000000e+00 : f32
    %498 = vector.broadcast %cst_89 : f32 to vector<4x32xf32>
    %499 = arith.addf %498, %497 : vector<4x32xf32>
    %500 = arith.divf %498, %499 : vector<4x32xf32>
    %501 = vector.extract_strided_slice %494 {offsets = [0, 32], sizes = [4, 32], strides = [1, 1]} : vector<4x128xf32> to vector<4x32xf32>
    %502 = arith.negf %501 : vector<4x32xf32>
    %503 = math.exp %502 : vector<4x32xf32>
    %cst_90 = arith.constant 1.000000e+00 : f32
    %504 = vector.broadcast %cst_90 : f32 to vector<4x32xf32>
    %505 = arith.addf %504, %503 : vector<4x32xf32>
    %506 = arith.divf %504, %505 : vector<4x32xf32>
    %507 = vector.extract_strided_slice %494 {offsets = [0, 64], sizes = [4, 32], strides = [1, 1]} : vector<4x128xf32> to vector<4x32xf32>
    %508 = math.tanh %507 : vector<4x32xf32>
    %509 = vector.extract_strided_slice %494 {offsets = [0, 96], sizes = [4, 32], strides = [1, 1]} : vector<4x128xf32> to vector<4x32xf32>
    %510 = arith.negf %509 : vector<4x32xf32>
    %511 = math.exp %510 : vector<4x32xf32>
    %cst_91 = arith.constant 1.000000e+00 : f32
    %512 = vector.broadcast %cst_91 : f32 to vector<4x32xf32>
    %513 = arith.addf %512, %511 : vector<4x32xf32>
    %514 = arith.divf %512, %513 : vector<4x32xf32>
    %515 = arith.mulf %506, %491 : vector<4x32xf32>
    %516 = arith.mulf %500, %508 : vector<4x32xf32>
    %517 = arith.addf %515, %516 : vector<4x32xf32>
    %518 = math.tanh %517 : vector<4x32xf32>
    %519 = arith.mulf %514, %518 : vector<4x32xf32>
    %c5_i32_92 = arith.constant 5 : i32
    %520 = vector.broadcast %c5_i32_92 : i32 to vector<4x1xi32>
    %521 = arith.cmpi sgt, %0, %520 : vector<4x1xi32>
    %522 = vector.shape_cast %521 : vector<4x1xi1> to vector<4x1xi1>
    %523 = vector.broadcast %522 : vector<4x1xi1> to vector<4x32xi1>
    %524 = arith.select %523, %519, %488 : vector<4x32xi1>, vector<4x32xf32>
    %525 = vector.shape_cast %521 : vector<4x1xi1> to vector<4x1xi1>
    %526 = vector.broadcast %525 : vector<4x1xi1> to vector<4x32xi1>
    %527 = arith.select %526, %517, %491 : vector<4x32xi1>, vector<4x32xf32>
    %528 = vector.extract_strided_slice %309 {offsets = [24, 0], sizes = [4, 128], strides = [1, 1]} : vector<32x128xf32> to vector<4x128xf32>
    %cst_93 = arith.constant dense<0.000000e+00> : vector<4x128xf32>
    %529 = tpu.matmul %524, %305, %cst_93 {dimension_numbers = #tpu.dot_dimension_numbers<[1], [0], [0], [1], [0, 0, 1, 1], [], []>} : vector<4x32xf32>, vector<32x128xf32>, vector<4x128xf32> -> vector<4x128xf32>
    %530 = arith.addf %528, %529 : vector<4x128xf32>
    %531 = vector.extract_strided_slice %530 {offsets = [0, 0], sizes = [4, 32], strides = [1, 1]} : vector<4x128xf32> to vector<4x32xf32>
    %532 = arith.negf %531 : vector<4x32xf32>
    %533 = math.exp %532 : vector<4x32xf32>
    %cst_94 = arith.constant 1.000000e+00 : f32
    %534 = vector.broadcast %cst_94 : f32 to vector<4x32xf32>
    %535 = arith.addf %534, %533 : vector<4x32xf32>
    %536 = arith.divf %534, %535 : vector<4x32xf32>
    %537 = vector.extract_strided_slice %530 {offsets = [0, 32], sizes = [4, 32], strides = [1, 1]} : vector<4x128xf32> to vector<4x32xf32>
    %538 = arith.negf %537 : vector<4x32xf32>
    %539 = math.exp %538 : vector<4x32xf32>
    %cst_95 = arith.constant 1.000000e+00 : f32
    %540 = vector.broadcast %cst_95 : f32 to vector<4x32xf32>
    %541 = arith.addf %540, %539 : vector<4x32xf32>
    %542 = arith.divf %540, %541 : vector<4x32xf32>
    %543 = vector.extract_strided_slice %530 {offsets = [0, 64], sizes = [4, 32], strides = [1, 1]} : vector<4x128xf32> to vector<4x32xf32>
    %544 = math.tanh %543 : vector<4x32xf32>
    %545 = vector.extract_strided_slice %530 {offsets = [0, 96], sizes = [4, 32], strides = [1, 1]} : vector<4x128xf32> to vector<4x32xf32>
    %546 = arith.negf %545 : vector<4x32xf32>
    %547 = math.exp %546 : vector<4x32xf32>
    %cst_96 = arith.constant 1.000000e+00 : f32
    %548 = vector.broadcast %cst_96 : f32 to vector<4x32xf32>
    %549 = arith.addf %548, %547 : vector<4x32xf32>
    %550 = arith.divf %548, %549 : vector<4x32xf32>
    %551 = arith.mulf %542, %527 : vector<4x32xf32>
    %552 = arith.mulf %536, %544 : vector<4x32xf32>
    %553 = arith.addf %551, %552 : vector<4x32xf32>
    %554 = math.tanh %553 : vector<4x32xf32>
    %555 = arith.mulf %550, %554 : vector<4x32xf32>
    %c6_i32_97 = arith.constant 6 : i32
    %556 = vector.broadcast %c6_i32_97 : i32 to vector<4x1xi32>
    %557 = arith.cmpi sgt, %0, %556 : vector<4x1xi32>
    %558 = vector.shape_cast %557 : vector<4x1xi1> to vector<4x1xi1>
    %559 = vector.broadcast %558 : vector<4x1xi1> to vector<4x32xi1>
    %560 = arith.select %559, %555, %524 : vector<4x32xi1>, vector<4x32xf32>
    %561 = vector.shape_cast %557 : vector<4x1xi1> to vector<4x1xi1>
    %562 = vector.broadcast %561 : vector<4x1xi1> to vector<4x32xi1>
    %563 = arith.select %562, %553, %527 : vector<4x32xi1>, vector<4x32xf32>
    %564 = vector.extract_strided_slice %309 {offsets = [28, 0], sizes = [4, 128], strides = [1, 1]} : vector<32x128xf32> to vector<4x128xf32>
    %cst_98 = arith.constant dense<0.000000e+00> : vector<4x128xf32>
    %565 = tpu.matmul %560, %305, %cst_98 {dimension_numbers = #tpu.dot_dimension_numbers<[1], [0], [0], [1], [0, 0, 1, 1], [], []>} : vector<4x32xf32>, vector<32x128xf32>, vector<4x128xf32> -> vector<4x128xf32>
    %566 = arith.addf %564, %565 : vector<4x128xf32>
    %567 = vector.extract_strided_slice %566 {offsets = [0, 0], sizes = [4, 32], strides = [1, 1]} : vector<4x128xf32> to vector<4x32xf32>
    %568 = arith.negf %567 : vector<4x32xf32>
    %569 = math.exp %568 : vector<4x32xf32>
    %cst_99 = arith.constant 1.000000e+00 : f32
    %570 = vector.broadcast %cst_99 : f32 to vector<4x32xf32>
    %571 = arith.addf %570, %569 : vector<4x32xf32>
    %572 = arith.divf %570, %571 : vector<4x32xf32>
    %573 = vector.extract_strided_slice %566 {offsets = [0, 32], sizes = [4, 32], strides = [1, 1]} : vector<4x128xf32> to vector<4x32xf32>
    %574 = arith.negf %573 : vector<4x32xf32>
    %575 = math.exp %574 : vector<4x32xf32>
    %cst_100 = arith.constant 1.000000e+00 : f32
    %576 = vector.broadcast %cst_100 : f32 to vector<4x32xf32>
    %577 = arith.addf %576, %575 : vector<4x32xf32>
    %578 = arith.divf %576, %577 : vector<4x32xf32>
    %579 = vector.extract_strided_slice %566 {offsets = [0, 64], sizes = [4, 32], strides = [1, 1]} : vector<4x128xf32> to vector<4x32xf32>
    %580 = math.tanh %579 : vector<4x32xf32>
    %581 = vector.extract_strided_slice %566 {offsets = [0, 96], sizes = [4, 32], strides = [1, 1]} : vector<4x128xf32> to vector<4x32xf32>
    %582 = arith.negf %581 : vector<4x32xf32>
    %583 = math.exp %582 : vector<4x32xf32>
    %cst_101 = arith.constant 1.000000e+00 : f32
    %584 = vector.broadcast %cst_101 : f32 to vector<4x32xf32>
    %585 = arith.addf %584, %583 : vector<4x32xf32>
    %586 = arith.divf %584, %585 : vector<4x32xf32>
    %587 = arith.mulf %578, %563 : vector<4x32xf32>
    %588 = arith.mulf %572, %580 : vector<4x32xf32>
    %589 = arith.addf %587, %588 : vector<4x32xf32>
    %590 = math.tanh %589 : vector<4x32xf32>
    %591 = arith.mulf %586, %590 : vector<4x32xf32>
    %c7_i32_102 = arith.constant 7 : i32
    %592 = vector.broadcast %c7_i32_102 : i32 to vector<4x1xi32>
    %593 = arith.cmpi sgt, %0, %592 : vector<4x1xi32>
    %594 = vector.shape_cast %593 : vector<4x1xi1> to vector<4x1xi1>
    %595 = vector.broadcast %594 : vector<4x1xi1> to vector<4x32xi1>
    %596 = arith.select %595, %591, %560 : vector<4x32xi1>, vector<4x32xf32>
    %c0_103 = arith.constant 0 : index
    %c0_104 = arith.constant 0 : index
    %597 = vector.load %arg10[%c0_103, %c0_104] : memref<1x32xf32, #tpu.memory_space<vmem>>, vector<1x32xf32>
    %598 = vector.broadcast %597 : vector<1x32xf32> to vector<4x32xf32>
    %599 = arith.subf %596, %598 : vector<4x32xf32>
    %c0_105 = arith.constant 0 : index
    %c0_106 = arith.constant 0 : index
    %600 = vector.load %arg11[%c0_105, %c0_106] : memref<1x32xf32, #tpu.memory_space<vmem>>, vector<1x32xf32>
    %cst_107 = arith.constant 9.99999974E-6 : f32
    %601 = vector.broadcast %cst_107 : f32 to vector<1x32xf32>
    %602 = arith.addf %600, %601 : vector<1x32xf32>
    %603 = math.rsqrt %602 : vector<1x32xf32>
    %604 = vector.broadcast %603 : vector<1x32xf32> to vector<4x32xf32>
    %605 = arith.mulf %599, %604 : vector<4x32xf32>
    %c0_108 = arith.constant 0 : index
    %c0_109 = arith.constant 0 : index
    %606 = vector.load %arg8[%c0_108, %c0_109] : memref<1x32xf32, #tpu.memory_space<vmem>>, vector<1x32xf32>
    %607 = vector.broadcast %606 : vector<1x32xf32> to vector<4x32xf32>
    %608 = arith.mulf %605, %607 : vector<4x32xf32>
    %c0_110 = arith.constant 0 : index
    %c0_111 = arith.constant 0 : index
    %609 = vector.load %arg9[%c0_110, %c0_111] : memref<1x32xf32, #tpu.memory_space<vmem>>, vector<1x32xf32>
    %610 = vector.broadcast %609 : vector<1x32xf32> to vector<4x32xf32>
    %611 = arith.addf %608, %610 : vector<4x32xf32>
    %c0_112 = arith.constant 0 : index
    %c0_113 = arith.constant 0 : index
    %612 = vector.load %arg12[%c0_112, %c0_113] : memref<32x8xf32, #tpu.memory_space<vmem>>, vector<32x8xf32>
    %cst_114 = arith.constant dense<0.000000e+00> : vector<4x8xf32>
    %613 = tpu.matmul %611, %612, %cst_114 {dimension_numbers = #tpu.dot_dimension_numbers<[1], [0], [0], [1], [0, 0, 1, 1], [], []>} : vector<4x32xf32>, vector<32x8xf32>, vector<4x8xf32> -> vector<4x8xf32>
    %c0_115 = arith.constant 0 : index
    %c0_116 = arith.constant 0 : index
    %614 = vector.load %arg13[%c0_115, %c0_116] : memref<1x8xf32, #tpu.memory_space<vmem>>, vector<1x8xf32>
    %615 = vector.broadcast %614 : vector<1x8xf32> to vector<4x8xf32>
    %616 = arith.addf %613, %615 : vector<4x8xf32>
    %c0_117 = arith.constant 0 : index
    %c0_118 = arith.constant 0 : index
    %617 = vector.load %arg14[%c0_117, %c0_118] : memref<4x8xf32, #tpu.memory_space<vmem>>, vector<4x8xf32>
    tpu.vector_store %arg14[%c0_117, %c0_118], %616 {strides = array<i32>} : memref<4x8xf32, #tpu.memory_space<vmem>>, vector<4x8xf32>,
    return
  }
}

</mosaic_0001>

<llo_original>
// kernel: tpu_custom_call.1
$region0: #{tpu_custom_call.1}
  #allocation0 [shape = 'u32[]', space=smem, size = 0x4, offset = 0x4, fixed_abs, tag = 'smem constant byte address 0x4 - core index']
  #allocation1 [shape = 'u32[144,128]{1,0:T(1,128)}', space=vmem, size = 0x12000, scoped, tag = 'internal scratch']
  #allocation2 [shape = 'f32[32,32]{1,0:T(8,128)}', space=vmem, size = 0x4000, scoped, tag = 'scratch operand']
  %s0 = inlined_call_operand.vmem [shape: s32[4,1], index: 0, kind: input, shape index: {}]
  %s1 = inlined_call_operand.vmem [shape: f32[32,16], index: 1, kind: input, shape index: {}]
  %s2 = inlined_call_operand.hbm [shape: f32[16,128], index: 2, kind: input, shape index: {}]
  %s3 = inlined_call_operand.vmem [shape: f32[32,128], index: 3, kind: input, shape index: {}]
  %s4 = inlined_call_operand.vmem [shape: f32[1,128], index: 4, kind: input, shape index: {}]
  %s5 = inlined_call_operand.vmem [shape: f32[32,128], index: 5, kind: input, shape index: {}]
  %s6 = inlined_call_operand.vmem [shape: f32[32,128], index: 6, kind: input, shape index: {}]
  %s7 = inlined_call_operand.vmem [shape: f32[1,128], index: 7, kind: input, shape index: {}]
  %s8 = inlined_call_operand.vmem [shape: f32[1,32], index: 8, kind: input, shape index: {}]
  %s9 = inlined_call_operand.vmem [shape: f32[1,32], index: 9, kind: input, shape index: {}]
  %s10 = inlined_call_operand.vmem [shape: f32[1,32], index: 10, kind: input, shape index: {}]
  %s11 = inlined_call_operand.vmem [shape: f32[1,32], index: 11, kind: input, shape index: {}]
  %s12 = inlined_call_operand.vmem [shape: f32[32,8], index: 12, kind: input, shape index: {}]
  %s13 = inlined_call_operand.vmem [shape: f32[1,8], index: 13, kind: input, shape index: {}]
  %s14 = inlined_call_operand.hbm [shape: f32[4,8], index: 14, kind: output, shape index: {}]
  %s15 = sld [smem:[#allocation0]]
  $region70: #{tpu_custom_call.1} parent=0
    _
  %s17 = ssub.s32 1, %s15
  %s18 = scalar_select 0, %s17, %s15
  $region1: #{tpu_custom_call.1} parent=0
    #allocation3 [shape = 'u8[8192]{0}', space=vmem, size = 0x2000, scoped, tag = 'input window, operand 2, single buffered']
    #allocation4 [shape = 's32[1]{0}', space=sflag, size = 0x4, scoped, tag = 'scoped memory for tpu_custom_call.1']
    #allocation5 [shape = 's32[1]{0}', space=sflag, size = 0x4, scoped, tag = 'scoped memory for tpu_custom_call.1']
    #allocation6 [shape = 'u8[2048]{0}', space=vmem, size = 0x800, scoped, tag = 'output window, operand 0, single buffered']
    %19 = vsyncpa [#allocation4], 0
    %20 = vsyncpa [#allocation5], 0
    // Predicated region
    $region2: #{tpu_custom_call.1} parent=1 // pred_check
      _
    $region3: #{tpu_custom_call.1} parent=1 // pred_check_branch
      %22 = sbr.rel (0) target = $region5
    $region4: #{tpu_custom_call.1} parent=1 // pred_region
      _
    $region5: #{tpu_custom_call.1} parent=1 // pred_fallthru
      _
    // Predicated region
    $region6: #{tpu_custom_call.1} parent=1 // pred_check
      _
    $region7: #{tpu_custom_call.1} parent=1 // pred_check_branch
      %24 = sbr.rel (0) target = $region9
    $region8: #{tpu_custom_call.1} parent=1 // pred_region
      _
    $region9: #{tpu_custom_call.1} parent=1 // pred_fallthru
      _
    // Predicated region
    $region10: #{tpu_custom_call.1} parent=1 // pred_check
      _
    $region11: #{tpu_custom_call.1} parent=1 // pred_check_branch
      %26 = sbr.rel (0) target = $region13
    $region12: #{tpu_custom_call.1} parent=1 // pred_region
      %s28 = ssub.s32 256, 256
      %29 = vsyncadd [#allocation4], %s28
      %s30 = sshll.u32 [#allocation3], 4
      %s31 = int_to_ptr.vmem [resolvable:$true] %s30
      %36 = dma.hbm_to_vmem [thread:$0]  %s2, 256, %s31, [#allocation4], 128, 128, 8
    $region13: #{tpu_custom_call.1} parent=1 // pred_fallthru
      _
    // Predicated region
    $region14: #{tpu_custom_call.1} parent=1 // pred_check
      _
    $region15: #{tpu_custom_call.1} parent=1 // pred_check_branch
      %38 = sbr.rel (0) target = $region17
    $region16: #{tpu_custom_call.1} parent=1 // pred_region
      _
    $region17: #{tpu_custom_call.1} parent=1 // pred_fallthru
      _
    // Predicated region
    $region18: #{tpu_custom_call.1} parent=1 // pred_check
      _
    $region19: #{tpu_custom_call.1} parent=1 // pred_check_branch
      %40 = sbr.rel (0) target = $region21
    $region20: #{tpu_custom_call.1} parent=1 // pred_region
      _
    $region21: #{tpu_custom_call.1} parent=1 // pred_fallthru
      _
    // Predicated region
    $region22: #{tpu_custom_call.1} parent=1 // pred_check
      _
    $region23: #{tpu_custom_call.1} parent=1 // pred_check_branch
      %42 = sbr.rel (0) target = $region25
    $region24: #{tpu_custom_call.1} parent=1 // pred_region
      _
    $region25: #{tpu_custom_call.1} parent=1 // pred_fallthru
      _
    // Predicated region
    $region26: #{tpu_custom_call.1} parent=1 // pred_check
      _
    $region27: #{tpu_custom_call.1} parent=1 // pred_check_branch
      %44 = sbr.rel (0) target = $region29
    $region28: #{tpu_custom_call.1} parent=1 // pred_region
      _
    $region29: #{tpu_custom_call.1} parent=1 // pred_fallthru
      _
    // Predicated region
    $region30: #{tpu_custom_call.1} parent=1 // pred_check
      _
    $region31: #{tpu_custom_call.1} parent=1 // pred_check_branch
      %46 = sbr.rel (0) target = $region33
    $region32: #{tpu_custom_call.1} parent=1 // pred_region
      _
    $region33: #{tpu_custom_call.1} parent=1 // pred_fallthru
      _
    // Predicated region
    $region34: #{tpu_custom_call.1} parent=1 // pred_check
      _
    $region35: #{tpu_custom_call.1} parent=1 // pred_check_branch
      %48 = sbr.rel (0) target = $region37
    $region36: #{tpu_custom_call.1} parent=1 // pred_region
      _
    $region37: #{tpu_custom_call.1} parent=1 // pred_fallthru
      _
    // Predicated region
    $region38: #{tpu_custom_call.1} parent=1 // pred_check
      _
    $region39: #{tpu_custom_call.1} parent=1 // pred_check_branch
      %50 = sbr.rel (0) target = $region41
    $region40: #{tpu_custom_call.1} parent=1 // pred_region
      _
    $region41: #{tpu_custom_call.1} parent=1 // pred_fallthru
      _
    // Predicated region
    $region42: #{tpu_custom_call.1} parent=1 // pred_check
      _
    $region43: #{tpu_custom_call.1} parent=1 // pred_check_branch
      %52 = sbr.rel (0) target = $region45
    $region44: #{tpu_custom_call.1} parent=1 // pred_region
      _
    $region45: #{tpu_custom_call.1} parent=1 // pred_fallthru
      _
    // Predicated region
    $region46: #{tpu_custom_call.1} parent=1 // pred_check
      _
    $region47: #{tpu_custom_call.1} parent=1 // pred_check_branch
      %54 = sbr.rel (0) target = $region49
    $region48: #{tpu_custom_call.1} parent=1 // pred_region
      _
    $region49: #{tpu_custom_call.1} parent=1 // pred_fallthru
      _
    // Predicated region
    $region50: #{tpu_custom_call.1} parent=1 // pred_check
      _
    $region51: #{tpu_custom_call.1} parent=1 // pred_check_branch
      %56 = sbr.rel (0) target = $region53
    $region52: #{tpu_custom_call.1} parent=1 // pred_region
      _
    $region53: #{tpu_custom_call.1} parent=1 // pred_fallthru
      _
    // Predicated region
    $region54: #{tpu_custom_call.1} parent=1 // pred_check
      _
    $region55: #{tpu_custom_call.1} parent=1 // pred_check_branch
      %58 = sbr.rel (0) target = $region57
    $region56: #{tpu_custom_call.1} parent=1 // pred_region
      _
    $region57: #{tpu_custom_call.1} parent=1 // pred_fallthru
      _
    // Predicated region
    $region58: #{tpu_custom_call.1} parent=1 // pred_check
      _
    $region59: #{tpu_custom_call.1} parent=1 // pred_check_branch
      %60 = sbr.rel (0) target = $region61
    $region60: #{tpu_custom_call.1} parent=1 // pred_region
      %61 = dma.done [#allocation4], 256
    $region61: #{tpu_custom_call.1} parent=1 // pred_fallthru
      _
    %v62 = vld [vmem:[%s0] sm:$0xf]
    %v63 = vld [vmem:[%s1] sm:$0xff]
    %v64 = vld [vmem:[%s1 + $0x8] sm:$0xff]
    %v65 = vld [vmem:[%s1 + $0x10] sm:$0xff]
    %v66 = vld [vmem:[%s1 + $0x18] sm:$0xff]
    %v67 = vld [vmem:[#allocation3] sm:$0xff]
    %v68 = vld [vmem:[#allocation3 + $0x8] sm:$0xff]
    %v69 = vld [vmem:[%s3] sm:$0xff]
    %v70 = vld [vmem:[%s3 + $0x8] sm:$0xff]
    %v71 = vld [vmem:[%s3 + $0x10] sm:$0xff]
    %v72 = vld [vmem:[%s3 + $0x18] sm:$0xff]
    %v73 = vld [vmem:[%s4] sm:$0x1]
    %v75 = vlaneseq
    %v76 = vshrl.u32 %v75, 7
    %v77 = vsub.s32 0, %v76
    %v78 = vrot.slane %v73, %v77
    %vm80 = vcmask 130048
    %v82 = vsel %vm80, %v63, 0
    %v85 = vsel %vm80, %v64, 0
    %v88 = vsel %vm80, %v65, 0
    %v91 = vsel %vm80, %v66, 0
    %93 = vmatprep.subr.mxu0 0.0
    %94 = vmatpush1.msra.mxu0 %v67
    %95 = vmatprep.subr.mxu0 0.0
    %96 = vmatpush1.msra.mxu0 %v68
    %97 = vmatprep.subr.mxu0 0.0
    %98 = vmatpush1.msra.mxu0 0.0
    %99 = vmatprep.subr.mxu0 0.0
    %100 = vmatpush1.msra.mxu0 0.0
    %101 = vmatprep.subr.mxu0 0.0
    %102 = vmatpush1.msra.mxu0 0.0
    %103 = vmatprep.subr.mxu0 0.0
    %104 = vmatpush1.msra.mxu0 0.0
    %105 = vmatprep.subr.mxu0 0.0
    %106 = vmatpush1.msra.mxu0 0.0
    %107 = vmatprep.subr.mxu0 0.0
    %108 = vmatpush1.msra.mxu0 0.0
    %109 = vmatprep.subr.mxu0 0.0
    %110 = vmatpush1.msra.mxu0 0.0
    %111 = vmatprep.subr.mxu0 0.0
    %112 = vmatpush1.msra.mxu0 0.0
    %113 = vmatprep.subr.mxu0 0.0
    %114 = vmatpush1.msra.mxu0 0.0
    %115 = vmatprep.subr.mxu0 0.0
    %116 = vmatpush1.msra.mxu0 0.0
    %117 = vmatprep.subr.mxu0 0.0
    %118 = vmatpush1.msra.mxu0 0.0
    %119 = vmatprep.subr.mxu0 0.0
    %120 = vmatpush1.msra.mxu0 0.0
    %121 = vmatprep.subr.mxu0 0.0
    %122 = vmatpush1.msra.mxu0 0.0
    %123 = vmatprep.subr.mxu0 0.0
    %124 = vmatpush1.msra.mxu0 0.0
    %125 = vmatprep.subr.mxu0 0.0
    %126 = vmatpush1.msra.mxu0 0.0
    %127 = vmatprep.subr.mxu0 0.0
    %128 = vmatpush1.msra.mxu0 0.0
    %129 = vmatprep.subr.mxu0 0.0
    %130 = vmatpush1.msra.mxu0 0.0
    %131 = vmatprep.subr.mxu0 0.0
    %132 = vmatpush1.msra.mxu0 0.0
    %133 = vmatprep.subr.mxu0 0.0
    %134 = vmatpush1.msra.mxu0 0.0
    %135 = vmatprep.subr.mxu0 0.0
    %136 = vmatpush1.msra.mxu0 0.0
    %137 = vmatprep.subr.mxu0 0.0
    %138 = vmatpush1.msra.mxu0 0.0
    %139 = vmatprep.subr.mxu0 0.0
    %140 = vmatpush1.msra.mxu0 0.0
    %141 = vmatprep.subr.mxu0 0.0
    %142 = vmatpush1.msra.mxu0 0.0
    %143 = vmatprep.subr.mxu0 0.0
    %144 = vmatpush1.msra.mxu0 0.0
    %145 = vmatprep.subr.mxu0 0.0
    %146 = vmatpush1.msra.mxu0 0.0
    %147 = vmatprep.subr.mxu0 0.0
    %148 = vmatpush1.msra.mxu0 0.0
    %149 = vmatprep.subr.mxu0 0.0
    %150 = vmatpush1.msra.mxu0 0.0
    %151 = vmatprep.subr.mxu0 0.0
    %152 = vmatpush1.msra.mxu0 0.0
    %153 = vmatprep.subr.mxu0 0.0
    %154 = vmatpush1.msra.mxu0 0.0
    %155 = vmatprep.subr.mxu0 0.0
    %156 = vmatpush1.msra.mxu0 0.0
    %157 = vmatprep.mubr.f32.mxu0 0.0
    %158 = vmatmul.mubr.f32.gmra.mrb[0].mxu0 %v82
    %v159 = vpop.f32.mrb[0].mxu0
    %v160 = vadd.f32 %v78, %v159
    %v161 = vpop.f32.mrb[0].mxu0
    %162 = vmatprep.mubr.f32.mxu0 0.0
    %163 = vmatmul.mubr.f32.gmra.mrb[0].mxu0 %v85
    %v164 = vpop.f32.mrb[0].mxu0
    %v165 = vadd.f32 %v78, %v164
    %v166 = vpop.f32.mrb[0].mxu0
    %167 = vmatprep.mubr.f32.mxu0 0.0
    %168 = vmatmul.mubr.f32.gmra.mrb[0].mxu0 %v88
    %v169 = vpop.f32.mrb[0].mxu0
    %v170 = vadd.f32 %v78, %v169
    %v171 = vpop.f32.mrb[0].mxu0
    %172 = vmatprep.mubr.f32.mxu0 0.0
    %173 = vmatmul.mubr.f32.gmra.mrb[0].mxu0 %v91
    %v174 = vpop.f32.mrb[0].mxu0
    %v175 = vadd.f32 %v78, %v174
    %v176 = vpop.f32.mrb[0].mxu0
    %177 = vdwg.mxu0
    %vm178 = vcmask 261120
    %v180 = vsel %vm178, 0.0, 0
    %182 = vmatprep.subr.mxu0 0.0
    %183 = vmatpush1.msra.mxu0 %v69
    %184 = vmatprep.subr.mxu0 0.0
    %185 = vmatpush1.msra.mxu0 %v70
    %186 = vmatprep.subr.mxu0 0.0
    %187 = vmatpush1.msra.mxu0 %v71
    %188 = vmatprep.subr.mxu0 0.0
    %189 = vmatpush1.msra.mxu0 %v72
    %190 = vmatprep.subr.mxu0 0.0
    %191 = vmatpush1.msra.mxu0 0.0
    %192 = vmatprep.subr.mxu0 0.0
    %193 = vmatpush1.msra.mxu0 0.0
    %194 = vmatprep.subr.mxu0 0.0
    %195 = vmatpush1.msra.mxu0 0.0
    %196 = vmatprep.subr.mxu0 0.0
    %197 = vmatpush1.msra.mxu0 0.0
    %198 = vmatprep.subr.mxu0 0.0
    %199 = vmatpush1.msra.mxu0 0.0
    %200 = vmatprep.subr.mxu0 0.0
    %201 = vmatpush1.msra.mxu0 0.0
    %202 = vmatprep.subr.mxu0 0.0
    %203 = vmatpush1.msra.mxu0 0.0
    %204 = vmatprep.subr.mxu0 0.0
    %205 = vmatpush1.msra.mxu0 0.0
    %206 = vmatprep.subr.mxu0 0.0
    %207 = vmatpush1.msra.mxu0 0.0
    %208 = vmatprep.subr.mxu0 0.0
    %209 = vmatpush1.msra.mxu0 0.0
    %210 = vmatprep.subr.mxu0 0.0
    %211 = vmatpush1.msra.mxu0 0.0
    %212 = vmatprep.subr.mxu0 0.0
    %213 = vmatpush1.msra.mxu0 0.0
    %214 = vmatprep.subr.mxu0 0.0
    %215 = vmatpush1.msra.mxu0 0.0
    %216 = vmatprep.subr.mxu0 0.0
    %217 = vmatpush1.msra.mxu0 0.0
    %218 = vmatprep.subr.mxu0 0.0
    %219 = vmatpush1.msra.mxu0 0.0
    %220 = vmatprep.subr.mxu0 0.0
    %221 = vmatpush1.msra.mxu0 0.0
    %222 = vmatprep.subr.mxu0 0.0
    %223 = vmatpush1.msra.mxu0 0.0
    %224 = vmatprep.subr.mxu0 0.0
    %225 = vmatpush1.msra.mxu0 0.0
    %226 = vmatprep.subr.mxu0 0.0
    %227 = vmatpush1.msra.mxu0 0.0
    %228 = vmatprep.subr.mxu0 0.0
    %229 = vmatpush1.msra.mxu0 0.0
    %230 = vmatprep.subr.mxu0 0.0
    %231 = vmatpush1.msra.mxu0 0.0
    %232 = vmatprep.subr.mxu0 0.0
    %233 = vmatpush1.msra.mxu0 0.0
    %234 = vmatprep.subr.mxu0 0.0
    %235 = vmatpush1.msra.mxu0 0.0
    %236 = vmatprep.subr.mxu0 0.0
    %237 = vmatpush1.msra.mxu0 0.0
    %238 = vmatprep.subr.mxu0 0.0
    %239 = vmatpush1.msra.mxu0 0.0
    %240 = vmatprep.subr.mxu0 0.0
    %241 = vmatpush1.msra.mxu0 0.0
    %242 = vmatprep.subr.mxu0 0.0
    %243 = vmatpush1.msra.mxu0 0.0
    %244 = vmatprep.subr.mxu0 0.0
    %245 = vmatpush1.msra.mxu0 0.0
    %246 = vmatprep.mubr.f32.mxu0 0.0
    %247 = vmatmul.mubr.f32.gmra.mrb[0].mxu0 %v180
    %v248 = vpop.f32.mrb[0].mxu0
    %v249 = vadd.f32 0.0, %v248
    %v250 = vpop.f32.mrb[0].mxu0
    %251 = vdwg.mxu0
    %v252 = vadd.f32 %v160, %v249
    %v253 = vxor.u32 %v252, 2147483648
    %v254 = vmul.f32 %v253, 1.442695
    %v255 = vpow.pop %v254
    %v256 = vadd.f32 %v255, 1.0
    %v257 = vrcp.pop %v256
    %v258 = vmul.f32 1.0, %v257
    %v259 = vtanh.pop %v252
    %v260 = vmul.f32 %v258, 0.0
    %262 = vrot.lane.b32.xlu0 %v259, 64
    %v263 = vpop.permute.xlu0 %262
    %v265 = vmul.f32 %v258, %v263
    %267 = vrot.lane.b32.xlu0 %v265, 32
    %v268 = vpop.permute.xlu0 %267
    %v270 = vadd.f32 %v260, %v268
    %v271 = vtanh.pop %v270
    %273 = vrot.lane.b32.xlu0 %v271, 64
    %v274 = vpop.permute.xlu0 %273
    %v276 = vmul.f32 %v258, %v274
    %vm277 = vcmp.gt.s32.totalorder %v62, 0
    %v278 = vsel %vm277, 1, 0
    %279 = vset.pattern.permute.xlu0 0
    %280 = vperm.xlu0 %279, %v278
    %v281 = vpop.permute.xlu0 %280
    %vm282 = vcmp.eq.s32.totalorder %v281, 1
    %v283 = vsel %vm282, %v276, 0.0
    %v284 = vsel %vm282, %v270, 0.0
    %286 = vrot.lane.b32.xlu0 %v283, 32
    %v287 = vpop.permute.xlu0 %286
    %vm289 = vcmask 257024
    %290 = vst.msk [vmem:[#allocation2] sm:$0xf] %vm289, %v287
    %v291 = vsel %vm178, %v287, 0
    %293 = vmatprep.subr.mxu0 0.0
    %294 = vmatpush1.msra.mxu0 %v69
    %295 = vmatprep.subr.mxu0 0.0
    %296 = vmatpush1.msra.mxu0 %v70
    %297 = vmatprep.subr.mxu0 0.0
    %298 = vmatpush1.msra.mxu0 %v71
    %299 = vmatprep.subr.mxu0 0.0
    %300 = vmatpush1.msra.mxu0 %v72
    %301 = vmatprep.subr.mxu0 0.0
    %302 = vmatpush1.msra.mxu0 0.0
    %303 = vmatprep.subr.mxu0 0.0
    %304 = vmatpush1.msra.mxu0 0.0
    %305 = vmatprep.subr.mxu0 0.0
    %306 = vmatpush1.msra.mxu0 0.0
    %307 = vmatprep.subr.mxu0 0.0
    %308 = vmatpush1.msra.mxu0 0.0
    %309 = vmatprep.subr.mxu0 0.0
    %310 = vmatpush1.msra.mxu0 0.0
    %311 = vmatprep.subr.mxu0 0.0
    %312 = vmatpush1.msra.mxu0 0.0
    %313 = vmatprep.subr.mxu0 0.0
    %314 = vmatpush1.msra.mxu0 0.0
    %315 = vmatprep.subr.mxu0 0.0
    %316 = vmatpush1.msra.mxu0 0.0
    %317 = vmatprep.subr.mxu0 0.0
    %318 = vmatpush1.msra.mxu0 0.0
    %319 = vmatprep.subr.mxu0 0.0
    %320 = vmatpush1.msra.mxu0 0.0
    %321 = vmatprep.subr.mxu0 0.0
    %322 = vmatpush1.msra.mxu0 0.0
    %323 = vmatprep.subr.mxu0 0.0
    %324 = vmatpush1.msra.mxu0 0.0
    %325 = vmatprep.subr.mxu0 0.0
    %326 = vmatpush1.msra.mxu0 0.0
    %327 = vmatprep.subr.mxu0 0.0
    %328 = vmatpush1.msra.mxu0 0.0
    %329 = vmatprep.subr.mxu0 0.0
    %330 = vmatpush1.msra.mxu0 0.0
    %331 = vmatprep.subr.mxu0 0.0
    %332 = vmatpush1.msra.mxu0 0.0
    %333 = vmatprep.subr.mxu0 0.0
    %334 = vmatpush1.msra.mxu0 0.0
    %335 = vmatprep.subr.mxu0 0.0
    %336 = vmatpush1.msra.mxu0 0.0
    %337 = vmatprep.subr.mxu0 0.0
    %338 = vmatpush1.msra.mxu0 0.0
    %339 = vmatprep.subr.mxu0 0.0
    %340 = vmatpush1.msra.mxu0 0.0
    %341 = vmatprep.subr.mxu0 0.0
    %342 = vmatpush1.msra.mxu0 0.0
    %343 = vmatprep.subr.mxu0 0.0
    %344 = vmatpush1.msra.mxu0 0.0
    %345 = vmatprep.subr.mxu0 0.0
    %346 = vmatpush1.msra.mxu0 0.0
    %347 = vmatprep.subr.mxu0 0.0
    %348 = vmatpush1.msra.mxu0 0.0
    %349 = vmatprep.subr.mxu0 0.0
    %350 = vmatpush1.msra.mxu0 0.0
    %351 = vmatprep.subr.mxu0 0.0
    %352 = vmatpush1.msra.mxu0 0.0
    %353 = vmatprep.subr.mxu0 0.0
    %354 = vmatpush1.msra.mxu0 0.0
    %355 = vmatprep.subr.mxu0 0.0
    %356 = vmatpush1.msra.mxu0 0.0
    %357 = vmatprep.mubr.f32.mxu0 0.0
    %358 = vmatmul.mubr.f32.gmra.mrb[0].mxu0 %v291
    %v359 = vpop.f32.mrb[0].mxu0
    %v360 = vadd.f32 0.0, %v359
    %v361 = vpop.f32.mrb[0].mxu0
    %362 = vdwg.mxu0
    %v364 = vrot.slane %v360, 4
    %v366 = vadd.f32 %v160, %v364
    %v367 = vxor.u32 %v366, 2147483648
    %v368 = vmul.f32 %v367, 1.442695
    %v369 = vpow.pop %v368
    %v370 = vadd.f32 %v369, 1.0
    %v371 = vrcp.pop %v370
    %v372 = vmul.f32 1.0, %v371
    %v373 = vtanh.pop %v366
    %v375 = vrot.slane %v284, 4
    %v377 = vmul.f32 %v372, %v375
    %379 = vrot.lane.b32.xlu0 %v373, 64
    %v380 = vpop.permute.xlu0 %379
    %v382 = vmul.f32 %v372, %v380
    %384 = vrot.lane.b32.xlu0 %v382, 32
    %v385 = vpop.permute.xlu0 %384
    %v387 = vadd.f32 %v377, %v385
    %v388 = vtanh.pop %v387
    %390 = vrot.lane.b32.xlu0 %v388, 64
    %v391 = vpop.permute.xlu0 %390
    %v393 = vmul.f32 %v372, %v391
    %vm394 = vcmp.gt.s32.totalorder %v62, 1
    %v395 = vsel %vm394, 1, 0
    %396 = vset.pattern.permute.xlu0 0
    %397 = vperm.xlu0 %396, %v395
    %v398 = vpop.permute.xlu0 %397
    %vm399 = vcmp.eq.s32.totalorder %v398, 1
    %v401 = vrot.slane %v393, 4
    %402 = vrot.lane.b32.xlu0 %v401, 32
    %v403 = vpop.permute.xlu0 %402
    %v405 = vsel %vm399, %v403, %v287
    %v407 = vrot.slane %v387, 4
    %408 = vrot.lane.b32.xlu0 %v407, 96
    %v409 = vpop.permute.xlu0 %408
    %411 = vrot.lane.b32.xlu0 %v284, 96
    %v412 = vpop.permute.xlu0 %411
    %v414 = vsel %vm399, %v409, %v412
    %415 = vst.msk [vmem:[#allocation2 + $0x4] sm:$0xf] %vm289, %v405
    %v417 = vsel %vm178, %v405, 0
    %419 = vmatprep.subr.mxu0 0.0
    %420 = vmatpush1.msra.mxu0 %v69
    %421 = vmatprep.subr.mxu0 0.0
    %422 = vmatpush1.msra.mxu0 %v70
    %423 = vmatprep.subr.mxu0 0.0
    %424 = vmatpush1.msra.mxu0 %v71
    %425 = vmatprep.subr.mxu0 0.0
    %426 = vmatpush1.msra.mxu0 %v72
    %427 = vmatprep.subr.mxu0 0.0
    %428 = vmatpush1.msra.mxu0 0.0
    %429 = vmatprep.subr.mxu0 0.0
    %430 = vmatpush1.msra.mxu0 0.0
    %431 = vmatprep.subr.mxu0 0.0
    %432 = vmatpush1.msra.mxu0 0.0
    %433 = vmatprep.subr.mxu0 0.0
    %434 = vmatpush1.msra.mxu0 0.0
    %435 = vmatprep.subr.mxu0 0.0
    %436 = vmatpush1.msra.mxu0 0.0
    %437 = vmatprep.subr.mxu0 0.0
    %438 = vmatpush1.msra.mxu0 0.0
    %439 = vmatprep.subr.mxu0 0.0
    %440 = vmatpush1.msra.mxu0 0.0
    %441 = vmatprep.subr.mxu0 0.0
    %442 = vmatpush1.msra.mxu0 0.0
    %443 = vmatprep.subr.mxu0 0.0
    %444 = vmatpush1.msra.mxu0 0.0
    %445 = vmatprep.subr.mxu0 0.0
    %446 = vmatpush1.msra.mxu0 0.0
    %447 = vmatprep.subr.mxu0 0.0
    %448 = vmatpush1.msra.mxu0 0.0
    %449 = vmatprep.subr.mxu0 0.0
    %450 = vmatpush1.msra.mxu0 0.0
    %451 = vmatprep.subr.mxu0 0.0
    %452 = vmatpush1.msra.mxu0 0.0
    %453 = vmatprep.subr.mxu0 0.0
    %454 = vmatpush1.msra.mxu0 0.0
    %455 = vmatprep.subr.mxu0 0.0
    %456 = vmatpush1.msra.mxu0 0.0
    %457 = vmatprep.subr.mxu0 0.0
    %458 = vmatpush1.msra.mxu0 0.0
    %459 = vmatprep.subr.mxu0 0.0
    %460 = vmatpush1.msra.mxu0 0.0
    %461 = vmatprep.subr.mxu0 0.0
    %462 = vmatpush1.msra.mxu0 0.0
    %463 = vmatprep.subr.mxu0 0.0
    %464 = vmatpush1.msra.mxu0 0.0
    %465 = vmatprep.subr.mxu0 0.0
    %466 = vmatpush1.msra.mxu0 0.0
    %467 = vmatprep.subr.mxu0 0.0
    %468 = vmatpush1.msra.mxu0 0.0
    %469 = vmatprep.subr.mxu0 0.0
    %470 = vmatpush1.msra.mxu0 0.0
    %471 = vmatprep.subr.mxu0 0.0
    %472 = vmatpush1.msra.mxu0 0.0
    %473 = vmatprep.subr.mxu0 0.0
    %474 = vmatpush1.msra.mxu0 0.0
    %475 = vmatprep.subr.mxu0 0.0
    %476 = vmatpush1.msra.mxu0 0.0
    %477 = vmatprep.subr.mxu0 0.0
    %478 = vmatpush1.msra.mxu0 0.0
    %479 = vmatprep.subr.mxu0 0.0
    %480 = vmatpush1.msra.mxu0 0.0
    %481 = vmatprep.subr.mxu0 0.0
    %482 = vmatpush1.msra.mxu0 0.0
    %483 = vmatprep.mubr.f32.mxu0 0.0
    %484 = vmatmul.mubr.f32.gmra.mrb[0].mxu0 %v417
    %v485 = vpop.f32.mrb[0].mxu0
    %v486 = vadd.f32 0.0, %v485
    %v487 = vpop.f32.mrb[0].mxu0
    %488 = vdwg.mxu0
    %v489 = vadd.f32 %v165, %v486
    %v490 = vxor.u32 %v489, 2147483648
    %v491 = vmul.f32 %v490, 1.442695
    %v492 = vpow.pop %v491
    %v493 = vadd.f32 %v492, 1.0
    %v494 = vrcp.pop %v493
    %v495 = vmul.f32 1.0, %v494
    %v496 = vtanh.pop %v489
    %498 = vrot.lane.b32.xlu0 %v414, 32
    %v499 = vpop.permute.xlu0 %498
    %v501 = vmul.f32 %v495, %v499
    %503 = vrot.lane.b32.xlu0 %v496, 64
    %v504 = vpop.permute.xlu0 %503
    %v506 = vmul.f32 %v495, %v504
    %508 = vrot.lane.b32.xlu0 %v506, 32
    %v509 = vpop.permute.xlu0 %508
    %v511 = vadd.f32 %v501, %v509
    %v512 = vtanh.pop %v511
    %514 = vrot.lane.b32.xlu0 %v512, 64
    %v515 = vpop.permute.xlu0 %514
    %v517 = vmul.f32 %v495, %v515
    %vm518 = vcmp.gt.s32.totalorder %v62, 2
    %v519 = vsel %vm518, 1, 0
    %520 = vset.pattern.permute.xlu0 0
    %521 = vperm.xlu0 %520, %v519
    %v522 = vpop.permute.xlu0 %521
    %vm523 = vcmp.eq.s32.totalorder %v522, 1
    %524 = vrot.lane.b32.xlu0 %v405, 96
    %v525 = vpop.permute.xlu0 %524
    %v527 = vsel %vm523, %v517, %v525
    %v528 = vsel %vm523, %v511, %v499
    %530 = vrot.lane.b32.xlu0 %v527, 32
    %v531 = vpop.permute.xlu0 %530
    %533 = vst.msk [vmem:[#allocation2 + $0x8] sm:$0xf] %vm289, %v531
    %v534 = vsel %vm178, %v531, 0
    %536 = vmatprep.subr.mxu0 0.0
    %537 = vmatpush1.msra.mxu0 %v69
    %538 = vmatprep.subr.mxu0 0.0
    %539 = vmatpush1.msra.mxu0 %v70
    %540 = vmatprep.subr.mxu0 0.0
    %541 = vmatpush1.msra.mxu0 %v71
    %542 = vmatprep.subr.mxu0 0.0
    %543 = vmatpush1.msra.mxu0 %v72
    %544 = vmatprep.subr.mxu0 0.0
    %545 = vmatpush1.msra.mxu0 0.0
    %546 = vmatprep.subr.mxu0 0.0
    %547 = vmatpush1.msra.mxu0 0.0
    %548 = vmatprep.subr.mxu0 0.0
    %549 = vmatpush1.msra.mxu0 0.0
    %550 = vmatprep.subr.mxu0 0.0
    %551 = vmatpush1.msra.mxu0 0.0
    %552 = vmatprep.subr.mxu0 0.0
    %553 = vmatpush1.msra.mxu0 0.0
    %554 = vmatprep.subr.mxu0 0.0
    %555 = vmatpush1.msra.mxu0 0.0
    %556 = vmatprep.subr.mxu0 0.0
    %557 = vmatpush1.msra.mxu0 0.0
    %558 = vmatprep.subr.mxu0 0.0
    %559 = vmatpush1.msra.mxu0 0.0
    %560 = vmatprep.subr.mxu0 0.0
    %561 = vmatpush1.msra.mxu0 0.0
    %562 = vmatprep.subr.mxu0 0.0
    %563 = vmatpush1.msra.mxu0 0.0
    %564 = vmatprep.subr.mxu0 0.0
    %565 = vmatpush1.msra.mxu0 0.0
    %566 = vmatprep.subr.mxu0 0.0
    %567 = vmatpush1.msra.mxu0 0.0
    %568 = vmatprep.subr.mxu0 0.0
    %569 = vmatpush1.msra.mxu0 0.0
    %570 = vmatprep.subr.mxu0 0.0
    %571 = vmatpush1.msra.mxu0 0.0
    %572 = vmatprep.subr.mxu0 0.0
    %573 = vmatpush1.msra.mxu0 0.0
    %574 = vmatprep.subr.mxu0 0.0
    %575 = vmatpush1.msra.mxu0 0.0
    %576 = vmatprep.subr.mxu0 0.0
    %577 = vmatpush1.msra.mxu0 0.0
    %578 = vmatprep.subr.mxu0 0.0
    %579 = vmatpush1.msra.mxu0 0.0
    %580 = vmatprep.subr.mxu0 0.0
    %581 = vmatpush1.msra.mxu0 0.0
    %582 = vmatprep.subr.mxu0 0.0
    %583 = vmatpush1.msra.mxu0 0.0
    %584 = vmatprep.subr.mxu0 0.0
    %585 = vmatpush1.msra.mxu0 0.0
    %586 = vmatprep.subr.mxu0 0.0
    %587 = vmatpush1.msra.mxu0 0.0
    %588 = vmatprep.subr.mxu0 0.0
    %589 = vmatpush1.msra.mxu0 0.0
    %590 = vmatprep.subr.mxu0 0.0
    %591 = vmatpush1.msra.mxu0 0.0
    %592 = vmatprep.subr.mxu0 0.0
    %593 = vmatpush1.msra.mxu0 0.0
    %594 = vmatprep.subr.mxu0 0.0
    %595 = vmatpush1.msra.mxu0 0.0
    %596 = vmatprep.subr.mxu0 0.0
    %597 = vmatpush1.msra.mxu0 0.0
    %598 = vmatprep.subr.mxu0 0.0
    %599 = vmatpush1.msra.mxu0 0.0
    %600 = vmatprep.mubr.f32.mxu0 0.0
    %601 = vmatmul.mubr.f32.gmra.mrb[0].mxu0 %v534
    %v602 = vpop.f32.mrb[0].mxu0
    %v603 = vadd.f32 0.0, %v602
    %v604 = vpop.f32.mrb[0].mxu0
    %605 = vdwg.mxu0
    %v607 = vrot.slane %v603, 4
    %v609 = vadd.f32 %v165, %v607
    %v610 = vxor.u32 %v609, 2147483648
    %v611 = vmul.f32 %v610, 1.442695
    %v612 = vpow.pop %v611
    %v613 = vadd.f32 %v612, 1.0
    %v614 = vrcp.pop %v613
    %v615 = vmul.f32 1.0, %v614
    %v616 = vtanh.pop %v609
    %v618 = vrot.slane %v528, 4
    %v620 = vmul.f32 %v615, %v618
    %622 = vrot.lane.b32.xlu0 %v616, 64
    %v623 = vpop.permute.xlu0 %622
    %v625 = vmul.f32 %v615, %v623
    %627 = vrot.lane.b32.xlu0 %v625, 32
    %v628 = vpop.permute.xlu0 %627
    %v630 = vadd.f32 %v620, %v628
    %v631 = vtanh.pop %v630
    %633 = vrot.lane.b32.xlu0 %v631, 64
    %v634 = vpop.permute.xlu0 %633
    %v636 = vmul.f32 %v615, %v634
    %vm637 = vcmp.gt.s32.totalorder %v62, 3
    %v638 = vsel %vm637, 1, 0
    %639 = vset.pattern.permute.xlu0 0
    %640 = vperm.xlu0 %639, %v638
    %v641 = vpop.permute.xlu0 %640
    %vm642 = vcmp.eq.s32.totalorder %v641, 1
    %v644 = vrot.slane %v636, 4
    %645 = vrot.lane.b32.xlu0 %v644, 32
    %v646 = vpop.permute.xlu0 %645
    %v648 = vsel %vm642, %v646, %v531
    %v650 = vrot.slane %v630, 4
    %651 = vrot.lane.b32.xlu0 %v650, 96
    %v652 = vpop.permute.xlu0 %651
    %654 = vrot.lane.b32.xlu0 %v528, 96
    %v655 = vpop.permute.xlu0 %654
    %v657 = vsel %vm642, %v652, %v655
    %658 = vst.msk [vmem:[#allocation2 + $0xc] sm:$0xf] %vm289, %v648
    %v660 = vsel %vm178, %v648, 0
    %662 = vmatprep.subr.mxu0 0.0
    %663 = vmatpush1.msra.mxu0 %v69
    %664 = vmatprep.subr.mxu0 0.0
    %665 = vmatpush1.msra.mxu0 %v70
    %666 = vmatprep.subr.mxu0 0.0
    %667 = vmatpush1.msra.mxu0 %v71
    %668 = vmatprep.subr.mxu0 0.0
    %669 = vmatpush1.msra.mxu0 %v72
    %670 = vmatprep.subr.mxu0 0.0
    %671 = vmatpush1.msra.mxu0 0.0
    %672 = vmatprep.subr.mxu0 0.0
    %673 = vmatpush1.msra.mxu0 0.0
    %674 = vmatprep.subr.mxu0 0.0
    %675 = vmatpush1.msra.mxu0 0.0
    %676 = vmatprep.subr.mxu0 0.0
    %677 = vmatpush1.msra.mxu0 0.0
    %678 = vmatprep.subr.mxu0 0.0
    %679 = vmatpush1.msra.mxu0 0.0
    %680 = vmatprep.subr.mxu0 0.0
    %681 = vmatpush1.msra.mxu0 0.0
    %682 = vmatprep.subr.mxu0 0.0
    %683 = vmatpush1.msra.mxu0 0.0
    %684 = vmatprep.subr.mxu0 0.0
    %685 = vmatpush1.msra.mxu0 0.0
    %686 = vmatprep.subr.mxu0 0.0
    %687 = vmatpush1.msra.mxu0 0.0
    %688 = vmatprep.subr.mxu0 0.0
    %689 = vmatpush1.msra.mxu0 0.0
    %690 = vmatprep.subr.mxu0 0.0
    %691 = vmatpush1.msra.mxu0 0.0
    %692 = vmatprep.subr.mxu0 0.0
    %693 = vmatpush1.msra.mxu0 0.0
    %694 = vmatprep.subr.mxu0 0.0
    %695 = vmatpush1.msra.mxu0 0.0
    %696 = vmatprep.subr.mxu0 0.0
    %697 = vmatpush1.msra.mxu0 0.0
    %698 = vmatprep.subr.mxu0 0.0
    %699 = vmatpush1.msra.mxu0 0.0
    %700 = vmatprep.subr.mxu0 0.0
    %701 = vmatpush1.msra.mxu0 0.0
    %702 = vmatprep.subr.mxu0 0.0
    %703 = vmatpush1.msra.mxu0 0.0
    %704 = vmatprep.subr.mxu0 0.0
    %705 = vmatpush1.msra.mxu0 0.0
    %706 = vmatprep.subr.mxu0 0.0
    %707 = vmatpush1.msra.mxu0 0.0
    %708 = vmatprep.subr.mxu0 0.0
    %709 = vmatpush1.msra.mxu0 0.0
    %710 = vmatprep.subr.mxu0 0.0
    %711 = vmatpush1.msra.mxu0 0.0
    %712 = vmatprep.subr.mxu0 0.0
    %713 = vmatpush1.msra.mxu0 0.0
    %714 = vmatprep.subr.mxu0 0.0
    %715 = vmatpush1.msra.mxu0 0.0
    %716 = vmatprep.subr.mxu0 0.0
    %717 = vmatpush1.msra.mxu0 0.0
    %718 = vmatprep.subr.mxu0 0.0
    %719 = vmatpush1.msra.mxu0 0.0
    %720 = vmatprep.subr.mxu0 0.0
    %721 = vmatpush1.msra.mxu0 0.0
    %722 = vmatprep.subr.mxu0 0.0
    %723 = vmatpush1.msra.mxu0 0.0
    %724 = vmatprep.subr.mxu0 0.0
    %725 = vmatpush1.msra.mxu0 0.0
    %726 = vmatprep.mubr.f32.mxu0 0.0
    %727 = vmatmul.mubr.f32.gmra.mrb[0].mxu0 %v660
    %v728 = vpop.f32.mrb[0].mxu0
    %v729 = vadd.f32 0.0, %v728
    %v730 = vpop.f32.mrb[0].mxu0
    %731 = vdwg.mxu0
    %v732 = vadd.f32 %v170, %v729
    %v733 = vxor.u32 %v732, 2147483648
    %v734 = vmul.f32 %v733, 1.442695
    %v735 = vpow.pop %v734
    %v736 = vadd.f32 %v735, 1.0
    %v737 = vrcp.pop %v736
    %v738 = vmul.f32 1.0, %v737
    %v739 = vtanh.pop %v732
    %741 = vrot.lane.b32.xlu0 %v657, 32
    %v742 = vpop.permute.xlu0 %741
    %v744 = vmul.f32 %v738, %v742
    %746 = vrot.lane.b32.xlu0 %v739, 64
    %v747 = vpop.permute.xlu0 %746
    %v749 = vmul.f32 %v738, %v747
    %751 = vrot.lane.b32.xlu0 %v749, 32
    %v752 = vpop.permute.xlu0 %751
    %v754 = vadd.f32 %v744, %v752
    %v755 = vtanh.pop %v754
    %757 = vrot.lane.b32.xlu0 %v755, 64
    %v758 = vpop.permute.xlu0 %757
    %v760 = vmul.f32 %v738, %v758
    %vm761 = vcmp.gt.s32.totalorder %v62, 4
    %v762 = vsel %vm761, 1, 0
    %763 = vset.pattern.permute.xlu0 0
    %764 = vperm.xlu0 %763, %v762
    %v765 = vpop.permute.xlu0 %764
    %vm766 = vcmp.eq.s32.totalorder %v765, 1
    %767 = vrot.lane.b32.xlu0 %v648, 96
    %v768 = vpop.permute.xlu0 %767
    %v770 = vsel %vm766, %v760, %v768
    %v771 = vsel %vm766, %v754, %v742
    %773 = vrot.lane.b32.xlu0 %v770, 32
    %v774 = vpop.permute.xlu0 %773
    %776 = vst.msk [vmem:[#allocation2 + $0x10] sm:$0xf] %vm289, %v774
    %v777 = vsel %vm178, %v774, 0
    %779 = vmatprep.subr.mxu0 0.0
    %780 = vmatpush1.msra.mxu0 %v69
    %781 = vmatprep.subr.mxu0 0.0
    %782 = vmatpush1.msra.mxu0 %v70
    %783 = vmatprep.subr.mxu0 0.0
    %784 = vmatpush1.msra.mxu0 %v71
    %785 = vmatprep.subr.mxu0 0.0
    %786 = vmatpush1.msra.mxu0 %v72
    %787 = vmatprep.subr.mxu0 0.0
    %788 = vmatpush1.msra.mxu0 0.0
    %789 = vmatprep.subr.mxu0 0.0
    %790 = vmatpush1.msra.mxu0 0.0
    %791 = vmatprep.subr.mxu0 0.0
    %792 = vmatpush1.msra.mxu0 0.0
    %793 = vmatprep.subr.mxu0 0.0
    %794 = vmatpush1.msra.mxu0 0.0
    %795 = vmatprep.subr.mxu0 0.0
    %796 = vmatpush1.msra.mxu0 0.0
    %797 = vmatprep.subr.mxu0 0.0
    %798 = vmatpush1.msra.mxu0 0.0
    %799 = vmatprep.subr.mxu0 0.0
    %800 = vmatpush1.msra.mxu0 0.0
    %801 = vmatprep.subr.mxu0 0.0
    %802 = vmatpush1.msra.mxu0 0.0
    %803 = vmatprep.subr.mxu0 0.0
    %804 = vmatpush1.msra.mxu0 0.0
    %805 = vmatprep.subr.mxu0 0.0
    %806 = vmatpush1.msra.mxu0 0.0
    %807 = vmatprep.subr.mxu0 0.0
    %808 = vmatpush1.msra.mxu0 0.0
    %809 = vmatprep.subr.mxu0 0.0
    %810 = vmatpush1.msra.mxu0 0.0
    %811 = vmatprep.subr.mxu0 0.0
    %812 = vmatpush1.msra.mxu0 0.0
    %813 = vmatprep.subr.mxu0 0.0
    %814 = vmatpush1.msra.mxu0 0.0
    %815 = vmatprep.subr.mxu0 0.0
    %816 = vmatpush1.msra.mxu0 0.0
    %817 = vmatprep.subr.mxu0 0.0
    %818 = vmatpush1.msra.mxu0 0.0
    %819 = vmatprep.subr.mxu0 0.0
    %820 = vmatpush1.msra.mxu0 0.0
    %821 = vmatprep.subr.mxu0 0.0
    %822 = vmatpush1.msra.mxu0 0.0
    %823 = vmatprep.subr.mxu0 0.0
    %824 = vmatpush1.msra.mxu0 0.0
    %825 = vmatprep.subr.mxu0 0.0
    %826 = vmatpush1.msra.mxu0 0.0
    %827 = vmatprep.subr.mxu0 0.0
    %828 = vmatpush1.msra.mxu0 0.0
    %829 = vmatprep.subr.mxu0 0.0
    %830 = vmatpush1.msra.mxu0 0.0
    %831 = vmatprep.subr.mxu0 0.0
    %832 = vmatpush1.msra.mxu0 0.0
    %833 = vmatprep.subr.mxu0 0.0
    %834 = vmatpush1.msra.mxu0 0.0
    %835 = vmatprep.subr.mxu0 0.0
    %836 = vmatpush1.msra.mxu0 0.0
    %837 = vmatprep.subr.mxu0 0.0
    %838 = vmatpush1.msra.mxu0 0.0
    %839 = vmatprep.subr.mxu0 0.0
    %840 = vmatpush1.msra.mxu0 0.0
    %841 = vmatprep.subr.mxu0 0.0
    %842 = vmatpush1.msra.mxu0 0.0
    %843 = vmatprep.mubr.f32.mxu0 0.0
    %844 = vmatmul.mubr.f32.gmra.mrb[0].mxu0 %v777
    %v845 = vpop.f32.mrb[0].mxu0
    %v846 = vadd.f32 0.0, %v845
    %v847 = vpop.f32.mrb[0].mxu0
    %848 = vdwg.mxu0
    %v850 = vrot.slane %v846, 4
    %v852 = vadd.f32 %v170, %v850
    %v853 = vxor.u32 %v852, 2147483648
    %v854 = vmul.f32 %v853, 1.442695
    %v855 = vpow.pop %v854
    %v856 = vadd.f32 %v855, 1.0
    %v857 = vrcp.pop %v856
    %v858 = vmul.f32 1.0, %v857
    %v859 = vtanh.pop %v852
    %v861 = vrot.slane %v771, 4
    %v863 = vmul.f32 %v858, %v861
    %865 = vrot.lane.b32.xlu0 %v859, 64
    %v866 = vpop.permute.xlu0 %865
    %v868 = vmul.f32 %v858, %v866
    %870 = vrot.lane.b32.xlu0 %v868, 32
    %v871 = vpop.permute.xlu0 %870
    %v873 = vadd.f32 %v863, %v871
    %v874 = vtanh.pop %v873
    %876 = vrot.lane.b32.xlu0 %v874, 64
    %v877 = vpop.permute.xlu0 %876
    %v879 = vmul.f32 %v858, %v877
    %vm880 = vcmp.gt.s32.totalorder %v62, 5
    %v881 = vsel %vm880, 1, 0
    %882 = vset.pattern.permute.xlu0 0
    %883 = vperm.xlu0 %882, %v881
    %v884 = vpop.permute.xlu0 %883
    %vm885 = vcmp.eq.s32.totalorder %v884, 1
    %v887 = vrot.slane %v879, 4
    %888 = vrot.lane.b32.xlu0 %v887, 32
    %v889 = vpop.permute.xlu0 %888
    %v891 = vsel %vm885, %v889, %v774
    %v893 = vrot.slane %v873, 4
    %894 = vrot.lane.b32.xlu0 %v893, 96
    %v895 = vpop.permute.xlu0 %894
    %897 = vrot.lane.b32.xlu0 %v771, 96
    %v898 = vpop.permute.xlu0 %897
    %v900 = vsel %vm885, %v895, %v898
    %901 = vst.msk [vmem:[#allocation2 + $0x14] sm:$0xf] %vm289, %v891
    %v903 = vsel %vm178, %v891, 0
    %905 = vmatprep.subr.mxu0 0.0
    %906 = vmatpush1.msra.mxu0 %v69
    %907 = vmatprep.subr.mxu0 0.0
    %908 = vmatpush1.msra.mxu0 %v70
    %909 = vmatprep.subr.mxu0 0.0
    %910 = vmatpush1.msra.mxu0 %v71
    %911 = vmatprep.subr.mxu0 0.0
    %912 = vmatpush1.msra.mxu0 %v72
    %913 = vmatprep.subr.mxu0 0.0
    %914 = vmatpush1.msra.mxu0 0.0
    %915 = vmatprep.subr.mxu0 0.0
    %916 = vmatpush1.msra.mxu0 0.0
    %917 = vmatprep.subr.mxu0 0.0
    %918 = vmatpush1.msra.mxu0 0.0
    %919 = vmatprep.subr.mxu0 0.0
    %920 = vmatpush1.msra.mxu0 0.0
    %921 = vmatprep.subr.mxu0 0.0
    %922 = vmatpush1.msra.mxu0 0.0
    %923 = vmatprep.subr.mxu0 0.0
    %924 = vmatpush1.msra.mxu0 0.0
    %925 = vmatprep.subr.mxu0 0.0
    %926 = vmatpush1.msra.mxu0 0.0
    %927 = vmatprep.subr.mxu0 0.0
    %928 = vmatpush1.msra.mxu0 0.0
    %929 = vmatprep.subr.mxu0 0.0
    %930 = vmatpush1.msra.mxu0 0.0
    %931 = vmatprep.subr.mxu0 0.0
    %932 = vmatpush1.msra.mxu0 0.0
    %933 = vmatprep.subr.mxu0 0.0
    %934 = vmatpush1.msra.mxu0 0.0
    %935 = vmatprep.subr.mxu0 0.0
    %936 = vmatpush1.msra.mxu0 0.0
    %937 = vmatprep.subr.mxu0 0.0
    %938 = vmatpush1.msra.mxu0 0.0
    %939 = vmatprep.subr.mxu0 0.0
    %940 = vmatpush1.msra.mxu0 0.0
    %941 = vmatprep.subr.mxu0 0.0
    %942 = vmatpush1.msra.mxu0 0.0
    %943 = vmatprep.subr.mxu0 0.0
    %944 = vmatpush1.msra.mxu0 0.0
    %945 = vmatprep.subr.mxu0 0.0
    %946 = vmatpush1.msra.mxu0 0.0
    %947 = vmatprep.subr.mxu0 0.0
    %948 = vmatpush1.msra.mxu0 0.0
    %949 = vmatprep.subr.mxu0 0.0
    %950 = vmatpush1.msra.mxu0 0.0
    %951 = vmatprep.subr.mxu0 0.0
    %952 = vmatpush1.msra.mxu0 0.0
    %953 = vmatprep.subr.mxu0 0.0
    %954 = vmatpush1.msra.mxu0 0.0
    %955 = vmatprep.subr.mxu0 0.0
    %956 = vmatpush1.msra.mxu0 0.0
    %957 = vmatprep.subr.mxu0 0.0
    %958 = vmatpush1.msra.mxu0 0.0
    %959 = vmatprep.subr.mxu0 0.0
    %960 = vmatpush1.msra.mxu0 0.0
    %961 = vmatprep.subr.mxu0 0.0
    %962 = vmatpush1.msra.mxu0 0.0
    %963 = vmatprep.subr.mxu0 0.0
    %964 = vmatpush1.msra.mxu0 0.0
    %965 = vmatprep.subr.mxu0 0.0
    %966 = vmatpush1.msra.mxu0 0.0
    %967 = vmatprep.subr.mxu0 0.0
    %968 = vmatpush1.msra.mxu0 0.0
    %969 = vmatprep.mubr.f32.mxu0 0.0
    %970 = vmatmul.mubr.f32.gmra.mrb[0].mxu0 %v903
    %v971 = vpop.f32.mrb[0].mxu0
    %v972 = vadd.f32 0.0, %v971
    %v973 = vpop.f32.mrb[0].mxu0
    %974 = vdwg.mxu0
    %v975 = vadd.f32 %v175, %v972
    %v976 = vxor.u32 %v975, 2147483648
    %v977 = vmul.f32 %v976, 1.442695
    %v978 = vpow.pop %v977
    %v979 = vadd.f32 %v978, 1.0
    %v980 = vrcp.pop %v979
    %v981 = vmul.f32 1.0, %v980
    %v982 = vtanh.pop %v975
    %984 = vrot.lane.b32.xlu0 %v900, 32
    %v985 = vpop.permute.xlu0 %984
    %v987 = vmul.f32 %v981, %v985
    %989 = vrot.lane.b32.xlu0 %v982, 64
    %v990 = vpop.permute.xlu0 %989
    %v992 = vmul.f32 %v981, %v990
    %994 = vrot.lane.b32.xlu0 %v992, 32
    %v995 = vpop.permute.xlu0 %994
    %v997 = vadd.f32 %v987, %v995
    %v998 = vtanh.pop %v997
    %1000 = vrot.lane.b32.xlu0 %v998, 64
    %v1001 = vpop.permute.xlu0 %1000
    %v1003 = vmul.f32 %v981, %v1001
    %vm1004 = vcmp.gt.s32.totalorder %v62, 6
    %v1005 = vsel %vm1004, 1, 0
    %1006 = vset.pattern.permute.xlu0 0
    %1007 = vperm.xlu0 %1006, %v1005
    %v1008 = vpop.permute.xlu0 %1007
    %vm1009 = vcmp.eq.s32.totalorder %v1008, 1
    %1010 = vrot.lane.b32.xlu0 %v891, 96
    %v1011 = vpop.permute.xlu0 %1010
    %v1013 = vsel %vm1009, %v1003, %v1011
    %v1014 = vsel %vm1009, %v997, %v985
    %1016 = vrot.lane.b32.xlu0 %v1013, 32
    %v1017 = vpop.permute.xlu0 %1016
    %1019 = vst.msk [vmem:[#allocation2 + $0x18] sm:$0xf] %vm289, %v1017
    %v1020 = vsel %vm178, %v1017, 0
    %1022 = vmatprep.subr.mxu0 0.0
    %1023 = vmatpush1.msra.mxu0 %v69
    %1024 = vmatprep.subr.mxu0 0.0
    %1025 = vmatpush1.msra.mxu0 %v70
    %1026 = vmatprep.subr.mxu0 0.0
    %1027 = vmatpush1.msra.mxu0 %v71
    %1028 = vmatprep.subr.mxu0 0.0
    %1029 = vmatpush1.msra.mxu0 %v72
    %1030 = vmatprep.subr.mxu0 0.0
    %1031 = vmatpush1.msra.mxu0 0.0
    %1032 = vmatprep.subr.mxu0 0.0
    %1033 = vmatpush1.msra.mxu0 0.0
    %1034 = vmatprep.subr.mxu0 0.0
    %1035 = vmatpush1.msra.mxu0 0.0
    %1036 = vmatprep.subr.mxu0 0.0
    %1037 = vmatpush1.msra.mxu0 0.0
    %1038 = vmatprep.subr.mxu0 0.0
    %1039 = vmatpush1.msra.mxu0 0.0
    %1040 = vmatprep.subr.mxu0 0.0
    %1041 = vmatpush1.msra.mxu0 0.0
    %1042 = vmatprep.subr.mxu0 0.0
    %1043 = vmatpush1.msra.mxu0 0.0
    %1044 = vmatprep.subr.mxu0 0.0
    %1045 = vmatpush1.msra.mxu0 0.0
    %1046 = vmatprep.subr.mxu0 0.0
    %1047 = vmatpush1.msra.mxu0 0.0
    %1048 = vmatprep.subr.mxu0 0.0
    %1049 = vmatpush1.msra.mxu0 0.0
    %1050 = vmatprep.subr.mxu0 0.0
    %1051 = vmatpush1.msra.mxu0 0.0
    %1052 = vmatprep.subr.mxu0 0.0
    %1053 = vmatpush1.msra.mxu0 0.0
    %1054 = vmatprep.subr.mxu0 0.0
    %1055 = vmatpush1.msra.mxu0 0.0
    %1056 = vmatprep.subr.mxu0 0.0
    %1057 = vmatpush1.msra.mxu0 0.0
    %1058 = vmatprep.subr.mxu0 0.0
    %1059 = vmatpush1.msra.mxu0 0.0
    %1060 = vmatprep.subr.mxu0 0.0
    %1061 = vmatpush1.msra.mxu0 0.0
    %1062 = vmatprep.subr.mxu0 0.0
    %1063 = vmatpush1.msra.mxu0 0.0
    %1064 = vmatprep.subr.mxu0 0.0
    %1065 = vmatpush1.msra.mxu0 0.0
    %1066 = vmatprep.subr.mxu0 0.0
    %1067 = vmatpush1.msra.mxu0 0.0
    %1068 = vmatprep.subr.mxu0 0.0
    %1069 = vmatpush1.msra.mxu0 0.0
    %1070 = vmatprep.subr.mxu0 0.0
    %1071 = vmatpush1.msra.mxu0 0.0
    %1072 = vmatprep.subr.mxu0 0.0
    %1073 = vmatpush1.msra.mxu0 0.0
    %1074 = vmatprep.subr.mxu0 0.0
    %1075 = vmatpush1.msra.mxu0 0.0
    %1076 = vmatprep.subr.mxu0 0.0
    %1077 = vmatpush1.msra.mxu0 0.0
    %1078 = vmatprep.subr.mxu0 0.0
    %1079 = vmatpush1.msra.mxu0 0.0
    %1080 = vmatprep.subr.mxu0 0.0
    %1081 = vmatpush1.msra.mxu0 0.0
    %1082 = vmatprep.subr.mxu0 0.0
    %1083 = vmatpush1.msra.mxu0 0.0
    %1084 = vmatprep.subr.mxu0 0.0
    %1085 = vmatpush1.msra.mxu0 0.0
    %1086 = vmatprep.mubr.f32.mxu0 0.0
    %1087 = vmatmul.mubr.f32.gmra.mrb[0].mxu0 %v1020
    %v1088 = vpop.f32.mrb[0].mxu0
    %v1089 = vadd.f32 0.0, %v1088
    %v1090 = vpop.f32.mrb[0].mxu0
    %1091 = vdwg.mxu0
    %v1093 = vrot.slane %v1089, 4
    %v1095 = vadd.f32 %v175, %v1093
    %v1096 = vxor.u32 %v1095, 2147483648
    %v1097 = vmul.f32 %v1096, 1.442695
    %v1098 = vpow.pop %v1097
    %v1099 = vadd.f32 %v1098, 1.0
    %v1100 = vrcp.pop %v1099
    %v1101 = vmul.f32 1.0, %v1100
    %v1102 = vtanh.pop %v1095
    %v1104 = vrot.slane %v1014, 4
    %v1106 = vmul.f32 %v1101, %v1104
    %1108 = vrot.lane.b32.xlu0 %v1102, 64
    %v1109 = vpop.permute.xlu0 %1108
    %v1111 = vmul.f32 %v1101, %v1109
    %1113 = vrot.lane.b32.xlu0 %v1111, 32
    %v1114 = vpop.permute.xlu0 %1113
    %v1116 = vadd.f32 %v1106, %v1114
    %v1117 = vtanh.pop %v1116
    %1119 = vrot.lane.b32.xlu0 %v1117, 64
    %v1120 = vpop.permute.xlu0 %1119
    %v1122 = vmul.f32 %v1101, %v1120
    %vm1123 = vcmp.gt.s32.totalorder %v62, 7
    %v1124 = vsel %vm1123, 1, 0
    %1125 = vset.pattern.permute.xlu0 0
    %1126 = vperm.xlu0 %1125, %v1124
    %v1127 = vpop.permute.xlu0 %1126
    %vm1128 = vcmp.eq.s32.totalorder %v1127, 1
    %v1130 = vrot.slane %v1122, 4
    %1131 = vrot.lane.b32.xlu0 %v1130, 32
    %v1132 = vpop.permute.xlu0 %1131
    %v1134 = vsel %vm1128, %v1132, %v1017
    %1135 = vst.msk [vmem:[#allocation2 + $0x1c] sm:$0xf] %vm289, %v1134
    %v1136 = vld [vmem:[#allocation2] sm:$0xff]
    %v1137 = vld [vmem:[#allocation2 + $0x8] sm:$0xff]
    %v1138 = vld [vmem:[#allocation2 + $0x10] sm:$0xff]
    %v1139 = vld [vmem:[#allocation2 + $0x18] sm:$0xff]
    %v1140 = vld [vmem:[%s5] sm:$0xff]
    %v1141 = vld [vmem:[%s5 + $0x8] sm:$0xff]
    %v1142 = vld [vmem:[%s5 + $0x10] sm:$0xff]
    %v1143 = vld [vmem:[%s5 + $0x18] sm:$0xff]
    %v1144 = vld [vmem:[%s6] sm:$0xff]
    %v1145 = vld [vmem:[%s6 + $0x8] sm:$0xff]
    %v1146 = vld [vmem:[%s6 + $0x10] sm:$0xff]
    %v1147 = vld [vmem:[%s6 + $0x18] sm:$0xff]
    %v1148 = vld [vmem:[%s7] sm:$0x1]
    %v1150 = vlaneseq
    %v1151 = vshrl.u32 %v1150, 7
    %v1152 = vsub.s32 0, %v1151
    %v1153 = vrot.slane %v1148, %v1152
    %v1156 = vsel %vm178, %v1136, 0
    %v1159 = vsel %vm178, %v1137, 0
    %v1162 = vsel %vm178, %v1138, 0
    %v1165 = vsel %vm178, %v1139, 0
    %1167 = vmatprep.subr.mxu0 0.0
    %1168 = vmatpush1.msra.mxu0 %v1140
    %1169 = vmatprep.subr.mxu0 0.0
    %1170 = vmatpush1.msra.mxu0 %v1141
    %1171 = vmatprep.subr.mxu0 0.0
    %1172 = vmatpush1.msra.mxu0 %v1142
    %1173 = vmatprep.subr.mxu0 0.0
    %1174 = vmatpush1.msra.mxu0 %v1143
    %1175 = vmatprep.subr.mxu0 0.0
    %1176 = vmatpush1.msra.mxu0 0.0
    %1177 = vmatprep.subr.mxu0 0.0
    %1178 = vmatpush1.msra.mxu0 0.0
    %1179 = vmatprep.subr.mxu0 0.0
    %1180 = vmatpush1.msra.mxu0 0.0
    %1181 = vmatprep.subr.mxu0 0.0
    %1182 = vmatpush1.msra.mxu0 0.0
    %1183 = vmatprep.subr.mxu0 0.0
    %1184 = vmatpush1.msra.mxu0 0.0
    %1185 = vmatprep.subr.mxu0 0.0
    %1186 = vmatpush1.msra.mxu0 0.0
    %1187 = vmatprep.subr.mxu0 0.0
    %1188 = vmatpush1.msra.mxu0 0.0
    %1189 = vmatprep.subr.mxu0 0.0
    %1190 = vmatpush1.msra.mxu0 0.0
    %1191 = vmatprep.subr.mxu0 0.0
    %1192 = vmatpush1.msra.mxu0 0.0
    %1193 = vmatprep.subr.mxu0 0.0
    %1194 = vmatpush1.msra.mxu0 0.0
    %1195 = vmatprep.subr.mxu0 0.0
    %1196 = vmatpush1.msra.mxu0 0.0
    %1197 = vmatprep.subr.mxu0 0.0
    %1198 = vmatpush1.msra.mxu0 0.0
    %1199 = vmatprep.subr.mxu0 0.0
    %1200 = vmatpush1.msra.mxu0 0.0
    %1201 = vmatprep.subr.mxu0 0.0
    %1202 = vmatpush1.msra.mxu0 0.0
    %1203 = vmatprep.subr.mxu0 0.0
    %1204 = vmatpush1.msra.mxu0 0.0
    %1205 = vmatprep.subr.mxu0 0.0
    %1206 = vmatpush1.msra.mxu0 0.0
    %1207 = vmatprep.subr.mxu0 0.0
    %1208 = vmatpush1.msra.mxu0 0.0
    %1209 = vmatprep.subr.mxu0 0.0
    %1210 = vmatpush1.msra.mxu0 0.0
    %1211 = vmatprep.subr.mxu0 0.0
    %1212 = vmatpush1.msra.mxu0 0.0
    %1213 = vmatprep.subr.mxu0 0.0
    %1214 = vmatpush1.msra.mxu0 0.0
    %1215 = vmatprep.subr.mxu0 0.0
    %1216 = vmatpush1.msra.mxu0 0.0
    %1217 = vmatprep.subr.mxu0 0.0
    %1218 = vmatpush1.msra.mxu0 0.0
    %1219 = vmatprep.subr.mxu0 0.0
    %1220 = vmatpush1.msra.mxu0 0.0
    %1221 = vmatprep.subr.mxu0 0.0
    %1222 = vmatpush1.msra.mxu0 0.0
    %1223 = vmatprep.subr.mxu0 0.0
    %1224 = vmatpush1.msra.mxu0 0.0
    %1225 = vmatprep.subr.mxu0 0.0
    %1226 = vmatpush1.msra.mxu0 0.0
    %1227 = vmatprep.subr.mxu0 0.0
    %1228 = vmatpush1.msra.mxu0 0.0
    %1229 = vmatprep.subr.mxu0 0.0
    %1230 = vmatpush1.msra.mxu0 0.0
    %1231 = vmatprep.mubr.f32.mxu0 0.0
    %1232 = vmatmul.mubr.f32.gmra.mrb[0].mxu0 %v1156
    %v1233 = vpop.f32.mrb[0].mxu0
    %v1234 = vadd.f32 %v1153, %v1233
    %v1235 = vpop.f32.mrb[0].mxu0
    %1236 = vmatprep.mubr.f32.mxu0 0.0
    %1237 = vmatmul.mubr.f32.gmra.mrb[0].mxu0 %v1159
    %v1238 = vpop.f32.mrb[0].mxu0
    %v1239 = vadd.f32 %v1153, %v1238
    %v1240 = vpop.f32.mrb[0].mxu0
    %1241 = vmatprep.mubr.f32.mxu0 0.0
    %1242 = vmatmul.mubr.f32.gmra.mrb[0].mxu0 %v1162
    %v1243 = vpop.f32.mrb[0].mxu0
    %v1244 = vadd.f32 %v1153, %v1243
    %v1245 = vpop.f32.mrb[0].mxu0
    %1246 = vmatprep.mubr.f32.mxu0 0.0
    %1247 = vmatmul.mubr.f32.gmra.mrb[0].mxu0 %v1165
    %v1248 = vpop.f32.mrb[0].mxu0
    %v1249 = vadd.f32 %v1153, %v1248
    %v1250 = vpop.f32.mrb[0].mxu0
    %1251 = vdwg.mxu0
    %1252 = vmatprep.subr.mxu0 0.0
    %1253 = vmatpush1.msra.mxu0 %v1144
    %1254 = vmatprep.subr.mxu0 0.0
    %1255 = vmatpush1.msra.mxu0 %v1145
    %1256 = vmatprep.subr.mxu0 0.0
    %1257 = vmatpush1.msra.mxu0 %v1146
    %1258 = vmatprep.subr.mxu0 0.0
    %1259 = vmatpush1.msra.mxu0 %v1147
    %1260 = vmatprep.subr.mxu0 0.0
    %1261 = vmatpush1.msra.mxu0 0.0
    %1262 = vmatprep.subr.mxu0 0.0
    %1263 = vmatpush1.msra.mxu0 0.0
    %1264 = vmatprep.subr.mxu0 0.0
    %1265 = vmatpush1.msra.mxu0 0.0
    %1266 = vmatprep.subr.mxu0 0.0
    %1267 = vmatpush1.msra.mxu0 0.0
    %1268 = vmatprep.subr.mxu0 0.0
    %1269 = vmatpush1.msra.mxu0 0.0
    %1270 = vmatprep.subr.mxu0 0.0
    %1271 = vmatpush1.msra.mxu0 0.0
    %1272 = vmatprep.subr.mxu0 0.0
    %1273 = vmatpush1.msra.mxu0 0.0
    %1274 = vmatprep.subr.mxu0 0.0
    %1275 = vmatpush1.msra.mxu0 0.0
    %1276 = vmatprep.subr.mxu0 0.0
    %1277 = vmatpush1.msra.mxu0 0.0
    %1278 = vmatprep.subr.mxu0 0.0
    %1279 = vmatpush1.msra.mxu0 0.0
    %1280 = vmatprep.subr.mxu0 0.0
    %1281 = vmatpush1.msra.mxu0 0.0
    %1282 = vmatprep.subr.mxu0 0.0
    %1283 = vmatpush1.msra.mxu0 0.0
    %1284 = vmatprep.subr.mxu0 0.0
    %1285 = vmatpush1.msra.mxu0 0.0
    %1286 = vmatprep.subr.mxu0 0.0
    %1287 = vmatpush1.msra.mxu0 0.0
    %1288 = vmatprep.subr.mxu0 0.0
    %1289 = vmatpush1.msra.mxu0 0.0
    %1290 = vmatprep.subr.mxu0 0.0
    %1291 = vmatpush1.msra.mxu0 0.0
    %1292 = vmatprep.subr.mxu0 0.0
    %1293 = vmatpush1.msra.mxu0 0.0
    %1294 = vmatprep.subr.mxu0 0.0
    %1295 = vmatpush1.msra.mxu0 0.0
    %1296 = vmatprep.subr.mxu0 0.0
    %1297 = vmatpush1.msra.mxu0 0.0
    %1298 = vmatprep.subr.mxu0 0.0
    %1299 = vmatpush1.msra.mxu0 0.0
    %1300 = vmatprep.subr.mxu0 0.0
    %1301 = vmatpush1.msra.mxu0 0.0
    %1302 = vmatprep.subr.mxu0 0.0
    %1303 = vmatpush1.msra.mxu0 0.0
    %1304 = vmatprep.subr.mxu0 0.0
    %1305 = vmatpush1.msra.mxu0 0.0
    %1306 = vmatprep.subr.mxu0 0.0
    %1307 = vmatpush1.msra.mxu0 0.0
    %1308 = vmatprep.subr.mxu0 0.0
    %1309 = vmatpush1.msra.mxu0 0.0
    %1310 = vmatprep.subr.mxu0 0.0
    %1311 = vmatpush1.msra.mxu0 0.0
    %1312 = vmatprep.subr.mxu0 0.0
    %1313 = vmatpush1.msra.mxu0 0.0
    %1314 = vmatprep.subr.mxu0 0.0
    %1315 = vmatpush1.msra.mxu0 0.0
    %1316 = vmatprep.mubr.f32.mxu0 0.0
    %1317 = vmatmul.mubr.f32.gmra.mrb[0].mxu0 %v180
    %v1318 = vpop.f32.mrb[0].mxu0
    %v1319 = vadd.f32 0.0, %v1318
    %v1320 = vpop.f32.mrb[0].mxu0
    %1321 = vdwg.mxu0
    %v1322 = vadd.f32 %v1234, %v1319
    %v1323 = vxor.u32 %v1322, 2147483648
    %v1324 = vmul.f32 %v1323, 1.442695
    %v1325 = vpow.pop %v1324
    %v1326 = vadd.f32 %v1325, 1.0
    %v1327 = vrcp.pop %v1326
    %v1328 = vmul.f32 1.0, %v1327
    %v1329 = vtanh.pop %v1322
    %v1330 = vmul.f32 %v1328, 0.0
    %1332 = vrot.lane.b32.xlu0 %v1329, 64
    %v1333 = vpop.permute.xlu0 %1332
    %v1335 = vmul.f32 %v1328, %v1333
    %1337 = vrot.lane.b32.xlu0 %v1335, 32
    %v1338 = vpop.permute.xlu0 %1337
    %v1340 = vadd.f32 %v1330, %v1338
    %v1341 = vtanh.pop %v1340
    %1343 = vrot.lane.b32.xlu0 %v1341, 64
    %v1344 = vpop.permute.xlu0 %1343
    %v1346 = vmul.f32 %v1328, %v1344
    %v1347 = vsel %vm282, %v1346, 0.0
    %v1348 = vsel %vm282, %v1340, 0.0
    %1350 = vrot.lane.b32.xlu0 %v1347, 32
    %v1351 = vpop.permute.xlu0 %1350
    %v1352 = vsel %vm178, %v1351, 0
    %1354 = vmatprep.subr.mxu0 0.0
    %1355 = vmatpush1.msra.mxu0 %v1144
    %1356 = vmatprep.subr.mxu0 0.0
    %1357 = vmatpush1.msra.mxu0 %v1145
    %1358 = vmatprep.subr.mxu0 0.0
    %1359 = vmatpush1.msra.mxu0 %v1146
    %1360 = vmatprep.subr.mxu0 0.0
    %1361 = vmatpush1.msra.mxu0 %v1147
    %1362 = vmatprep.subr.mxu0 0.0
    %1363 = vmatpush1.msra.mxu0 0.0
    %1364 = vmatprep.subr.mxu0 0.0
    %1365 = vmatpush1.msra.mxu0 0.0
    %1366 = vmatprep.subr.mxu0 0.0
    %1367 = vmatpush1.msra.mxu0 0.0
    %1368 = vmatprep.subr.mxu0 0.0
    %1369 = vmatpush1.msra.mxu0 0.0
    %1370 = vmatprep.subr.mxu0 0.0
    %1371 = vmatpush1.msra.mxu0 0.0
    %1372 = vmatprep.subr.mxu0 0.0
    %1373 = vmatpush1.msra.mxu0 0.0
    %1374 = vmatprep.subr.mxu0 0.0
    %1375 = vmatpush1.msra.mxu0 0.0
    %1376 = vmatprep.subr.mxu0 0.0
    %1377 = vmatpush1.msra.mxu0 0.0
    %1378 = vmatprep.subr.mxu0 0.0
    %1379 = vmatpush1.msra.mxu0 0.0
    %1380 = vmatprep.subr.mxu0 0.0
    %1381 = vmatpush1.msra.mxu0 0.0
    %1382 = vmatprep.subr.mxu0 0.0
    %1383 = vmatpush1.msra.mxu0 0.0
    %1384 = vmatprep.subr.mxu0 0.0
    %1385 = vmatpush1.msra.mxu0 0.0
    %1386 = vmatprep.subr.mxu0 0.0
    %1387 = vmatpush1.msra.mxu0 0.0
    %1388 = vmatprep.subr.mxu0 0.0
    %1389 = vmatpush1.msra.mxu0 0.0
    %1390 = vmatprep.subr.mxu0 0.0
    %1391 = vmatpush1.msra.mxu0 0.0
    %1392 = vmatprep.subr.mxu0 0.0
    %1393 = vmatpush1.msra.mxu0 0.0
    %1394 = vmatprep.subr.mxu0 0.0
    %1395 = vmatpush1.msra.mxu0 0.0
    %1396 = vmatprep.subr.mxu0 0.0
    %1397 = vmatpush1.msra.mxu0 0.0
    %1398 = vmatprep.subr.mxu0 0.0
    %1399 = vmatpush1.msra.mxu0 0.0
    %1400 = vmatprep.subr.mxu0 0.0
    %1401 = vmatpush1.msra.mxu0 0.0
    %1402 = vmatprep.subr.mxu0 0.0
    %1403 = vmatpush1.msra.mxu0 0.0
    %1404 = vmatprep.subr.mxu0 0.0
    %1405 = vmatpush1.msra.mxu0 0.0
    %1406 = vmatprep.subr.mxu0 0.0
    %1407 = vmatpush1.msra.mxu0 0.0
    %1408 = vmatprep.subr.mxu0 0.0
    %1409 = vmatpush1.msra.mxu0 0.0
    %1410 = vmatprep.subr.mxu0 0.0
    %1411 = vmatpush1.msra.mxu0 0.0
    %1412 = vmatprep.subr.mxu0 0.0
    %1413 = vmatpush1.msra.mxu0 0.0
    %1414 = vmatprep.subr.mxu0 0.0
    %1415 = vmatpush1.msra.mxu0 0.0
    %1416 = vmatprep.subr.mxu0 0.0
    %1417 = vmatpush1.msra.mxu0 0.0
    %1418 = vmatprep.mubr.f32.mxu0 0.0
    %1419 = vmatmul.mubr.f32.gmra.mrb[0].mxu0 %v1352
    %v1420 = vpop.f32.mrb[0].mxu0
    %v1421 = vadd.f32 0.0, %v1420
    %v1422 = vpop.f32.mrb[0].mxu0
    %1423 = vdwg.mxu0
    %v1425 = vrot.slane %v1421, 4
    %v1427 = vadd.f32 %v1234, %v1425
    %v1428 = vxor.u32 %v1427, 2147483648
    %v1429 = vmul.f32 %v1428, 1.442695
    %v1430 = vpow.pop %v1429
    %v1431 = vadd.f32 %v1430, 1.0
    %v1432 = vrcp.pop %v1431
    %v1433 = vmul.f32 1.0, %v1432
    %v1434 = vtanh.pop %v1427
    %v1436 = vrot.slane %v1348, 4
    %v1438 = vmul.f32 %v1433, %v1436
    %1440 = vrot.lane.b32.xlu0 %v1434, 64
    %v1441 = vpop.permute.xlu0 %1440
    %v1443 = vmul.f32 %v1433, %v1441
    %1445 = vrot.lane.b32.xlu0 %v1443, 32
    %v1446 = vpop.permute.xlu0 %1445
    %v1448 = vadd.f32 %v1438, %v1446
    %v1449 = vtanh.pop %v1448
    %1451 = vrot.lane.b32.xlu0 %v1449, 64
    %v1452 = vpop.permute.xlu0 %1451
    %v1454 = vmul.f32 %v1433, %v1452
    %v1456 = vrot.slane %v1454, 4
    %1457 = vrot.lane.b32.xlu0 %v1456, 32
    %v1458 = vpop.permute.xlu0 %1457
    %v1461 = vsel %vm399, %v1458, %v1351
    %v1463 = vrot.slane %v1448, 4
    %1464 = vrot.lane.b32.xlu0 %v1463, 96
    %v1465 = vpop.permute.xlu0 %1464
    %1467 = vrot.lane.b32.xlu0 %v1348, 96
    %v1468 = vpop.permute.xlu0 %1467
    %v1470 = vsel %vm399, %v1465, %v1468
    %v1472 = vsel %vm178, %v1461, 0
    %1474 = vmatprep.subr.mxu0 0.0
    %1475 = vmatpush1.msra.mxu0 %v1144
    %1476 = vmatprep.subr.mxu0 0.0
    %1477 = vmatpush1.msra.mxu0 %v1145
    %1478 = vmatprep.subr.mxu0 0.0
    %1479 = vmatpush1.msra.mxu0 %v1146
    %1480 = vmatprep.subr.mxu0 0.0
    %1481 = vmatpush1.msra.mxu0 %v1147
    %1482 = vmatprep.subr.mxu0 0.0
    %1483 = vmatpush1.msra.mxu0 0.0
    %1484 = vmatprep.subr.mxu0 0.0
    %1485 = vmatpush1.msra.mxu0 0.0
    %1486 = vmatprep.subr.mxu0 0.0
    %1487 = vmatpush1.msra.mxu0 0.0
    %1488 = vmatprep.subr.mxu0 0.0
    %1489 = vmatpush1.msra.mxu0 0.0
    %1490 = vmatprep.subr.mxu0 0.0
    %1491 = vmatpush1.msra.mxu0 0.0
    %1492 = vmatprep.subr.mxu0 0.0
    %1493 = vmatpush1.msra.mxu0 0.0
    %1494 = vmatprep.subr.mxu0 0.0
    %1495 = vmatpush1.msra.mxu0 0.0
    %1496 = vmatprep.subr.mxu0 0.0
    %1497 = vmatpush1.msra.mxu0 0.0
    %1498 = vmatprep.subr.mxu0 0.0
    %1499 = vmatpush1.msra.mxu0 0.0
    %1500 = vmatprep.subr.mxu0 0.0
    %1501 = vmatpush1.msra.mxu0 0.0
    %1502 = vmatprep.subr.mxu0 0.0
    %1503 = vmatpush1.msra.mxu0 0.0
    %1504 = vmatprep.subr.mxu0 0.0
    %1505 = vmatpush1.msra.mxu0 0.0
    %1506 = vmatprep.subr.mxu0 0.0
    %1507 = vmatpush1.msra.mxu0 0.0
    %1508 = vmatprep.subr.mxu0 0.0
    %1509 = vmatpush1.msra.mxu0 0.0
    %1510 = vmatprep.subr.mxu0 0.0
    %1511 = vmatpush1.msra.mxu0 0.0
    %1512 = vmatprep.subr.mxu0 0.0
    %1513 = vmatpush1.msra.mxu0 0.0
    %1514 = vmatprep.subr.mxu0 0.0
    %1515 = vmatpush1.msra.mxu0 0.0
    %1516 = vmatprep.subr.mxu0 0.0
    %1517 = vmatpush1.msra.mxu0 0.0
    %1518 = vmatprep.subr.mxu0 0.0
    %1519 = vmatpush1.msra.mxu0 0.0
    %1520 = vmatprep.subr.mxu0 0.0
    %1521 = vmatpush1.msra.mxu0 0.0
    %1522 = vmatprep.subr.mxu0 0.0
    %1523 = vmatpush1.msra.mxu0 0.0
    %1524 = vmatprep.subr.mxu0 0.0
    %1525 = vmatpush1.msra.mxu0 0.0
    %1526 = vmatprep.subr.mxu0 0.0
    %1527 = vmatpush1.msra.mxu0 0.0
    %1528 = vmatprep.subr.mxu0 0.0
    %1529 = vmatpush1.msra.mxu0 0.0
    %1530 = vmatprep.subr.mxu0 0.0
    %1531 = vmatpush1.msra.mxu0 0.0
    %1532 = vmatprep.subr.mxu0 0.0
    %1533 = vmatpush1.msra.mxu0 0.0
    %1534 = vmatprep.subr.mxu0 0.0
    %1535 = vmatpush1.msra.mxu0 0.0
    %1536 = vmatprep.subr.mxu0 0.0
    %1537 = vmatpush1.msra.mxu0 0.0
    %1538 = vmatprep.mubr.f32.mxu0 0.0
    %1539 = vmatmul.mubr.f32.gmra.mrb[0].mxu0 %v1472
    %v1540 = vpop.f32.mrb[0].mxu0
    %v1541 = vadd.f32 0.0, %v1540
    %v1542 = vpop.f32.mrb[0].mxu0
    %1543 = vdwg.mxu0
    %v1544 = vadd.f32 %v1239, %v1541
    %v1545 = vxor.u32 %v1544, 2147483648
    %v1546 = vmul.f32 %v1545, 1.442695
    %v1547 = vpow.pop %v1546
    %v1548 = vadd.f32 %v1547, 1.0
    %v1549 = vrcp.pop %v1548
    %v1550 = vmul.f32 1.0, %v1549
    %v1551 = vtanh.pop %v1544
    %1553 = vrot.lane.b32.xlu0 %v1470, 32
    %v1554 = vpop.permute.xlu0 %1553
    %v1556 = vmul.f32 %v1550, %v1554
    %1558 = vrot.lane.b32.xlu0 %v1551, 64
    %v1559 = vpop.permute.xlu0 %1558
    %v1561 = vmul.f32 %v1550, %v1559
    %1563 = vrot.lane.b32.xlu0 %v1561, 32
    %v1564 = vpop.permute.xlu0 %1563
    %v1566 = vadd.f32 %v1556, %v1564
    %v1567 = vtanh.pop %v1566
    %1569 = vrot.lane.b32.xlu0 %v1567, 64
    %v1570 = vpop.permute.xlu0 %1569
    %v1572 = vmul.f32 %v1550, %v1570
    %1573 = vrot.lane.b32.xlu0 %v1461, 96
    %v1574 = vpop.permute.xlu0 %1573
    %v1576 = vsel %vm523, %v1572, %v1574
    %v1577 = vsel %vm523, %v1566, %v1554
    %1579 = vrot.lane.b32.xlu0 %v1576, 32
    %v1580 = vpop.permute.xlu0 %1579
    %v1581 = vsel %vm178, %v1580, 0
    %1583 = vmatprep.subr.mxu0 0.0
    %1584 = vmatpush1.msra.mxu0 %v1144
    %1585 = vmatprep.subr.mxu0 0.0
    %1586 = vmatpush1.msra.mxu0 %v1145
    %1587 = vmatprep.subr.mxu0 0.0
    %1588 = vmatpush1.msra.mxu0 %v1146
    %1589 = vmatprep.subr.mxu0 0.0
    %1590 = vmatpush1.msra.mxu0 %v1147
    %1591 = vmatprep.subr.mxu0 0.0
    %1592 = vmatpush1.msra.mxu0 0.0
    %1593 = vmatprep.subr.mxu0 0.0
    %1594 = vmatpush1.msra.mxu0 0.0
    %1595 = vmatprep.subr.mxu0 0.0
    %1596 = vmatpush1.msra.mxu0 0.0
    %1597 = vmatprep.subr.mxu0 0.0
    %1598 = vmatpush1.msra.mxu0 0.0
    %1599 = vmatprep.subr.mxu0 0.0
    %1600 = vmatpush1.msra.mxu0 0.0
    %1601 = vmatprep.subr.mxu0 0.0
    %1602 = vmatpush1.msra.mxu0 0.0
    %1603 = vmatprep.subr.mxu0 0.0
    %1604 = vmatpush1.msra.mxu0 0.0
    %1605 = vmatprep.subr.mxu0 0.0
    %1606 = vmatpush1.msra.mxu0 0.0
    %1607 = vmatprep.subr.mxu0 0.0
    %1608 = vmatpush1.msra.mxu0 0.0
    %1609 = vmatprep.subr.mxu0 0.0
    %1610 = vmatpush1.msra.mxu0 0.0
    %1611 = vmatprep.subr.mxu0 0.0
    %1612 = vmatpush1.msra.mxu0 0.0
    %1613 = vmatprep.subr.mxu0 0.0
    %1614 = vmatpush1.msra.mxu0 0.0
    %1615 = vmatprep.subr.mxu0 0.0
    %1616 = vmatpush1.msra.mxu0 0.0
    %1617 = vmatprep.subr.mxu0 0.0
    %1618 = vmatpush1.msra.mxu0 0.0
    %1619 = vmatprep.subr.mxu0 0.0
    %1620 = vmatpush1.msra.mxu0 0.0
    %1621 = vmatprep.subr.mxu0 0.0
    %1622 = vmatpush1.msra.mxu0 0.0
    %1623 = vmatprep.subr.mxu0 0.0
    %1624 = vmatpush1.msra.mxu0 0.0
    %1625 = vmatprep.subr.mxu0 0.0
    %1626 = vmatpush1.msra.mxu0 0.0
    %1627 = vmatprep.subr.mxu0 0.0
    %1628 = vmatpush1.msra.mxu0 0.0
    %1629 = vmatprep.subr.mxu0 0.0
    %1630 = vmatpush1.msra.mxu0 0.0
    %1631 = vmatprep.subr.mxu0 0.0
    %1632 = vmatpush1.msra.mxu0 0.0
    %1633 = vmatprep.subr.mxu0 0.0
    %1634 = vmatpush1.msra.mxu0 0.0
    %1635 = vmatprep.subr.mxu0 0.0
    %1636 = vmatpush1.msra.mxu0 0.0
    %1637 = vmatprep.subr.mxu0 0.0
    %1638 = vmatpush1.msra.mxu0 0.0
    %1639 = vmatprep.subr.mxu0 0.0
    %1640 = vmatpush1.msra.mxu0 0.0
    %1641 = vmatprep.subr.mxu0 0.0
    %1642 = vmatpush1.msra.mxu0 0.0
    %1643 = vmatprep.subr.mxu0 0.0
    %1644 = vmatpush1.msra.mxu0 0.0
    %1645 = vmatprep.subr.mxu0 0.0
    %1646 = vmatpush1.msra.mxu0 0.0
    %1647 = vmatprep.mubr.f32.mxu0 0.0
    %1648 = vmatmul.mubr.f32.gmra.mrb[0].mxu0 %v1581
    %v1649 = vpop.f32.mrb[0].mxu0
    %v1650 = vadd.f32 0.0, %v1649
    %v1651 = vpop.f32.mrb[0].mxu0
    %1652 = vdwg.mxu0
    %v1654 = vrot.slane %v1650, 4
    %v1656 = vadd.f32 %v1239, %v1654
    %v1657 = vxor.u32 %v1656, 2147483648
    %v1658 = vmul.f32 %v1657, 1.442695
    %v1659 = vpow.pop %v1658
    %v1660 = vadd.f32 %v1659, 1.0
    %v1661 = vrcp.pop %v1660
    %v1662 = vmul.f32 1.0, %v1661
    %v1663 = vtanh.pop %v1656
    %v1665 = vrot.slane %v1577, 4
    %v1667 = vmul.f32 %v1662, %v1665
    %1669 = vrot.lane.b32.xlu0 %v1663, 64
    %v1670 = vpop.permute.xlu0 %1669
    %v1672 = vmul.f32 %v1662, %v1670
    %1674 = vrot.lane.b32.xlu0 %v1672, 32
    %v1675 = vpop.permute.xlu0 %1674
    %v1677 = vadd.f32 %v1667, %v1675
    %v1678 = vtanh.pop %v1677
    %1680 = vrot.lane.b32.xlu0 %v1678, 64
    %v1681 = vpop.permute.xlu0 %1680
    %v1683 = vmul.f32 %v1662, %v1681
    %v1685 = vrot.slane %v1683, 4
    %1686 = vrot.lane.b32.xlu0 %v1685, 32
    %v1687 = vpop.permute.xlu0 %1686
    %v1690 = vsel %vm642, %v1687, %v1580
    %v1692 = vrot.slane %v1677, 4
    %1693 = vrot.lane.b32.xlu0 %v1692, 96
    %v1694 = vpop.permute.xlu0 %1693
    %1696 = vrot.lane.b32.xlu0 %v1577, 96
    %v1697 = vpop.permute.xlu0 %1696
    %v1699 = vsel %vm642, %v1694, %v1697
    %v1701 = vsel %vm178, %v1690, 0
    %1703 = vmatprep.subr.mxu0 0.0
    %1704 = vmatpush1.msra.mxu0 %v1144
    %1705 = vmatprep.subr.mxu0 0.0
    %1706 = vmatpush1.msra.mxu0 %v1145
    %1707 = vmatprep.subr.mxu0 0.0
    %1708 = vmatpush1.msra.mxu0 %v1146
    %1709 = vmatprep.subr.mxu0 0.0
    %1710 = vmatpush1.msra.mxu0 %v1147
    %1711 = vmatprep.subr.mxu0 0.0
    %1712 = vmatpush1.msra.mxu0 0.0
    %1713 = vmatprep.subr.mxu0 0.0
    %1714 = vmatpush1.msra.mxu0 0.0
    %1715 = vmatprep.subr.mxu0 0.0
    %1716 = vmatpush1.msra.mxu0 0.0
    %1717 = vmatprep.subr.mxu0 0.0
    %1718 = vmatpush1.msra.mxu0 0.0
    %1719 = vmatprep.subr.mxu0 0.0
    %1720 = vmatpush1.msra.mxu0 0.0
    %1721 = vmatprep.subr.mxu0 0.0
    %1722 = vmatpush1.msra.mxu0 0.0
    %1723 = vmatprep.subr.mxu0 0.0
    %1724 = vmatpush1.msra.mxu0 0.0
    %1725 = vmatprep.subr.mxu0 0.0
    %1726 = vmatpush1.msra.mxu0 0.0
    %1727 = vmatprep.subr.mxu0 0.0
    %1728 = vmatpush1.msra.mxu0 0.0
    %1729 = vmatprep.subr.mxu0 0.0
    %1730 = vmatpush1.msra.mxu0 0.0
    %1731 = vmatprep.subr.mxu0 0.0
    %1732 = vmatpush1.msra.mxu0 0.0
    %1733 = vmatprep.subr.mxu0 0.0
    %1734 = vmatpush1.msra.mxu0 0.0
    %1735 = vmatprep.subr.mxu0 0.0
    %1736 = vmatpush1.msra.mxu0 0.0
    %1737 = vmatprep.subr.mxu0 0.0
    %1738 = vmatpush1.msra.mxu0 0.0
    %1739 = vmatprep.subr.mxu0 0.0
    %1740 = vmatpush1.msra.mxu0 0.0
    %1741 = vmatprep.subr.mxu0 0.0
    %1742 = vmatpush1.msra.mxu0 0.0
    %1743 = vmatprep.subr.mxu0 0.0
    %1744 = vmatpush1.msra.mxu0 0.0
    %1745 = vmatprep.subr.mxu0 0.0
    %1746 = vmatpush1.msra.mxu0 0.0
    %1747 = vmatprep.subr.mxu0 0.0
    %1748 = vmatpush1.msra.mxu0 0.0
    %1749 = vmatprep.subr.mxu0 0.0
    %1750 = vmatpush1.msra.mxu0 0.0
    %1751 = vmatprep.subr.mxu0 0.0
    %1752 = vmatpush1.msra.mxu0 0.0
    %1753 = vmatprep.subr.mxu0 0.0
    %1754 = vmatpush1.msra.mxu0 0.0
    %1755 = vmatprep.subr.mxu0 0.0
    %1756 = vmatpush1.msra.mxu0 0.0
    %1757 = vmatprep.subr.mxu0 0.0
    %1758 = vmatpush1.msra.mxu0 0.0
    %1759 = vmatprep.subr.mxu0 0.0
    %1760 = vmatpush1.msra.mxu0 0.0
    %1761 = vmatprep.subr.mxu0 0.0
    %1762 = vmatpush1.msra.mxu0 0.0
    %1763 = vmatprep.subr.mxu0 0.0
    %1764 = vmatpush1.msra.mxu0 0.0
    %1765 = vmatprep.subr.mxu0 0.0
    %1766 = vmatpush1.msra.mxu0 0.0
    %1767 = vmatprep.mubr.f32.mxu0 0.0
    %1768 = vmatmul.mubr.f32.gmra.mrb[0].mxu0 %v1701
    %v1769 = vpop.f32.mrb[0].mxu0
    %v1770 = vadd.f32 0.0, %v1769
    %v1771 = vpop.f32.mrb[0].mxu0
    %1772 = vdwg.mxu0
    %v1773 = vadd.f32 %v1244, %v1770
    %v1774 = vxor.u32 %v1773, 2147483648
    %v1775 = vmul.f32 %v1774, 1.442695
    %v1776 = vpow.pop %v1775
    %v1777 = vadd.f32 %v1776, 1.0
    %v1778 = vrcp.pop %v1777
    %v1779 = vmul.f32 1.0, %v1778
    %v1780 = vtanh.pop %v1773
    %1782 = vrot.lane.b32.xlu0 %v1699, 32
    %v1783 = vpop.permute.xlu0 %1782
    %v1785 = vmul.f32 %v1779, %v1783
    %1787 = vrot.lane.b32.xlu0 %v1780, 64
    %v1788 = vpop.permute.xlu0 %1787
    %v1790 = vmul.f32 %v1779, %v1788
    %1792 = vrot.lane.b32.xlu0 %v1790, 32
    %v1793 = vpop.permute.xlu0 %1792
    %v1795 = vadd.f32 %v1785, %v1793
    %v1796 = vtanh.pop %v1795
    %1798 = vrot.lane.b32.xlu0 %v1796, 64
    %v1799 = vpop.permute.xlu0 %1798
    %v1801 = vmul.f32 %v1779, %v1799
    %1802 = vrot.lane.b32.xlu0 %v1690, 96
    %v1803 = vpop.permute.xlu0 %1802
    %v1805 = vsel %vm766, %v1801, %v1803
    %v1806 = vsel %vm766, %v1795, %v1783
    %1808 = vrot.lane.b32.xlu0 %v1805, 32
    %v1809 = vpop.permute.xlu0 %1808
    %v1810 = vsel %vm178, %v1809, 0
    %1812 = vmatprep.subr.mxu0 0.0
    %1813 = vmatpush1.msra.mxu0 %v1144
    %1814 = vmatprep.subr.mxu0 0.0
    %1815 = vmatpush1.msra.mxu0 %v1145
    %1816 = vmatprep.subr.mxu0 0.0
    %1817 = vmatpush1.msra.mxu0 %v1146
    %1818 = vmatprep.subr.mxu0 0.0
    %1819 = vmatpush1.msra.mxu0 %v1147
    %1820 = vmatprep.subr.mxu0 0.0
    %1821 = vmatpush1.msra.mxu0 0.0
    %1822 = vmatprep.subr.mxu0 0.0
    %1823 = vmatpush1.msra.mxu0 0.0
    %1824 = vmatprep.subr.mxu0 0.0
    %1825 = vmatpush1.msra.mxu0 0.0
    %1826 = vmatprep.subr.mxu0 0.0
    %1827 = vmatpush1.msra.mxu0 0.0
    %1828 = vmatprep.subr.mxu0 0.0
    %1829 = vmatpush1.msra.mxu0 0.0
    %1830 = vmatprep.subr.mxu0 0.0
    %1831 = vmatpush1.msra.mxu0 0.0
    %1832 = vmatprep.subr.mxu0 0.0
    %1833 = vmatpush1.msra.mxu0 0.0
    %1834 = vmatprep.subr.mxu0 0.0
    %1835 = vmatpush1.msra.mxu0 0.0
    %1836 = vmatprep.subr.mxu0 0.0
    %1837 = vmatpush1.msra.mxu0 0.0
    %1838 = vmatprep.subr.mxu0 0.0
    %1839 = vmatpush1.msra.mxu0 0.0
    %1840 = vmatprep.subr.mxu0 0.0
    %1841 = vmatpush1.msra.mxu0 0.0
    %1842 = vmatprep.subr.mxu0 0.0
    %1843 = vmatpush1.msra.mxu0 0.0
    %1844 = vmatprep.subr.mxu0 0.0
    %1845 = vmatpush1.msra.mxu0 0.0
    %1846 = vmatprep.subr.mxu0 0.0
    %1847 = vmatpush1.msra.mxu0 0.0
    %1848 = vmatprep.subr.mxu0 0.0
    %1849 = vmatpush1.msra.mxu0 0.0
    %1850 = vmatprep.subr.mxu0 0.0
    %1851 = vmatpush1.msra.mxu0 0.0
    %1852 = vmatprep.subr.mxu0 0.0
    %1853 = vmatpush1.msra.mxu0 0.0
    %1854 = vmatprep.subr.mxu0 0.0
    %1855 = vmatpush1.msra.mxu0 0.0
    %1856 = vmatprep.subr.mxu0 0.0
    %1857 = vmatpush1.msra.mxu0 0.0
    %1858 = vmatprep.subr.mxu0 0.0
    %1859 = vmatpush1.msra.mxu0 0.0
    %1860 = vmatprep.subr.mxu0 0.0
    %1861 = vmatpush1.msra.mxu0 0.0
    %1862 = vmatprep.subr.mxu0 0.0
    %1863 = vmatpush1.msra.mxu0 0.0
    %1864 = vmatprep.subr.mxu0 0.0
    %1865 = vmatpush1.msra.mxu0 0.0
    %1866 = vmatprep.subr.mxu0 0.0
    %1867 = vmatpush1.msra.mxu0 0.0
    %1868 = vmatprep.subr.mxu0 0.0
    %1869 = vmatpush1.msra.mxu0 0.0
    %1870 = vmatprep.subr.mxu0 0.0
    %1871 = vmatpush1.msra.mxu0 0.0
    %1872 = vmatprep.subr.mxu0 0.0
    %1873 = vmatpush1.msra.mxu0 0.0
    %1874 = vmatprep.subr.mxu0 0.0
    %1875 = vmatpush1.msra.mxu0 0.0
    %1876 = vmatprep.mubr.f32.mxu0 0.0
    %1877 = vmatmul.mubr.f32.gmra.mrb[0].mxu0 %v1810
    %v1878 = vpop.f32.mrb[0].mxu0
    %v1879 = vadd.f32 0.0, %v1878
    %v1880 = vpop.f32.mrb[0].mxu0
    %1881 = vdwg.mxu0
    %v1883 = vrot.slane %v1879, 4
    %v1885 = vadd.f32 %v1244, %v1883
    %v1886 = vxor.u32 %v1885, 2147483648
    %v1887 = vmul.f32 %v1886, 1.442695
    %v1888 = vpow.pop %v1887
    %v1889 = vadd.f32 %v1888, 1.0
    %v1890 = vrcp.pop %v1889
    %v1891 = vmul.f32 1.0, %v1890
    %v1892 = vtanh.pop %v1885
    %v1894 = vrot.slane %v1806, 4
    %v1896 = vmul.f32 %v1891, %v1894
    %1898 = vrot.lane.b32.xlu0 %v1892, 64
    %v1899 = vpop.permute.xlu0 %1898
    %v1901 = vmul.f32 %v1891, %v1899
    %1903 = vrot.lane.b32.xlu0 %v1901, 32
    %v1904 = vpop.permute.xlu0 %1903
    %v1906 = vadd.f32 %v1896, %v1904
    %v1907 = vtanh.pop %v1906
    %1909 = vrot.lane.b32.xlu0 %v1907, 64
    %v1910 = vpop.permute.xlu0 %1909
    %v1912 = vmul.f32 %v1891, %v1910
    %v1914 = vrot.slane %v1912, 4
    %1915 = vrot.lane.b32.xlu0 %v1914, 32
    %v1916 = vpop.permute.xlu0 %1915
    %v1919 = vsel %vm885, %v1916, %v1809
    %v1921 = vrot.slane %v1906, 4
    %1922 = vrot.lane.b32.xlu0 %v1921, 96
    %v1923 = vpop.permute.xlu0 %1922
    %1925 = vrot.lane.b32.xlu0 %v1806, 96
    %v1926 = vpop.permute.xlu0 %1925
    %v1928 = vsel %vm885, %v1923, %v1926
    %v1930 = vsel %vm178, %v1919, 0
    %1932 = vmatprep.subr.mxu0 0.0
    %1933 = vmatpush1.msra.mxu0 %v1144
    %1934 = vmatprep.subr.mxu0 0.0
    %1935 = vmatpush1.msra.mxu0 %v1145
    %1936 = vmatprep.subr.mxu0 0.0
    %1937 = vmatpush1.msra.mxu0 %v1146
    %1938 = vmatprep.subr.mxu0 0.0
    %1939 = vmatpush1.msra.mxu0 %v1147
    %1940 = vmatprep.subr.mxu0 0.0
    %1941 = vmatpush1.msra.mxu0 0.0
    %1942 = vmatprep.subr.mxu0 0.0
    %1943 = vmatpush1.msra.mxu0 0.0
    %1944 = vmatprep.subr.mxu0 0.0
    %1945 = vmatpush1.msra.mxu0 0.0
    %1946 = vmatprep.subr.mxu0 0.0
    %1947 = vmatpush1.msra.mxu0 0.0
    %1948 = vmatprep.subr.mxu0 0.0
    %1949 = vmatpush1.msra.mxu0 0.0
    %1950 = vmatprep.subr.mxu0 0.0
    %1951 = vmatpush1.msra.mxu0 0.0
    %1952 = vmatprep.subr.mxu0 0.0
    %1953 = vmatpush1.msra.mxu0 0.0
    %1954 = vmatprep.subr.mxu0 0.0
    %1955 = vmatpush1.msra.mxu0 0.0
    %1956 = vmatprep.subr.mxu0 0.0
    %1957 = vmatpush1.msra.mxu0 0.0
    %1958 = vmatprep.subr.mxu0 0.0
    %1959 = vmatpush1.msra.mxu0 0.0
    %1960 = vmatprep.subr.mxu0 0.0
    %1961 = vmatpush1.msra.mxu0 0.0
    %1962 = vmatprep.subr.mxu0 0.0
    %1963 = vmatpush1.msra.mxu0 0.0
    %1964 = vmatprep.subr.mxu0 0.0
    %1965 = vmatpush1.msra.mxu0 0.0
    %1966 = vmatprep.subr.mxu0 0.0
    %1967 = vmatpush1.msra.mxu0 0.0
    %1968 = vmatprep.subr.mxu0 0.0
    %1969 = vmatpush1.msra.mxu0 0.0
    %1970 = vmatprep.subr.mxu0 0.0
    %1971 = vmatpush1.msra.mxu0 0.0
    %1972 = vmatprep.subr.mxu0 0.0
    %1973 = vmatpush1.msra.mxu0 0.0
    %1974 = vmatprep.subr.mxu0 0.0
    %1975 = vmatpush1.msra.mxu0 0.0
    %1976 = vmatprep.subr.mxu0 0.0
    %1977 = vmatpush1.msra.mxu0 0.0
    %1978 = vmatprep.subr.mxu0 0.0
    %1979 = vmatpush1.msra.mxu0 0.0
    %1980 = vmatprep.subr.mxu0 0.0
    %1981 = vmatpush1.msra.mxu0 0.0
    %1982 = vmatprep.subr.mxu0 0.0
    %1983 = vmatpush1.msra.mxu0 0.0
    %1984 = vmatprep.subr.mxu0 0.0
    %1985 = vmatpush1.msra.mxu0 0.0
    %1986 = vmatprep.subr.mxu0 0.0
    %1987 = vmatpush1.msra.mxu0 0.0
    %1988 = vmatprep.subr.mxu0 0.0
    %1989 = vmatpush1.msra.mxu0 0.0
    %1990 = vmatprep.subr.mxu0 0.0
    %1991 = vmatpush1.msra.mxu0 0.0
    %1992 = vmatprep.subr.mxu0 0.0
    %1993 = vmatpush1.msra.mxu0 0.0
    %1994 = vmatprep.subr.mxu0 0.0
    %1995 = vmatpush1.msra.mxu0 0.0
    %1996 = vmatprep.mubr.f32.mxu0 0.0
    %1997 = vmatmul.mubr.f32.gmra.mrb[0].mxu0 %v1930
    %v1998 = vpop.f32.mrb[0].mxu0
    %v1999 = vadd.f32 0.0, %v1998
    %v2000 = vpop.f32.mrb[0].mxu0
    %2001 = vdwg.mxu0
    %v2002 = vadd.f32 %v1249, %v1999
    %v2003 = vxor.u32 %v2002, 2147483648
    %v2004 = vmul.f32 %v2003, 1.442695
    %v2005 = vpow.pop %v2004
    %v2006 = vadd.f32 %v2005, 1.0
    %v2007 = vrcp.pop %v2006
    %v2008 = vmul.f32 1.0, %v2007
    %v2009 = vtanh.pop %v2002
    %2011 = vrot.lane.b32.xlu0 %v1928, 32
    %v2012 = vpop.permute.xlu0 %2011
    %v2014 = vmul.f32 %v2008, %v2012
    %2016 = vrot.lane.b32.xlu0 %v2009, 64
    %v2017 = vpop.permute.xlu0 %2016
    %v2019 = vmul.f32 %v2008, %v2017
    %2021 = vrot.lane.b32.xlu0 %v2019, 32
    %v2022 = vpop.permute.xlu0 %2021
    %v2024 = vadd.f32 %v2014, %v2022
    %v2025 = vtanh.pop %v2024
    %2027 = vrot.lane.b32.xlu0 %v2025, 64
    %v2028 = vpop.permute.xlu0 %2027
    %v2030 = vmul.f32 %v2008, %v2028
    %2031 = vrot.lane.b32.xlu0 %v1919, 96
    %v2032 = vpop.permute.xlu0 %2031
    %v2034 = vsel %vm1009, %v2030, %v2032
    %v2035 = vsel %vm1009, %v2024, %v2012
    %2037 = vrot.lane.b32.xlu0 %v2034, 32
    %v2038 = vpop.permute.xlu0 %2037
    %v2039 = vsel %vm178, %v2038, 0
    %2041 = vmatprep.subr.mxu0 0.0
    %2042 = vmatpush1.msra.mxu0 %v1144
    %2043 = vmatprep.subr.mxu0 0.0
    %2044 = vmatpush1.msra.mxu0 %v1145
    %2045 = vmatprep.subr.mxu0 0.0
    %2046 = vmatpush1.msra.mxu0 %v1146
    %2047 = vmatprep.subr.mxu0 0.0
    %2048 = vmatpush1.msra.mxu0 %v1147
    %2049 = vmatprep.subr.mxu0 0.0
    %2050 = vmatpush1.msra.mxu0 0.0
    %2051 = vmatprep.subr.mxu0 0.0
    %2052 = vmatpush1.msra.mxu0 0.0
    %2053 = vmatprep.subr.mxu0 0.0
    %2054 = vmatpush1.msra.mxu0 0.0
    %2055 = vmatprep.subr.mxu0 0.0
    %2056 = vmatpush1.msra.mxu0 0.0
    %2057 = vmatprep.subr.mxu0 0.0
    %2058 = vmatpush1.msra.mxu0 0.0
    %2059 = vmatprep.subr.mxu0 0.0
    %2060 = vmatpush1.msra.mxu0 0.0
    %2061 = vmatprep.subr.mxu0 0.0
    %2062 = vmatpush1.msra.mxu0 0.0
    %2063 = vmatprep.subr.mxu0 0.0
    %2064 = vmatpush1.msra.mxu0 0.0
    %2065 = vmatprep.subr.mxu0 0.0
    %2066 = vmatpush1.msra.mxu0 0.0
    %2067 = vmatprep.subr.mxu0 0.0
    %2068 = vmatpush1.msra.mxu0 0.0
    %2069 = vmatprep.subr.mxu0 0.0
    %2070 = vmatpush1.msra.mxu0 0.0
    %2071 = vmatprep.subr.mxu0 0.0
    %2072 = vmatpush1.msra.mxu0 0.0
    %2073 = vmatprep.subr.mxu0 0.0
    %2074 = vmatpush1.msra.mxu0 0.0
    %2075 = vmatprep.subr.mxu0 0.0
    %2076 = vmatpush1.msra.mxu0 0.0
    %2077 = vmatprep.subr.mxu0 0.0
    %2078 = vmatpush1.msra.mxu0 0.0
    %2079 = vmatprep.subr.mxu0 0.0
    %2080 = vmatpush1.msra.mxu0 0.0
    %2081 = vmatprep.subr.mxu0 0.0
    %2082 = vmatpush1.msra.mxu0 0.0
    %2083 = vmatprep.subr.mxu0 0.0
    %2084 = vmatpush1.msra.mxu0 0.0
    %2085 = vmatprep.subr.mxu0 0.0
    %2086 = vmatpush1.msra.mxu0 0.0
    %2087 = vmatprep.subr.mxu0 0.0
    %2088 = vmatpush1.msra.mxu0 0.0
    %2089 = vmatprep.subr.mxu0 0.0
    %2090 = vmatpush1.msra.mxu0 0.0
    %2091 = vmatprep.subr.mxu0 0.0
    %2092 = vmatpush1.msra.mxu0 0.0
    %2093 = vmatprep.subr.mxu0 0.0
    %2094 = vmatpush1.msra.mxu0 0.0
    %2095 = vmatprep.subr.mxu0 0.0
    %2096 = vmatpush1.msra.mxu0 0.0
    %2097 = vmatprep.subr.mxu0 0.0
    %2098 = vmatpush1.msra.mxu0 0.0
    %2099 = vmatprep.subr.mxu0 0.0
    %2100 = vmatpush1.msra.mxu0 0.0
    %2101 = vmatprep.subr.mxu0 0.0
    %2102 = vmatpush1.msra.mxu0 0.0
    %2103 = vmatprep.subr.mxu0 0.0
    %2104 = vmatpush1.msra.mxu0 0.0
    %2105 = vmatprep.mubr.f32.mxu0 0.0
    %2106 = vmatmul.mubr.f32.gmra.mrb[0].mxu0 %v2039
    %v2107 = vpop.f32.mrb[0].mxu0
    %v2108 = vadd.f32 0.0, %v2107
    %v2109 = vpop.f32.mrb[0].mxu0
    %2110 = vdwg.mxu0
    %v2112 = vrot.slane %v2108, 4
    %v2114 = vadd.f32 %v1249, %v2112
    %v2115 = vxor.u32 %v2114, 2147483648
    %v2116 = vmul.f32 %v2115, 1.442695
    %v2117 = vpow.pop %v2116
    %v2118 = vadd.f32 %v2117, 1.0
    %v2119 = vrcp.pop %v2118
    %v2120 = vmul.f32 1.0, %v2119
    %v2121 = vtanh.pop %v2114
    %v2123 = vrot.slane %v2035, 4
    %v2125 = vmul.f32 %v2120, %v2123
    %2127 = vrot.lane.b32.xlu0 %v2121, 64
    %v2128 = vpop.permute.xlu0 %2127
    %v2130 = vmul.f32 %v2120, %v2128
    %2132 = vrot.lane.b32.xlu0 %v2130, 32
    %v2133 = vpop.permute.xlu0 %2132
    %v2135 = vadd.f32 %v2125, %v2133
    %v2136 = vtanh.pop %v2135
    %2138 = vrot.lane.b32.xlu0 %v2136, 64
    %v2139 = vpop.permute.xlu0 %2138
    %v2141 = vmul.f32 %v2120, %v2139
    %v2143 = vrot.slane %v2141, 4
    %2144 = vrot.lane.b32.xlu0 %v2143, 32
    %v2145 = vpop.permute.xlu0 %2144
    %v2148 = vsel %vm1128, %v2145, %v2038
    %v2149 = vld [vmem:[%s10] sm:$0x1]
    %v2151 = vlaneseq
    %v2152 = vshrl.u32 %v2151, 7
    %v2153 = vsub.s32 0, %v2152
    %v2154 = vrot.slane %v2149, %v2153
    %v2156 = vsub.f32 %v2148, %v2154
    %v2157 = vld [vmem:[%s11] sm:$0x1]
    %v2158 = vadd.f32 %v2157, 1e-05
    %v2159 = vrsqrt.pop %v2158
    %v2161 = vlaneseq
    %v2162 = vshrl.u32 %v2161, 7
    %v2163 = vsub.s32 0, %v2162
    %v2164 = vrot.slane %v2159, %v2163
    %v2166 = vmul.f32 %v2156, %v2164
    %v2167 = vld [vmem:[%s8] sm:$0x1]
    %v2169 = vlaneseq
    %v2170 = vshrl.u32 %v2169, 7
    %v2171 = vsub.s32 0, %v2170
    %v2172 = vrot.slane %v2167, %v2171
    %v2174 = vmul.f32 %v2166, %v2172
    %v2175 = vld [vmem:[%s9] sm:$0x1]
    %v2177 = vlaneseq
    %v2178 = vshrl.u32 %v2177, 7
    %v2179 = vsub.s32 0, %v2178
    %v2180 = vrot.slane %v2175, %v2179
    %v2182 = vadd.f32 %v2174, %v2180
    %v2183 = vld [vmem:[%s12] sm:$0xff]
    %v2184 = vld [vmem:[%s12 + $0x8] sm:$0xff]
    %v2185 = vld [vmem:[%s12 + $0x10] sm:$0xff]
    %v2186 = vld [vmem:[%s12 + $0x18] sm:$0xff]
    %v2187 = vld [vmem:[%s13] sm:$0x1]
    %v2189 = vlaneseq
    %v2190 = vshrl.u32 %v2189, 7
    %v2191 = vsub.s32 0, %v2190
    %v2192 = vrot.slane %v2187, %v2191
    %v2195 = vsel %vm178, %v2182, 0
    %2197 = vmatprep.subr.mxu0 0.0
    %2198 = vmatpush1.msra.mxu0 %v2183
    %2199 = vmatprep.subr.mxu0 0.0
    %2200 = vmatpush1.msra.mxu0 %v2184
    %2201 = vmatprep.subr.mxu0 0.0
    %2202 = vmatpush1.msra.mxu0 %v2185
    %2203 = vmatprep.subr.mxu0 0.0
    %2204 = vmatpush1.msra.mxu0 %v2186
    %2205 = vmatprep.subr.mxu0 0.0
    %2206 = vmatpush1.msra.mxu0 0.0
    %2207 = vmatprep.subr.mxu0 0.0
    %2208 = vmatpush1.msra.mxu0 0.0
    %2209 = vmatprep.subr.mxu0 0.0
    %2210 = vmatpush1.msra.mxu0 0.0
    %2211 = vmatprep.subr.mxu0 0.0
    %2212 = vmatpush1.msra.mxu0 0.0
    %2213 = vmatprep.subr.mxu0 0.0
    %2214 = vmatpush1.msra.mxu0 0.0
    %2215 = vmatprep.subr.mxu0 0.0
    %2216 = vmatpush1.msra.mxu0 0.0
    %2217 = vmatprep.subr.mxu0 0.0
    %2218 = vmatpush1.msra.mxu0 0.0
    %2219 = vmatprep.subr.mxu0 0.0
    %2220 = vmatpush1.msra.mxu0 0.0
    %2221 = vmatprep.subr.mxu0 0.0
    %2222 = vmatpush1.msra.mxu0 0.0
    %2223 = vmatprep.subr.mxu0 0.0
    %2224 = vmatpush1.msra.mxu0 0.0
    %2225 = vmatprep.subr.mxu0 0.0
    %2226 = vmatpush1.msra.mxu0 0.0
    %2227 = vmatprep.subr.mxu0 0.0
    %2228 = vmatpush1.msra.mxu0 0.0
    %2229 = vmatprep.subr.mxu0 0.0
    %2230 = vmatpush1.msra.mxu0 0.0
    %2231 = vmatprep.subr.mxu0 0.0
    %2232 = vmatpush1.msra.mxu0 0.0
    %2233 = vmatprep.subr.mxu0 0.0
    %2234 = vmatpush1.msra.mxu0 0.0
    %2235 = vmatprep.subr.mxu0 0.0
    %2236 = vmatpush1.msra.mxu0 0.0
    %2237 = vmatprep.subr.mxu0 0.0
    %2238 = vmatpush1.msra.mxu0 0.0
    %2239 = vmatprep.subr.mxu0 0.0
    %2240 = vmatpush1.msra.mxu0 0.0
    %2241 = vmatprep.subr.mxu0 0.0
    %2242 = vmatpush1.msra.mxu0 0.0
    %2243 = vmatprep.subr.mxu0 0.0
    %2244 = vmatpush1.msra.mxu0 0.0
    %2245 = vmatprep.subr.mxu0 0.0
    %2246 = vmatpush1.msra.mxu0 0.0
    %2247 = vmatprep.subr.mxu0 0.0
    %2248 = vmatpush1.msra.mxu0 0.0
    %2249 = vmatprep.subr.mxu0 0.0
    %2250 = vmatpush1.msra.mxu0 0.0
    %2251 = vmatprep.subr.mxu0 0.0
    %2252 = vmatpush1.msra.mxu0 0.0
    %2253 = vmatprep.subr.mxu0 0.0
    %2254 = vmatpush1.msra.mxu0 0.0
    %2255 = vmatprep.subr.mxu0 0.0
    %2256 = vmatpush1.msra.mxu0 0.0
    %2257 = vmatprep.subr.mxu0 0.0
    %2258 = vmatpush1.msra.mxu0 0.0
    %2259 = vmatprep.subr.mxu0 0.0
    %2260 = vmatpush1.msra.mxu0 0.0
    %2261 = vmatprep.mubr.f32.mxu0 0.0
    %2262 = vmatmul.mubr.f32.gmra.mrb[0].mxu0 %v2195
    %v2263 = vpop.f32.mrb[0].mxu0
    %v2264 = vadd.f32 %v2192, %v2263
    %v2265 = vpop.f32.mrb[0].mxu0
    %2266 = vdwg.mxu0
    %vm2267 = vcmask 60416
    %2268 = vst.msk [vmem:[#allocation6] sm:$0xf] %vm2267, %v2264
    // Predicated region
    $region62: #{tpu_custom_call.1} parent=1 // pred_check
      _
    $region63: #{tpu_custom_call.1} parent=1 // pred_check_branch
      %2270 = sbr.rel (0) target = $region65
    $region64: #{tpu_custom_call.1} parent=1 // pred_region
      %s2272 = ssub.s32 64, 64
      %2273 = vsyncadd [#allocation5], %s2272
      %s2275 = sshll.u32 [#allocation6], 4
      %s2276 = int_to_ptr.vmem [resolvable:$true] %s2275
      %2278 = dma.vmem_to_hbm [thread:$0]  %s2276, 64, %s14, [#allocation5]
    $region65: #{tpu_custom_call.1} parent=1 // pred_fallthru
      _
    // Predicated region
    $region66: #{tpu_custom_call.1} parent=1 // pred_check
      _
    $region67: #{tpu_custom_call.1} parent=1 // pred_check_branch
      %2280 = sbr.rel (0) target = $region69
    $region68: #{tpu_custom_call.1} parent=1 // pred_region
      %2281 = dma.done [#allocation5], 64
    $region69: #{tpu_custom_call.1} parent=1 // pred_fallthru
      _
    %2282 = vsyncpa [#allocation4], 1
    %2283 = vsyncpa [#allocation5], 1

</llo_original>
